<compile_context>
chip_gen: v7x
topology: tpu7x:2x2x1
jax: 0.10.0
libtpu: 0.0.40
codegen_flags: <defaults>
</compile_context>

<pallas_src>
import jax
import jax.numpy as jnp
from jax.experimental import pallas as pl
from jax.experimental.pallas import tpu as pltpu

# ----------------------------- problem sizes -----------------------------
B = 2          # batch
FO = 3         # focal_cnt
C_IN = 4       # input channels fed to block1
H = W = 16
HW = H * W                 # 256
NUM_CH = 64                # resnet34 -> numChannel = 64
DIV = 4                    # resnet34 -> div = 4
FULL = NUM_CH * FO         # 192
MID = FULL // DIV          # 48
CIN_ALL = FO * C_IN        # 12


# ------------------------------- kernel ----------------------------------
def make_tsm_cwa_kernel(lm):
    """lm = number of batches merged onto the lane axis per grid step."""

    def kernel(x_ref, wbd_ref, w1_ref, b1_ref, w2_ref, b2x2_ref, wd_ref,
               invc_ref, o_ref, y_scr):
        # x_ref  : (lm, CIN_ALL, HW)   channels-first, pixels on lanes
        # wbd    : (FULL, CIN_ALL)     block-diagonal block1 weight (focal-major)
        # w1/b1  : (MID, FULL)/(MID,1) ; w2/2*b2 : (FULL, MID)/(FULL,1)
        # wd     : (NUM_CH, FULL)      down_dim weight in native layout
        # invc   : (lm*HW, lm)         per-batch 1/HW mean-pool columns (hoisted)
        # o_ref  : (lm, NUM_CH, HW)
        # y_scr  : (FULL, lm*HW)       VMEM scratch for block1 activations

        # 1) block1 on all focal slices and all merged batches at once:
        #    single (192,12)@(12,lm*256) MXU push; channel order matches
        #    y.view((B, fo*64, h, w)).
        if lm == 1:
            x_slab = x_ref[0]
        else:
            x_slab = jnp.concatenate([x_ref[i] for i in range(lm)], axis=-1)
        y_scr[...] = jnp.maximum(
            jnp.dot(wbd_ref[...], x_slab, preferred_element_type=jnp.float32),
            0.0)

        # 2) global avg / max pool per batch over spatial (the lane axis).
        #    Mean as a block-column matmul (MXU) so it overlaps the XLU max.
        avg = jnp.dot(y_scr[...], invc_ref[...],
                      preferred_element_type=jnp.float32)                 # (FULL, lm)
        mx = jnp.concatenate(
            [jnp.max(y_scr[:, i * HW:(i + 1) * HW], axis=1, keepdims=True)
             for i in range(lm)], axis=1)                                 # (FULL, lm)

        # 3) shared MLP, one pass over the stacked [avg | max] columns.
        pooled = jnp.concatenate([avg, mx], axis=1)                       # (FULL, 2lm)
        h1 = jnp.maximum(
            jnp.dot(w1_ref[...], pooled, preferred_element_type=jnp.float32)
            + b1_ref[...], 0.0)                                           # (MID, 2lm)
        # Sum the avg/max hidden columns BEFORE the second matmul (N=lm);
        # 2*b2 is precomputed (b2 is double-counted on purpose, matching the
        # reference which adds it in both mlp(avg) and mlp(max)).
        hsum = h1[:, :lm] + h1[:, lm:]                                    # (MID, lm)
        att = (jnp.dot(w2_ref[...], hsum, preferred_element_type=jnp.float32)
               + b2x2_ref[...])                                           # (FULL, lm)

        # 4) y*scale + y == y * (sigmoid(att) + 1); apply as an in-place
        #    lane-broadcast scale so down_dim keeps its native MXU orientation.
        gain = jax.nn.sigmoid(att) + 1.0                                  # (FULL, lm)
        for i in range(lm):
            y_scr[:, i * HW:(i + 1) * HW] = (
                y_scr[:, i * HW:(i + 1) * HW] * gain[:, i:i + 1])

        # 5) down_dim: native (64,192)@(192,lm*256) matmul; (64,256) per-batch
        #    lane-dense stores.
        out = jnp.dot(wd_ref[...], y_scr[...],
                      preferred_element_type=jnp.float32)                 # (64, lm*HW)
        for i in range(lm):
            o_ref[i] = out[:, i * HW:(i + 1) * HW].astype(o_ref.dtype)

    return kernel


# ------------------------------- wrapper ----------------------------------
def _pick_lane_merge(batch, two_tensorcores):
    if two_tensorcores:
        return 1          # one batch per grid step; batch axis sharded across TCs
    lm = batch
    while lm > 1 and (batch % lm != 0 or lm * HW > 2048):
        lm -= 1
    return max(lm, 1)


@jax.jit
def tsm_cwa_forward(x, w_block1, w1, b1, w2, b2, wd):
    """x: (B, FO, C_IN, H, W) f32; weights in PyTorch layouts:
         w_block1 (NUM_CH, C_IN)    = block1 conv weight (64,4,1,1) squeezed
         w1 (MID, FULL), b1 (MID,)  = nn.Linear(192, 48)
         w2 (FULL, MID), b2 (FULL,) = nn.Linear(48, 192)
         wd (NUM_CH, FULL)          = down_dim conv weight (64,192,1,1) squeezed
       Returns (B, NUM_CH, H, W) f32 (PyTorch output layout)."""
    b_ = x.shape[0]
    kind = jax.devices()[0].device_kind.lower()
    two_tc = "v7" in kind                       # v7x: 2 TensorCores per chip
    lm = _pick_lane_merge(b_, two_tc)
    grid = (b_ // lm,)

    x_cf = x.reshape(b_, CIN_ALL, HW)                       # free reshape, channels-first
    wbd = jnp.kron(jnp.eye(FO, dtype=x.dtype), w_block1)    # (FULL, CIN_ALL) block-diag
    b1c = b1.reshape(MID, 1)
    b2x2 = (2.0 * b2).reshape(FULL, 1)                      # bias counted twice (see kernel)
    inv_cols = jnp.kron(jnp.eye(lm, dtype=jnp.float32),
                        jnp.full((HW, 1), 1.0 / HW, dtype=jnp.float32))   # (lm*HW, lm)

    def const_spec(a):
        return pl.BlockSpec(a.shape, lambda g: (0,) * a.ndim)

    if two_tc and grid[0] > 1:
        dims = (pltpu.CORE_PARALLEL,)          # actually shard the batch axis across TCs
    else:
        dims = ("arbitrary",)                  # single-TC or single-step grid

    out = pl.pallas_call(
        make_tsm_cwa_kernel(lm),
        out_shape=jax.ShapeDtypeStruct((b_, NUM_CH, HW), jnp.float32),
        grid_spec=pltpu.PrefetchScalarGridSpec(
            num_scalar_prefetch=0,
            grid=grid,
            in_specs=[
                pl.BlockSpec((lm, CIN_ALL, HW), lambda g: (g, 0, 0)),
                const_spec(wbd), const_spec(w1), const_spec(b1c),
                const_spec(w2), const_spec(b2x2), const_spec(wd),
                const_spec(inv_cols),
            ],
            out_specs=pl.BlockSpec((lm, NUM_CH, HW), lambda g: (g, 0, 0)),
            scratch_shapes=[pltpu.VMEM((FULL, lm * HW), jnp.float32)],
        ),
        compiler_params=pltpu.CompilerParams(dimension_semantics=dims),
    )(x_cf, wbd, w1, b1c, w2, b2x2, wd, inv_cols)
    return out.reshape(b_, NUM_CH, H, W)


# ---------------------------- pure-JAX reference --------------------------
def tsm_cwa_ref(x, w_block1, w1, b1, w2, b2, wd):
    b_, fo, c, h, w = x.shape
    xf = x.reshape(b_ * fo, c, h * w)
    yf = jnp.maximum(jnp.einsum("dc,ncp->ndp", w_block1, xf), 0.0)   # block1: conv1x1 + ReLU
    y = yf.reshape(b_, fo * NUM_CH, h * w)                           # (B, FULL, HW) focal-major
    avg = jnp.mean(y, axis=-1)                                        # (B, FULL)
    mx = jnp.max(y, axis=-1)                                          # (B, FULL)

    def mlp(v):
        hid = jnp.maximum(v @ w1.T + b1, 0.0)
        return hid @ w2.T + b2

    scale = jax.nn.sigmoid(mlp(avg) + mlp(mx))[:, :, None]            # (B, FULL, 1)
    y_sc = y * scale + y
    out = jnp.einsum("dc,bcp->bdp", wd, y_sc)                         # (B, NUM_CH, HW)
    return out.reshape(b_, NUM_CH, h, w)


# --------------------------------- main ------------------------------------
if __name__ == "__main__":
    key = jax.random.PRNGKey(0)
    kx, k1, k2, k3, k4, k5, k6 = jax.random.split(key, 7)

    # deterministic synthetic inputs / parameters (PyTorch-natural layouts)
    x = jax.random.normal(kx, (B, FO, C_IN, H, W), dtype=jnp.float32)
    w_block1 = 0.2 * jax.random.normal(k1, (NUM_CH, C_IN), dtype=jnp.float32)   # conv (64,4,1,1)
    w1 = 0.1 * jax.random.normal(k2, (MID, FULL), dtype=jnp.float32)            # Linear(192,48).weight
    b1 = 0.1 * jax.random.normal(k3, (MID,), dtype=jnp.float32)
    w2 = 0.1 * jax.random.normal(k4, (FULL, MID), dtype=jnp.float32)            # Linear(48,192).weight
    b2 = 0.1 * jax.random.normal(k5, (FULL,), dtype=jnp.float32)
    wd = 0.1 * jax.random.normal(k6, (NUM_CH, FULL), dtype=jnp.float32)         # conv (64,192,1,1)

    out = tsm_cwa_forward(x, w_block1, w1, b1, w2, b2, wd)
    out = jax.block_until_ready(out)

    ref = tsm_cwa_ref(x, w_block1, w1, b1, w2, b2, wd)
    assert out.shape == (B, NUM_CH, H, W)
    assert jnp.allclose(out, ref, rtol=2e-4, atol=2e-4), "mismatch vs pure-JAX reference"

    print("KERNEL_OK")
</pallas_src>

<mosaic_0001>
module attributes {stable_mosaic.version = 11 : i64} {
  func.func @kernel(%arg0: i32, %arg1: memref<2x12x256xf32, #tpu.memory_space<vmem>>, %arg2: memref<192x12xf32, #tpu.memory_space<vmem>>, %arg3: memref<48x192xf32, #tpu.memory_space<vmem>>, %arg4: memref<48x1xf32, #tpu.memory_space<vmem>>, %arg5: memref<192x48xf32, #tpu.memory_space<vmem>>, %arg6: memref<192x1xf32, #tpu.memory_space<vmem>>, %arg7: memref<64x192xf32, #tpu.memory_space<vmem>>, %arg8: memref<512x2xf32, #tpu.memory_space<vmem>>, %arg9: memref<2x64x256xf32, #tpu.memory_space<vmem>>, %arg10: memref<192x512xf32, #tpu.memory_space<vmem>>) attributes {dimension_semantics = [#tpu.dimension_semantics<arbitrary>], iteration_bounds = array<i64: 1>, scalar_prefetch = 0 : i64, scratch_operands = 1 : i64, tpu.core_type = #tpu.core_type<tc>, window_params = [{transform_indices = @transform_0, window_bounds = array<i64: 2, 12, 256>}, {pipeline_mode = #tpu.pipeline_mode<synchronous>, transform_indices = @transform_1, window_bounds = array<i64: 192, 12>}, {pipeline_mode = #tpu.pipeline_mode<synchronous>, transform_indices = @transform_2, window_bounds = array<i64: 48, 192>}, {pipeline_mode = #tpu.pipeline_mode<synchronous>, transform_indices = @transform_3, window_bounds = array<i64: 48, 1>}, {pipeline_mode = #tpu.pipeline_mode<synchronous>, transform_indices = @transform_4, window_bounds = array<i64: 192, 48>}, {pipeline_mode = #tpu.pipeline_mode<synchronous>, transform_indices = @transform_5, window_bounds = array<i64: 192, 1>}, {pipeline_mode = #tpu.pipeline_mode<synchronous>, transform_indices = @transform_6, window_bounds = array<i64: 64, 192>}, {pipeline_mode = #tpu.pipeline_mode<synchronous>, transform_indices = @transform_7, window_bounds = array<i64: 512, 2>}, {transform_indices = @transform_8, window_bounds = array<i64: 2, 64, 256>}]} {
    %c0 = arith.constant 0 : index
    %c0_0 = arith.constant 0 : index
    %c0_1 = arith.constant 0 : index
    %0 = vector.load %arg1[%c0, %c0_0, %c0_1] : memref<2x12x256xf32, #tpu.memory_space<vmem>>, vector<1x12x256xf32>
    %1 = vector.shape_cast %0 : vector<1x12x256xf32> to vector<12x256xf32>
    %c1 = arith.constant 1 : index
    %c0_2 = arith.constant 0 : index
    %c0_3 = arith.constant 0 : index
    %2 = vector.load %arg1[%c1, %c0_2, %c0_3] : memref<2x12x256xf32, #tpu.memory_space<vmem>>, vector<1x12x256xf32>
    %3 = vector.shape_cast %2 : vector<1x12x256xf32> to vector<12x256xf32>
    %4 = tpu.concatenate %1, %3 in 1 : vector<12x256xf32>, vector<12x256xf32> -> vector<12x512xf32>
    %c0_4 = arith.constant 0 : index
    %c0_5 = arith.constant 0 : index
    %5 = vector.load %arg2[%c0_4, %c0_5] : memref<192x12xf32, #tpu.memory_space<vmem>>, vector<192x12xf32>
    %cst = arith.constant dense<0.000000e+00> : vector<192x512xf32>
    %6 = tpu.matmul %5, %4, %cst {dimension_numbers = #tpu.dot_dimension_numbers<[1], [0], [0], [1], [0, 0, 1, 1], [], []>} : vector<192x12xf32>, vector<12x512xf32>, vector<192x512xf32> -> vector<192x512xf32>
    %cst_6 = arith.constant 0.000000e+00 : f32
    %7 = vector.broadcast %cst_6 : f32 to vector<192x512xf32>
    %8 = arith.maximumf %6, %7 : vector<192x512xf32>
    %c0_7 = arith.constant 0 : index
    %c0_8 = arith.constant 0 : index
    %9 = vector.load %arg10[%c0_7, %c0_8] : memref<192x512xf32, #tpu.memory_space<vmem>>, vector<192x512xf32>
    tpu.vector_store %arg10[%c0_7, %c0_8], %8 {strides = array<i32>} : memref<192x512xf32, #tpu.memory_space<vmem>>, vector<192x512xf32>,
    %c0_9 = arith.constant 0 : index
    %c0_10 = arith.constant 0 : index
    %10 = vector.load %arg10[%c0_9, %c0_10] : memref<192x512xf32, #tpu.memory_space<vmem>>, vector<192x512xf32>
    %c0_11 = arith.constant 0 : index
    %c0_12 = arith.constant 0 : index
    %11 = vector.load %arg8[%c0_11, %c0_12] : memref<512x2xf32, #tpu.memory_space<vmem>>, vector<512x2xf32>
    %cst_13 = arith.constant dense<0.000000e+00> : vector<192x2xf32>
    %12 = tpu.matmul %10, %11, %cst_13 {dimension_numbers = #tpu.dot_dimension_numbers<[1], [0], [0], [1], [0, 0, 1, 1], [], []>} : vector<192x512xf32>, vector<512x2xf32>, vector<192x2xf32> -> vector<192x2xf32>
    %c0_14 = arith.constant 0 : index
    %c0_15 = arith.constant 0 : index
    %13 = vector.load %arg10[%c0_14, %c0_15] : memref<192x512xf32, #tpu.memory_space<vmem>>, vector<192x256xf32>
    %cst_16 = arith.constant dense<0xFF800000> : vector<192xf32>
    %14 = vector.multi_reduction <maximumf>, %13, %cst_16 [1] : vector<192x256xf32> to vector<192xf32>
    %15 = vector.shape_cast %14 : vector<192xf32> to vector<192x1xf32>
    %c0_17 = arith.constant 0 : index
    %c256 = arith.constant 256 : index
    %16 = vector.load %arg10[%c0_17, %c256] : memref<192x512xf32, #tpu.memory_space<vmem>>, vector<192x256xf32>
    %cst_18 = arith.constant dense<0xFF800000> : vector<192xf32>
    %17 = vector.multi_reduction <maximumf>, %16, %cst_18 [1] : vector<192x256xf32> to vector<192xf32>
    %18 = vector.shape_cast %17 : vector<192xf32> to vector<192x1xf32>
    %19 = tpu.concatenate %15, %18 in 1 : vector<192x1xf32>, vector<192x1xf32> -> vector<192x2xf32>
    %20 = tpu.concatenate %12, %19 in 1 : vector<192x2xf32>, vector<192x2xf32> -> vector<192x4xf32>
    %c0_19 = arith.constant 0 : index
    %c0_20 = arith.constant 0 : index
    %21 = vector.load %arg3[%c0_19, %c0_20] : memref<48x192xf32, #tpu.memory_space<vmem>>, vector<48x192xf32>
    %cst_21 = arith.constant dense<0.000000e+00> : vector<48x4xf32>
    %22 = tpu.matmul %21, %20, %cst_21 {dimension_numbers = #tpu.dot_dimension_numbers<[1], [0], [0], [1], [0, 0, 1, 1], [], []>} : vector<48x192xf32>, vector<192x4xf32>, vector<48x4xf32> -> vector<48x4xf32>
    %c0_22 = arith.constant 0 : index
    %c0_23 = arith.constant 0 : index
    %23 = vector.load %arg4[%c0_22, %c0_23] : memref<48x1xf32, #tpu.memory_space<vmem>>, vector<48x1xf32>
    %24 = vector.broadcast %23 : vector<48x1xf32> to vector<48x4xf32>
    %25 = arith.addf %22, %24 : vector<48x4xf32>
    %cst_24 = arith.constant 0.000000e+00 : f32
    %26 = vector.broadcast %cst_24 : f32 to vector<48x4xf32>
    %27 = arith.maximumf %25, %26 : vector<48x4xf32>
    %28 = vector.extract_strided_slice %27 {offsets = [0, 0], sizes = [48, 2], strides = [1, 1]} : vector<48x4xf32> to vector<48x2xf32>
    %29 = vector.extract_strided_slice %27 {offsets = [0, 2], sizes = [48, 2], strides = [1, 1]} : vector<48x4xf32> to vector<48x2xf32>
    %30 = arith.addf %28, %29 : vector<48x2xf32>
    %c0_25 = arith.constant 0 : index
    %c0_26 = arith.constant 0 : index
    %31 = vector.load %arg5[%c0_25, %c0_26] : memref<192x48xf32, #tpu.memory_space<vmem>>, vector<192x48xf32>
    %cst_27 = arith.constant dense<0.000000e+00> : vector<192x2xf32>
    %32 = tpu.matmul %31, %30, %cst_27 {dimension_numbers = #tpu.dot_dimension_numbers<[1], [0], [0], [1], [0, 0, 1, 1], [], []>} : vector<192x48xf32>, vector<48x2xf32>, vector<192x2xf32> -> vector<192x2xf32>
    %c0_28 = arith.constant 0 : index
    %c0_29 = arith.constant 0 : index
    %33 = vector.load %arg6[%c0_28, %c0_29] : memref<192x1xf32, #tpu.memory_space<vmem>>, vector<192x1xf32>
    %34 = vector.broadcast %33 : vector<192x1xf32> to vector<192x2xf32>
    %35 = arith.addf %32, %34 : vector<192x2xf32>
    %36 = arith.negf %35 : vector<192x2xf32>
    %37 = math.exp %36 : vector<192x2xf32>
    %cst_30 = arith.constant 1.000000e+00 : f32
    %38 = vector.broadcast %cst_30 : f32 to vector<192x2xf32>
    %39 = arith.addf %38, %37 : vector<192x2xf32>
    %40 = arith.divf %38, %39 : vector<192x2xf32>
    %cst_31 = arith.constant 1.000000e+00 : f32
    %41 = vector.broadcast %cst_31 : f32 to vector<192x2xf32>
    %42 = arith.addf %40, %41 : vector<192x2xf32>
    %c0_32 = arith.constant 0 : index
    %c0_33 = arith.constant 0 : index
    %43 = vector.load %arg10[%c0_32, %c0_33] : memref<192x512xf32, #tpu.memory_space<vmem>>, vector<192x256xf32>
    %44 = vector.extract_strided_slice %42 {offsets = [0, 0], sizes = [192, 1], strides = [1, 1]} : vector<192x2xf32> to vector<192x1xf32>
    %45 = vector.broadcast %44 : vector<192x1xf32> to vector<192x256xf32>
    %46 = arith.mulf %43, %45 : vector<192x256xf32>
    %c0_34 = arith.constant 0 : index
    %c0_35 = arith.constant 0 : index
    %47 = vector.load %arg10[%c0_34, %c0_35] : memref<192x512xf32, #tpu.memory_space<vmem>>, vector<192x256xf32>
    tpu.vector_store %arg10[%c0_34, %c0_35], %46 {strides = array<i32>} : memref<192x512xf32, #tpu.memory_space<vmem>>, vector<192x256xf32>,
    %c0_36 = arith.constant 0 : index
    %c256_37 = arith.constant 256 : index
    %48 = vector.load %arg10[%c0_36, %c256_37] : memref<192x512xf32, #tpu.memory_space<vmem>>, vector<192x256xf32>
    %49 = vector.extract_strided_slice %42 {offsets = [0, 1], sizes = [192, 1], strides = [1, 1]} : vector<192x2xf32> to vector<192x1xf32>
    %50 = vector.broadcast %49 : vector<192x1xf32> to vector<192x256xf32>
    %51 = arith.mulf %48, %50 : vector<192x256xf32>
    %c0_38 = arith.constant 0 : index
    %c256_39 = arith.constant 256 : index
    %52 = vector.load %arg10[%c0_38, %c256_39] : memref<192x512xf32, #tpu.memory_space<vmem>>, vector<192x256xf32>
    tpu.vector_store %arg10[%c0_38, %c256_39], %51 {strides = array<i32>} : memref<192x512xf32, #tpu.memory_space<vmem>>, vector<192x256xf32>,
    %c0_40 = arith.constant 0 : index
    %c0_41 = arith.constant 0 : index
    %53 = vector.load %arg7[%c0_40, %c0_41] : memref<64x192xf32, #tpu.memory_space<vmem>>, vector<64x192xf32>
    %c0_42 = arith.constant 0 : index
    %c0_43 = arith.constant 0 : index
    %54 = vector.load %arg10[%c0_42, %c0_43] : memref<192x512xf32, #tpu.memory_space<vmem>>, vector<192x512xf32>
    %cst_44 = arith.constant dense<0.000000e+00> : vector<64x512xf32>
    %55 = tpu.matmul %53, %54, %cst_44 {dimension_numbers = #tpu.dot_dimension_numbers<[1], [0], [0], [1], [0, 0, 1, 1], [], []>} : vector<64x192xf32>, vector<192x512xf32>, vector<64x512xf32> -> vector<64x512xf32>
    %56 = vector.extract_strided_slice %55 {offsets = [0, 0], sizes = [64, 256], strides = [1, 1]} : vector<64x512xf32> to vector<64x256xf32>
    %c0_45 = arith.constant 0 : index
    %c0_46 = arith.constant 0 : index
    %c0_47 = arith.constant 0 : index
    %57 = vector.load %arg9[%c0_45, %c0_46, %c0_47] : memref<2x64x256xf32, #tpu.memory_space<vmem>>, vector<1x64x256xf32>
    %58 = vector.shape_cast %57 : vector<1x64x256xf32> to vector<64x256xf32>
    %59 = vector.shape_cast %56 : vector<64x256xf32> to vector<1x64x256xf32>
    tpu.vector_store %arg9[%c0_45, %c0_46, %c0_47], %59 {strides = array<i32>} : memref<2x64x256xf32, #tpu.memory_space<vmem>>, vector<1x64x256xf32>,
    %60 = vector.extract_strided_slice %55 {offsets = [0, 256], sizes = [64, 256], strides = [1, 1]} : vector<64x512xf32> to vector<64x256xf32>
    %c1_48 = arith.constant 1 : index
    %c0_49 = arith.constant 0 : index
    %c0_50 = arith.constant 0 : index
    %61 = vector.load %arg9[%c1_48, %c0_49, %c0_50] : memref<2x64x256xf32, #tpu.memory_space<vmem>>, vector<1x64x256xf32>
    %62 = vector.shape_cast %61 : vector<1x64x256xf32> to vector<64x256xf32>
    %63 = vector.shape_cast %60 : vector<64x256xf32> to vector<1x64x256xf32>
    tpu.vector_store %arg9[%c1_48, %c0_49, %c0_50], %63 {strides = array<i32>} : memref<2x64x256xf32, #tpu.memory_space<vmem>>, vector<1x64x256xf32>,
    return
  }
  func.func @transform_0(%arg0: i32) -> (i32, i32, i32) {
    %c0_i32 = arith.constant 0 : i32
    %c0_i32_0 = arith.constant 0 : i32
    %c0_i32_1 = arith.constant 0 : i32
    return %arg0, %c0_i32, %c0_i32_0 : i32, i32, i32
  }
  func.func @transform_1(%arg0: i32) -> (i32, i32) {
    %c0_i32 = arith.constant 0 : i32
    %c0_i32_0 = arith.constant 0 : i32
    %c0_i32_1 = arith.constant 0 : i32
    return %c0_i32, %c0_i32_0 : i32, i32
  }
  func.func @transform_2(%arg0: i32) -> (i32, i32) {
    %c0_i32 = arith.constant 0 : i32
    %c0_i32_0 = arith.constant 0 : i32
    %c0_i32_1 = arith.constant 0 : i32
    return %c0_i32, %c0_i32_0 : i32, i32
  }
  func.func @transform_3(%arg0: i32) -> (i32, i32) {
    %c0_i32 = arith.constant 0 : i32
    %c0_i32_0 = arith.constant 0 : i32
    %c0_i32_1 = arith.constant 0 : i32
    return %c0_i32, %c0_i32_0 : i32, i32
  }
  func.func @transform_4(%arg0: i32) -> (i32, i32) {
    %c0_i32 = arith.constant 0 : i32
    %c0_i32_0 = arith.constant 0 : i32
    %c0_i32_1 = arith.constant 0 : i32
    return %c0_i32, %c0_i32_0 : i32, i32
  }
  func.func @transform_5(%arg0: i32) -> (i32, i32) {
    %c0_i32 = arith.constant 0 : i32
    %c0_i32_0 = arith.constant 0 : i32
    %c0_i32_1 = arith.constant 0 : i32
    return %c0_i32, %c0_i32_0 : i32, i32
  }
  func.func @transform_6(%arg0: i32) -> (i32, i32) {
    %c0_i32 = arith.constant 0 : i32
    %c0_i32_0 = arith.constant 0 : i32
    %c0_i32_1 = arith.constant 0 : i32
    return %c0_i32, %c0_i32_0 : i32, i32
  }
  func.func @transform_7(%arg0: i32) -> (i32, i32) {
    %c0_i32 = arith.constant 0 : i32
    %c0_i32_0 = arith.constant 0 : i32
    %c0_i32_1 = arith.constant 0 : i32
    return %c0_i32, %c0_i32_0 : i32, i32
  }
  func.func @transform_8(%arg0: i32) -> (i32, i32, i32) {
    %c0_i32 = arith.constant 0 : i32
    %c0_i32_0 = arith.constant 0 : i32
    %c0_i32_1 = arith.constant 0 : i32
    return %arg0, %c0_i32, %c0_i32_0 : i32, i32, i32
  }
}

</mosaic_0001>

<llo_original>
// kernel: tsm_cwa_forward.1
$region0: #{tsm_cwa_forward.1}
  #allocation0 [shape = 'u32[]', space=smem, size = 0x4, offset = 0x4, fixed_abs, tag = 'smem constant byte address 0x4 - core index']
  #allocation1 [shape = 'u32[144,128]{1,0:T(1,128)}', space=vmem, size = 0x12000, scoped, tag = 'internal scratch']
  #allocation2 [shape = 'f32[192,512]{1,0:T(8,128)}', space=vmem, size = 0x60000, scoped, tag = 'scratch operand']
  %s0 = inlined_call_operand.vmem [shape: f32[2,12,256], index: 0, kind: input, shape index: {}]
  %s1 = inlined_call_operand.vmem [shape: f32[192,12], index: 1, kind: input, shape index: {}]
  %s2 = inlined_call_operand.vmem [shape: f32[48,192], index: 2, kind: input, shape index: {}]
  %s3 = inlined_call_operand.vmem [shape: f32[48,1], index: 3, kind: input, shape index: {}]
  %s4 = inlined_call_operand.vmem [shape: f32[192,48], index: 4, kind: input, shape index: {}]
  %s5 = inlined_call_operand.vmem [shape: f32[192,1], index: 5, kind: input, shape index: {}]
  %s6 = inlined_call_operand.vmem [shape: f32[64,192], index: 6, kind: input, shape index: {}]
  %s7 = inlined_call_operand.vmem [shape: f32[512,2], index: 7, kind: input, shape index: {}]
  %s8 = inlined_call_operand.vmem [shape: f32[2,64,256], index: 8, kind: output, shape index: {}]
  %s9 = sld [smem:[#allocation0]]
  $region42: #{tsm_cwa_forward.1} parent=0
    _
  %s11 = ssub.s32 1, %s9
  %s12 = scalar_select 0, %s11, %s9
  // Predicated region
  $region2: #{tsm_cwa_forward.1} parent=0 // pred_check
    _
  $region3: #{tsm_cwa_forward.1} parent=0 // pred_check_branch
    %14 = sbr.rel (0) target = $region5
  $region4: #{tsm_cwa_forward.1} parent=0 // pred_region
    _
  $region5: #{tsm_cwa_forward.1} parent=0 // pred_fallthru
    _
  // Predicated region
  $region6: #{tsm_cwa_forward.1} parent=0 // pred_check
    _
  $region7: #{tsm_cwa_forward.1} parent=0 // pred_check_branch
    %16 = sbr.rel (0) target = $region9
  $region8: #{tsm_cwa_forward.1} parent=0 // pred_region
    _
  $region9: #{tsm_cwa_forward.1} parent=0 // pred_fallthru
    _
  // Predicated region
  $region10: #{tsm_cwa_forward.1} parent=0 // pred_check
    _
  $region11: #{tsm_cwa_forward.1} parent=0 // pred_check_branch
    %18 = sbr.rel (0) target = $region13
  $region12: #{tsm_cwa_forward.1} parent=0 // pred_region
    _
  $region13: #{tsm_cwa_forward.1} parent=0 // pred_fallthru
    _
  // Predicated region
  $region14: #{tsm_cwa_forward.1} parent=0 // pred_check
    _
  $region15: #{tsm_cwa_forward.1} parent=0 // pred_check_branch
    %20 = sbr.rel (0) target = $region17
  $region16: #{tsm_cwa_forward.1} parent=0 // pred_region
    _
  $region17: #{tsm_cwa_forward.1} parent=0 // pred_fallthru
    _
  // Predicated region
  $region18: #{tsm_cwa_forward.1} parent=0 // pred_check
    _
  $region19: #{tsm_cwa_forward.1} parent=0 // pred_check_branch
    %22 = sbr.rel (0) target = $region21
  $region20: #{tsm_cwa_forward.1} parent=0 // pred_region
    _
  $region21: #{tsm_cwa_forward.1} parent=0 // pred_fallthru
    _
  // Predicated region
  $region22: #{tsm_cwa_forward.1} parent=0 // pred_check
    _
  $region23: #{tsm_cwa_forward.1} parent=0 // pred_check_branch
    %24 = sbr.rel (0) target = $region25
  $region24: #{tsm_cwa_forward.1} parent=0 // pred_region
    _
  $region25: #{tsm_cwa_forward.1} parent=0 // pred_fallthru
    _
  // Predicated region
  $region26: #{tsm_cwa_forward.1} parent=0 // pred_check
    _
  $region27: #{tsm_cwa_forward.1} parent=0 // pred_check_branch
    %26 = sbr.rel (0) target = $region29
  $region28: #{tsm_cwa_forward.1} parent=0 // pred_region
    _
  $region29: #{tsm_cwa_forward.1} parent=0 // pred_fallthru
    _
  // Predicated region
  $region30: #{tsm_cwa_forward.1} parent=0 // pred_check
    _
  $region31: #{tsm_cwa_forward.1} parent=0 // pred_check_branch
    %28 = sbr.rel (0) target = $region33
  $region32: #{tsm_cwa_forward.1} parent=0 // pred_region
    _
  $region33: #{tsm_cwa_forward.1} parent=0 // pred_fallthru
    _
  %v29 = vld [vmem:[%s0] sm:$0xff]
  %v30 = vld [vmem:[%s0 + $0x8] sm:$0xff]
  %v31 = vld [vmem:[%s0 + $0x10] sm:$0xf]
  %v32 = vld [vmem:[%s0 + $0x18] sm:$0xf]
  %s33 = scalar_lea.vmem %s0, 32
  %v34 = vld [vmem:[%s33] sm:$0xff]
  %v35 = vld [vmem:[%s33 + $0x8] sm:$0xff]
  %v36 = vld [vmem:[%s33 + $0x10] sm:$0xf]
  %v37 = vld [vmem:[%s33 + $0x18] sm:$0xf]
  %v38 = vld [vmem:[%s1] sm:$0xff]
  %v39 = vld [vmem:[%s1 + $0x8] sm:$0xff]
  %v40 = vld [vmem:[%s1 + $0x10] sm:$0xff]
  %v41 = vld [vmem:[%s1 + $0x18] sm:$0xff]
  %v42 = vld [vmem:[%s1 + $0x20] sm:$0xff]
  %v43 = vld [vmem:[%s1 + $0x28] sm:$0xff]
  %v44 = vld [vmem:[%s1 + $0x30] sm:$0xff]
  %v45 = vld [vmem:[%s1 + $0x38] sm:$0xff]
  %v46 = vld [vmem:[%s1 + $0x40] sm:$0xff]
  %v47 = vld [vmem:[%s1 + $0x48] sm:$0xff]
  %v48 = vld [vmem:[%s1 + $0x50] sm:$0xff]
  %v49 = vld [vmem:[%s1 + $0x58] sm:$0xff]
  %v50 = vld [vmem:[%s1 + $0x60] sm:$0xff]
  %v51 = vld [vmem:[%s1 + $0x68] sm:$0xff]
  %v52 = vld [vmem:[%s1 + $0x70] sm:$0xff]
  %v53 = vld [vmem:[%s1 + $0x78] sm:$0xff]
  %v54 = vld [vmem:[%s1 + $0x80] sm:$0xff]
  %v55 = vld [vmem:[%s1 + $0x88] sm:$0xff]
  %v56 = vld [vmem:[%s1 + $0x90] sm:$0xff]
  %v57 = vld [vmem:[%s1 + $0x98] sm:$0xff]
  %v58 = vld [vmem:[%s1 + $0xa0] sm:$0xff]
  %v59 = vld [vmem:[%s1 + $0xa8] sm:$0xff]
  %v60 = vld [vmem:[%s1 + $0xb0] sm:$0xff]
  %v61 = vld [vmem:[%s1 + $0xb8] sm:$0xff]
  %vm62 = vcmask 97280
  %v64 = vsel %vm62, %v38, 0
  %v67 = vsel %vm62, %v39, 0
  %v70 = vsel %vm62, %v40, 0
  %v73 = vsel %vm62, %v41, 0
  %v76 = vsel %vm62, %v42, 0
  %v79 = vsel %vm62, %v43, 0
  %v82 = vsel %vm62, %v44, 0
  %v85 = vsel %vm62, %v45, 0
  %v88 = vsel %vm62, %v46, 0
  %v91 = vsel %vm62, %v47, 0
  %v94 = vsel %vm62, %v48, 0
  %v97 = vsel %vm62, %v49, 0
  %v100 = vsel %vm62, %v50, 0
  %v103 = vsel %vm62, %v51, 0
  %v106 = vsel %vm62, %v52, 0
  %v109 = vsel %vm62, %v53, 0
  %v112 = vsel %vm62, %v54, 0
  %v115 = vsel %vm62, %v55, 0
  %v118 = vsel %vm62, %v56, 0
  %v121 = vsel %vm62, %v57, 0
  %v124 = vsel %vm62, %v58, 0
  %v127 = vsel %vm62, %v59, 0
  %v130 = vsel %vm62, %v60, 0
  %v133 = vsel %vm62, %v61, 0
  %vm135 = vcmask 1043456
  %v137 = vsel %vm135, %v31, 0
  %v140 = vsel %vm135, %v32, 0
  %v143 = vsel %vm135, %v36, 0
  %v146 = vsel %vm135, %v37, 0
  %148 = vmatprep.subr.mxu0 %v30
  %149 = vmatpush1.msra.mxu0 %v29
  %150 = vmatprep.subr.mxu0 %v140
  %151 = vmatpush1.msra.mxu0 %v137
  %152 = vmatprep.subr.mxu0 0.0
  %153 = vmatpush1.msra.mxu0 0.0
  %154 = vmatprep.subr.mxu0 0.0
  %155 = vmatpush1.msra.mxu0 0.0
  %156 = vmatprep.subr.mxu0 0.0
  %157 = vmatpush1.msra.mxu0 0.0
  %158 = vmatprep.subr.mxu0 0.0
  %159 = vmatpush1.msra.mxu0 0.0
  %160 = vmatprep.subr.mxu0 0.0
  %161 = vmatpush1.msra.mxu0 0.0
  %162 = vmatprep.subr.mxu0 0.0
  %163 = vmatpush1.msra.mxu0 0.0
  %164 = vmatprep.subr.mxu0 0.0
  %165 = vmatpush1.msra.mxu0 0.0
  %166 = vmatprep.subr.mxu0 0.0
  %167 = vmatpush1.msra.mxu0 0.0
  %168 = vmatprep.subr.mxu0 0.0
  %169 = vmatpush1.msra.mxu0 0.0
  %170 = vmatprep.subr.mxu0 0.0
  %171 = vmatpush1.msra.mxu0 0.0
  %172 = vmatprep.subr.mxu0 0.0
  %173 = vmatpush1.msra.mxu0 0.0
  %174 = vmatprep.subr.mxu0 0.0
  %175 = vmatpush1.msra.mxu0 0.0
  %176 = vmatprep.subr.mxu0 0.0
  %177 = vmatpush1.msra.mxu0 0.0
  %178 = vmatprep.subr.mxu0 0.0
  %179 = vmatpush1.msra.mxu0 0.0
  %180 = vmatprep.subr.mxu0 0.0
  %181 = vmatpush1.msra.mxu0 0.0
  %182 = vmatprep.subr.mxu0 0.0
  %183 = vmatpush1.msra.mxu0 0.0
  %184 = vmatprep.subr.mxu0 0.0
  %185 = vmatpush1.msra.mxu0 0.0
  %186 = vmatprep.subr.mxu0 0.0
  %187 = vmatpush1.msra.mxu0 0.0
  %188 = vmatprep.subr.mxu0 0.0
  %189 = vmatpush1.msra.mxu0 0.0
  %190 = vmatprep.subr.mxu0 0.0
  %191 = vmatpush1.msra.mxu0 0.0
  %192 = vmatprep.subr.mxu0 0.0
  %193 = vmatpush1.msra.mxu0 0.0
  %194 = vmatprep.subr.mxu0 0.0
  %195 = vmatpush1.msra.mxu0 0.0
  %196 = vmatprep.subr.mxu0 0.0
  %197 = vmatpush1.msra.mxu0 0.0
  %198 = vmatprep.subr.mxu0 0.0
  %199 = vmatpush1.msra.mxu0 0.0
  %200 = vmatprep.subr.mxu0 0.0
  %201 = vmatpush1.msra.mxu0 0.0
  %202 = vmatprep.subr.mxu0 0.0
  %203 = vmatpush1.msra.mxu0 0.0
  %204 = vmatprep.subr.mxu0 0.0
  %205 = vmatpush1.msra.mxu0 0.0
  %206 = vmatprep.subr.mxu0 0.0
  %207 = vmatpush1.msra.mxu0 0.0
  %208 = vmatprep.subr.mxu0 0.0
  %209 = vmatpush1.msra.mxu0 0.0
  %210 = vmatprep.subr.mxu0 0.0
  %211 = vmatpush1.msra.mxu0 0.0
  %212 = vmatprep.mubr.f32.mxu0 0.0
  %213 = vmatmul.mubr.f32.gmra.mrb[0].mxu0 %v64
  %v214 = vpop.f32.mrb[0].mxu0
  %v215 = vadd.f32 0.0, %v214
  %v216 = vpop.f32.mrb[0].mxu0
  %v217 = vadd.f32 0.0, %v216
  %218 = vmatprep.mubr.f32.mxu0 0.0
  %219 = vmatmul.mubr.f32.gmra.mrb[0].mxu0 %v67
  %v220 = vpop.f32.mrb[0].mxu0
  %v221 = vadd.f32 0.0, %v220
  %v222 = vpop.f32.mrb[0].mxu0
  %v223 = vadd.f32 0.0, %v222
  %224 = vmatprep.mubr.f32.mxu0 0.0
  %225 = vmatmul.mubr.f32.gmra.mrb[0].mxu0 %v70
  %v226 = vpop.f32.mrb[0].mxu0
  %v227 = vadd.f32 0.0, %v226
  %v228 = vpop.f32.mrb[0].mxu0
  %v229 = vadd.f32 0.0, %v228
  %230 = vmatprep.mubr.f32.mxu0 0.0
  %231 = vmatmul.mubr.f32.gmra.mrb[0].mxu0 %v73
  %v232 = vpop.f32.mrb[0].mxu0
  %v233 = vadd.f32 0.0, %v232
  %v234 = vpop.f32.mrb[0].mxu0
  %v235 = vadd.f32 0.0, %v234
  %236 = vmatprep.mubr.f32.mxu0 0.0
  %237 = vmatmul.mubr.f32.gmra.mrb[0].mxu0 %v76
  %v238 = vpop.f32.mrb[0].mxu0
  %v239 = vadd.f32 0.0, %v238
  %v240 = vpop.f32.mrb[0].mxu0
  %v241 = vadd.f32 0.0, %v240
  %242 = vmatprep.mubr.f32.mxu0 0.0
  %243 = vmatmul.mubr.f32.gmra.mrb[0].mxu0 %v79
  %v244 = vpop.f32.mrb[0].mxu0
  %v245 = vadd.f32 0.0, %v244
  %v246 = vpop.f32.mrb[0].mxu0
  %v247 = vadd.f32 0.0, %v246
  %248 = vmatprep.mubr.f32.mxu0 0.0
  %249 = vmatmul.mubr.f32.gmra.mrb[0].mxu0 %v82
  %v250 = vpop.f32.mrb[0].mxu0
  %v251 = vadd.f32 0.0, %v250
  %v252 = vpop.f32.mrb[0].mxu0
  %v253 = vadd.f32 0.0, %v252
  %254 = vmatprep.mubr.f32.mxu0 0.0
  %255 = vmatmul.mubr.f32.gmra.mrb[0].mxu0 %v85
  %v256 = vpop.f32.mrb[0].mxu0
  %v257 = vadd.f32 0.0, %v256
  %v258 = vpop.f32.mrb[0].mxu0
  %v259 = vadd.f32 0.0, %v258
  %260 = vmatprep.mubr.f32.mxu0 0.0
  %261 = vmatmul.mubr.f32.gmra.mrb[0].mxu0 %v88
  %v262 = vpop.f32.mrb[0].mxu0
  %v263 = vadd.f32 0.0, %v262
  %v264 = vpop.f32.mrb[0].mxu0
  %v265 = vadd.f32 0.0, %v264
  %266 = vmatprep.mubr.f32.mxu0 0.0
  %267 = vmatmul.mubr.f32.gmra.mrb[0].mxu0 %v91
  %v268 = vpop.f32.mrb[0].mxu0
  %v269 = vadd.f32 0.0, %v268
  %v270 = vpop.f32.mrb[0].mxu0
  %v271 = vadd.f32 0.0, %v270
  %272 = vmatprep.mubr.f32.mxu0 0.0
  %273 = vmatmul.mubr.f32.gmra.mrb[0].mxu0 %v94
  %v274 = vpop.f32.mrb[0].mxu0
  %v275 = vadd.f32 0.0, %v274
  %v276 = vpop.f32.mrb[0].mxu0
  %v277 = vadd.f32 0.0, %v276
  %278 = vmatprep.mubr.f32.mxu0 0.0
  %279 = vmatmul.mubr.f32.gmra.mrb[0].mxu0 %v97
  %v280 = vpop.f32.mrb[0].mxu0
  %v281 = vadd.f32 0.0, %v280
  %v282 = vpop.f32.mrb[0].mxu0
  %v283 = vadd.f32 0.0, %v282
  %284 = vmatprep.mubr.f32.mxu0 0.0
  %285 = vmatmul.mubr.f32.gmra.mrb[0].mxu0 %v100
  %v286 = vpop.f32.mrb[0].mxu0
  %v287 = vadd.f32 0.0, %v286
  %v288 = vpop.f32.mrb[0].mxu0
  %v289 = vadd.f32 0.0, %v288
  %290 = vmatprep.mubr.f32.mxu0 0.0
  %291 = vmatmul.mubr.f32.gmra.mrb[0].mxu0 %v103
  %v292 = vpop.f32.mrb[0].mxu0
  %v293 = vadd.f32 0.0, %v292
  %v294 = vpop.f32.mrb[0].mxu0
  %v295 = vadd.f32 0.0, %v294
  %296 = vmatprep.mubr.f32.mxu0 0.0
  %297 = vmatmul.mubr.f32.gmra.mrb[0].mxu0 %v106
  %v298 = vpop.f32.mrb[0].mxu0
  %v299 = vadd.f32 0.0, %v298
  %v300 = vpop.f32.mrb[0].mxu0
  %v301 = vadd.f32 0.0, %v300
  %302 = vmatprep.mubr.f32.mxu0 0.0
  %303 = vmatmul.mubr.f32.gmra.mrb[0].mxu0 %v109
  %v304 = vpop.f32.mrb[0].mxu0
  %v305 = vadd.f32 0.0, %v304
  %v306 = vpop.f32.mrb[0].mxu0
  %v307 = vadd.f32 0.0, %v306
  %308 = vmatprep.mubr.f32.mxu0 0.0
  %309 = vmatmul.mubr.f32.gmra.mrb[0].mxu0 %v112
  %v310 = vpop.f32.mrb[0].mxu0
  %v311 = vadd.f32 0.0, %v310
  %v312 = vpop.f32.mrb[0].mxu0
  %v313 = vadd.f32 0.0, %v312
  %314 = vmatprep.mubr.f32.mxu0 0.0
  %315 = vmatmul.mubr.f32.gmra.mrb[0].mxu0 %v115
  %v316 = vpop.f32.mrb[0].mxu0
  %v317 = vadd.f32 0.0, %v316
  %v318 = vpop.f32.mrb[0].mxu0
  %v319 = vadd.f32 0.0, %v318
  %320 = vmatprep.mubr.f32.mxu0 0.0
  %321 = vmatmul.mubr.f32.gmra.mrb[0].mxu0 %v118
  %v322 = vpop.f32.mrb[0].mxu0
  %v323 = vadd.f32 0.0, %v322
  %v324 = vpop.f32.mrb[0].mxu0
  %v325 = vadd.f32 0.0, %v324
  %326 = vmatprep.mubr.f32.mxu0 0.0
  %327 = vmatmul.mubr.f32.gmra.mrb[0].mxu0 %v121
  %v328 = vpop.f32.mrb[0].mxu0
  %v329 = vadd.f32 0.0, %v328
  %v330 = vpop.f32.mrb[0].mxu0
  %v331 = vadd.f32 0.0, %v330
  %332 = vmatprep.mubr.f32.mxu0 0.0
  %333 = vmatmul.mubr.f32.gmra.mrb[0].mxu0 %v124
  %v334 = vpop.f32.mrb[0].mxu0
  %v335 = vadd.f32 0.0, %v334
  %v336 = vpop.f32.mrb[0].mxu0
  %v337 = vadd.f32 0.0, %v336
  %338 = vmatprep.mubr.f32.mxu0 0.0
  %339 = vmatmul.mubr.f32.gmra.mrb[0].mxu0 %v127
  %v340 = vpop.f32.mrb[0].mxu0
  %v341 = vadd.f32 0.0, %v340
  %v342 = vpop.f32.mrb[0].mxu0
  %v343 = vadd.f32 0.0, %v342
  %344 = vmatprep.mubr.f32.mxu0 0.0
  %345 = vmatmul.mubr.f32.gmra.mrb[0].mxu0 %v130
  %v346 = vpop.f32.mrb[0].mxu0
  %v347 = vadd.f32 0.0, %v346
  %v348 = vpop.f32.mrb[0].mxu0
  %v349 = vadd.f32 0.0, %v348
  %350 = vmatprep.mubr.f32.mxu0 0.0
  %351 = vmatmul.mubr.f32.gmra.mrb[0].mxu0 %v133
  %v352 = vpop.f32.mrb[0].mxu0
  %v353 = vadd.f32 0.0, %v352
  %v354 = vpop.f32.mrb[0].mxu0
  %v355 = vadd.f32 0.0, %v354
  %356 = vdwg.mxu0
  %357 = vmatprep.subr.mxu0 %v35
  %358 = vmatpush1.msra.mxu0 %v34
  %359 = vmatprep.subr.mxu0 %v146
  %360 = vmatpush1.msra.mxu0 %v143
  %361 = vmatprep.subr.mxu0 0.0
  %362 = vmatpush1.msra.mxu0 0.0
  %363 = vmatprep.subr.mxu0 0.0
  %364 = vmatpush1.msra.mxu0 0.0
  %365 = vmatprep.subr.mxu0 0.0
  %366 = vmatpush1.msra.mxu0 0.0
  %367 = vmatprep.subr.mxu0 0.0
  %368 = vmatpush1.msra.mxu0 0.0
  %369 = vmatprep.subr.mxu0 0.0
  %370 = vmatpush1.msra.mxu0 0.0
  %371 = vmatprep.subr.mxu0 0.0
  %372 = vmatpush1.msra.mxu0 0.0
  %373 = vmatprep.subr.mxu0 0.0
  %374 = vmatpush1.msra.mxu0 0.0
  %375 = vmatprep.subr.mxu0 0.0
  %376 = vmatpush1.msra.mxu0 0.0
  %377 = vmatprep.subr.mxu0 0.0
  %378 = vmatpush1.msra.mxu0 0.0
  %379 = vmatprep.subr.mxu0 0.0
  %380 = vmatpush1.msra.mxu0 0.0
  %381 = vmatprep.subr.mxu0 0.0
  %382 = vmatpush1.msra.mxu0 0.0
  %383 = vmatprep.subr.mxu0 0.0
  %384 = vmatpush1.msra.mxu0 0.0
  %385 = vmatprep.subr.mxu0 0.0
  %386 = vmatpush1.msra.mxu0 0.0
  %387 = vmatprep.subr.mxu0 0.0
  %388 = vmatpush1.msra.mxu0 0.0
  %389 = vmatprep.subr.mxu0 0.0
  %390 = vmatpush1.msra.mxu0 0.0
  %391 = vmatprep.subr.mxu0 0.0
  %392 = vmatpush1.msra.mxu0 0.0
  %393 = vmatprep.subr.mxu0 0.0
  %394 = vmatpush1.msra.mxu0 0.0
  %395 = vmatprep.subr.mxu0 0.0
  %396 = vmatpush1.msra.mxu0 0.0
  %397 = vmatprep.subr.mxu0 0.0
  %398 = vmatpush1.msra.mxu0 0.0
  %399 = vmatprep.subr.mxu0 0.0
  %400 = vmatpush1.msra.mxu0 0.0
  %401 = vmatprep.subr.mxu0 0.0
  %402 = vmatpush1.msra.mxu0 0.0
  %403 = vmatprep.subr.mxu0 0.0
  %404 = vmatpush1.msra.mxu0 0.0
  %405 = vmatprep.subr.mxu0 0.0
  %406 = vmatpush1.msra.mxu0 0.0
  %407 = vmatprep.subr.mxu0 0.0
  %408 = vmatpush1.msra.mxu0 0.0
  %409 = vmatprep.subr.mxu0 0.0
  %410 = vmatpush1.msra.mxu0 0.0
  %411 = vmatprep.subr.mxu0 0.0
  %412 = vmatpush1.msra.mxu0 0.0
  %413 = vmatprep.subr.mxu0 0.0
  %414 = vmatpush1.msra.mxu0 0.0
  %415 = vmatprep.subr.mxu0 0.0
  %416 = vmatpush1.msra.mxu0 0.0
  %417 = vmatprep.subr.mxu0 0.0
  %418 = vmatpush1.msra.mxu0 0.0
  %419 = vmatprep.subr.mxu0 0.0
  %420 = vmatpush1.msra.mxu0 0.0
  %421 = vmatprep.mubr.f32.mxu0 0.0
  %422 = vmatmul.mubr.f32.gmra.mrb[0].mxu0 %v64
  %v423 = vpop.f32.mrb[0].mxu0
  %v424 = vadd.f32 0.0, %v423
  %v425 = vpop.f32.mrb[0].mxu0
  %v426 = vadd.f32 0.0, %v425
  %427 = vmatprep.mubr.f32.mxu0 0.0
  %428 = vmatmul.mubr.f32.gmra.mrb[0].mxu0 %v67
  %v429 = vpop.f32.mrb[0].mxu0
  %v430 = vadd.f32 0.0, %v429
  %v431 = vpop.f32.mrb[0].mxu0
  %v432 = vadd.f32 0.0, %v431
  %433 = vmatprep.mubr.f32.mxu0 0.0
  %434 = vmatmul.mubr.f32.gmra.mrb[0].mxu0 %v70
  %v435 = vpop.f32.mrb[0].mxu0
  %v436 = vadd.f32 0.0, %v435
  %v437 = vpop.f32.mrb[0].mxu0
  %v438 = vadd.f32 0.0, %v437
  %439 = vmatprep.mubr.f32.mxu0 0.0
  %440 = vmatmul.mubr.f32.gmra.mrb[0].mxu0 %v73
  %v441 = vpop.f32.mrb[0].mxu0
  %v442 = vadd.f32 0.0, %v441
  %v443 = vpop.f32.mrb[0].mxu0
  %v444 = vadd.f32 0.0, %v443
  %445 = vmatprep.mubr.f32.mxu0 0.0
  %446 = vmatmul.mubr.f32.gmra.mrb[0].mxu0 %v76
  %v447 = vpop.f32.mrb[0].mxu0
  %v448 = vadd.f32 0.0, %v447
  %v449 = vpop.f32.mrb[0].mxu0
  %v450 = vadd.f32 0.0, %v449
  %451 = vmatprep.mubr.f32.mxu0 0.0
  %452 = vmatmul.mubr.f32.gmra.mrb[0].mxu0 %v79
  %v453 = vpop.f32.mrb[0].mxu0
  %v454 = vadd.f32 0.0, %v453
  %v455 = vpop.f32.mrb[0].mxu0
  %v456 = vadd.f32 0.0, %v455
  %457 = vmatprep.mubr.f32.mxu0 0.0
  %458 = vmatmul.mubr.f32.gmra.mrb[0].mxu0 %v82
  %v459 = vpop.f32.mrb[0].mxu0
  %v460 = vadd.f32 0.0, %v459
  %v461 = vpop.f32.mrb[0].mxu0
  %v462 = vadd.f32 0.0, %v461
  %463 = vmatprep.mubr.f32.mxu0 0.0
  %464 = vmatmul.mubr.f32.gmra.mrb[0].mxu0 %v85
  %v465 = vpop.f32.mrb[0].mxu0
  %v466 = vadd.f32 0.0, %v465
  %v467 = vpop.f32.mrb[0].mxu0
  %v468 = vadd.f32 0.0, %v467
  %469 = vmatprep.mubr.f32.mxu0 0.0
  %470 = vmatmul.mubr.f32.gmra.mrb[0].mxu0 %v88
  %v471 = vpop.f32.mrb[0].mxu0
  %v472 = vadd.f32 0.0, %v471
  %v473 = vpop.f32.mrb[0].mxu0
  %v474 = vadd.f32 0.0, %v473
  %475 = vmatprep.mubr.f32.mxu0 0.0
  %476 = vmatmul.mubr.f32.gmra.mrb[0].mxu0 %v91
  %v477 = vpop.f32.mrb[0].mxu0
  %v478 = vadd.f32 0.0, %v477
  %v479 = vpop.f32.mrb[0].mxu0
  %v480 = vadd.f32 0.0, %v479
  %481 = vmatprep.mubr.f32.mxu0 0.0
  %482 = vmatmul.mubr.f32.gmra.mrb[0].mxu0 %v94
  %v483 = vpop.f32.mrb[0].mxu0
  %v484 = vadd.f32 0.0, %v483
  %v485 = vpop.f32.mrb[0].mxu0
  %v486 = vadd.f32 0.0, %v485
  %487 = vmatprep.mubr.f32.mxu0 0.0
  %488 = vmatmul.mubr.f32.gmra.mrb[0].mxu0 %v97
  %v489 = vpop.f32.mrb[0].mxu0
  %v490 = vadd.f32 0.0, %v489
  %v491 = vpop.f32.mrb[0].mxu0
  %v492 = vadd.f32 0.0, %v491
  %493 = vmatprep.mubr.f32.mxu0 0.0
  %494 = vmatmul.mubr.f32.gmra.mrb[0].mxu0 %v100
  %v495 = vpop.f32.mrb[0].mxu0
  %v496 = vadd.f32 0.0, %v495
  %v497 = vpop.f32.mrb[0].mxu0
  %v498 = vadd.f32 0.0, %v497
  %499 = vmatprep.mubr.f32.mxu0 0.0
  %500 = vmatmul.mubr.f32.gmra.mrb[0].mxu0 %v103
  %v501 = vpop.f32.mrb[0].mxu0
  %v502 = vadd.f32 0.0, %v501
  %v503 = vpop.f32.mrb[0].mxu0
  %v504 = vadd.f32 0.0, %v503
  %505 = vmatprep.mubr.f32.mxu0 0.0
  %506 = vmatmul.mubr.f32.gmra.mrb[0].mxu0 %v106
  %v507 = vpop.f32.mrb[0].mxu0
  %v508 = vadd.f32 0.0, %v507
  %v509 = vpop.f32.mrb[0].mxu0
  %v510 = vadd.f32 0.0, %v509
  %511 = vmatprep.mubr.f32.mxu0 0.0
  %512 = vmatmul.mubr.f32.gmra.mrb[0].mxu0 %v109
  %v513 = vpop.f32.mrb[0].mxu0
  %v514 = vadd.f32 0.0, %v513
  %v515 = vpop.f32.mrb[0].mxu0
  %v516 = vadd.f32 0.0, %v515
  %517 = vmatprep.mubr.f32.mxu0 0.0
  %518 = vmatmul.mubr.f32.gmra.mrb[0].mxu0 %v112
  %v519 = vpop.f32.mrb[0].mxu0
  %v520 = vadd.f32 0.0, %v519
  %v521 = vpop.f32.mrb[0].mxu0
  %v522 = vadd.f32 0.0, %v521
  %523 = vmatprep.mubr.f32.mxu0 0.0
  %524 = vmatmul.mubr.f32.gmra.mrb[0].mxu0 %v115
  %v525 = vpop.f32.mrb[0].mxu0
  %v526 = vadd.f32 0.0, %v525
  %v527 = vpop.f32.mrb[0].mxu0
  %v528 = vadd.f32 0.0, %v527
  %529 = vmatprep.mubr.f32.mxu0 0.0
  %530 = vmatmul.mubr.f32.gmra.mrb[0].mxu0 %v118
  %v531 = vpop.f32.mrb[0].mxu0
  %v532 = vadd.f32 0.0, %v531
  %v533 = vpop.f32.mrb[0].mxu0
  %v534 = vadd.f32 0.0, %v533
  %535 = vmatprep.mubr.f32.mxu0 0.0
  %536 = vmatmul.mubr.f32.gmra.mrb[0].mxu0 %v121
  %v537 = vpop.f32.mrb[0].mxu0
  %v538 = vadd.f32 0.0, %v537
  %v539 = vpop.f32.mrb[0].mxu0
  %v540 = vadd.f32 0.0, %v539
  %541 = vmatprep.mubr.f32.mxu0 0.0
  %542 = vmatmul.mubr.f32.gmra.mrb[0].mxu0 %v124
  %v543 = vpop.f32.mrb[0].mxu0
  %v544 = vadd.f32 0.0, %v543
  %v545 = vpop.f32.mrb[0].mxu0
  %v546 = vadd.f32 0.0, %v545
  %547 = vmatprep.mubr.f32.mxu0 0.0
  %548 = vmatmul.mubr.f32.gmra.mrb[0].mxu0 %v127
  %v549 = vpop.f32.mrb[0].mxu0
  %v550 = vadd.f32 0.0, %v549
  %v551 = vpop.f32.mrb[0].mxu0
  %v552 = vadd.f32 0.0, %v551
  %553 = vmatprep.mubr.f32.mxu0 0.0
  %554 = vmatmul.mubr.f32.gmra.mrb[0].mxu0 %v130
  %v555 = vpop.f32.mrb[0].mxu0
  %v556 = vadd.f32 0.0, %v555
  %v557 = vpop.f32.mrb[0].mxu0
  %v558 = vadd.f32 0.0, %v557
  %559 = vmatprep.mubr.f32.mxu0 0.0
  %560 = vmatmul.mubr.f32.gmra.mrb[0].mxu0 %v133
  %v561 = vpop.f32.mrb[0].mxu0
  %v562 = vadd.f32 0.0, %v561
  %v563 = vpop.f32.mrb[0].mxu0
  %v564 = vadd.f32 0.0, %v563
  %565 = vdwg.mxu0
  %v566 = vmax.f32 %v215, 0.0
  %v567 = vmax.f32 %v217, 0.0
  %v568 = vmax.f32 %v424, 0.0
  %v569 = vmax.f32 %v426, 0.0
  %v570 = vmax.f32 %v221, 0.0
  %v571 = vmax.f32 %v223, 0.0
  %v572 = vmax.f32 %v430, 0.0
  %v573 = vmax.f32 %v432, 0.0
  %v574 = vmax.f32 %v227, 0.0
  %v575 = vmax.f32 %v229, 0.0
  %v576 = vmax.f32 %v436, 0.0
  %v577 = vmax.f32 %v438, 0.0
  %v578 = vmax.f32 %v233, 0.0
  %v579 = vmax.f32 %v235, 0.0
  %v580 = vmax.f32 %v442, 0.0
  %v581 = vmax.f32 %v444, 0.0
  %v582 = vmax.f32 %v239, 0.0
  %v583 = vmax.f32 %v241, 0.0
  %v584 = vmax.f32 %v448, 0.0
  %v585 = vmax.f32 %v450, 0.0
  %v586 = vmax.f32 %v245, 0.0
  %v587 = vmax.f32 %v247, 0.0
  %v588 = vmax.f32 %v454, 0.0
  %v589 = vmax.f32 %v456, 0.0
  %v590 = vmax.f32 %v251, 0.0
  %v591 = vmax.f32 %v253, 0.0
  %v592 = vmax.f32 %v460, 0.0
  %v593 = vmax.f32 %v462, 0.0
  %v594 = vmax.f32 %v257, 0.0
  %v595 = vmax.f32 %v259, 0.0
  %v596 = vmax.f32 %v466, 0.0
  %v597 = vmax.f32 %v468, 0.0
  %v598 = vmax.f32 %v263, 0.0
  %v599 = vmax.f32 %v265, 0.0
  %v600 = vmax.f32 %v472, 0.0
  %v601 = vmax.f32 %v474, 0.0
  %v602 = vmax.f32 %v269, 0.0
  %v603 = vmax.f32 %v271, 0.0
  %v604 = vmax.f32 %v478, 0.0
  %v605 = vmax.f32 %v480, 0.0
  %v606 = vmax.f32 %v275, 0.0
  %v607 = vmax.f32 %v277, 0.0
  %v608 = vmax.f32 %v484, 0.0
  %v609 = vmax.f32 %v486, 0.0
  %v610 = vmax.f32 %v281, 0.0
  %v611 = vmax.f32 %v283, 0.0
  %v612 = vmax.f32 %v490, 0.0
  %v613 = vmax.f32 %v492, 0.0
  %v614 = vmax.f32 %v287, 0.0
  %v615 = vmax.f32 %v289, 0.0
  %v616 = vmax.f32 %v496, 0.0
  %v617 = vmax.f32 %v498, 0.0
  %v618 = vmax.f32 %v293, 0.0
  %v619 = vmax.f32 %v295, 0.0
  %v620 = vmax.f32 %v502, 0.0
  %v621 = vmax.f32 %v504, 0.0
  %v622 = vmax.f32 %v299, 0.0
  %v623 = vmax.f32 %v301, 0.0
  %v624 = vmax.f32 %v508, 0.0
  %v625 = vmax.f32 %v510, 0.0
  %v626 = vmax.f32 %v305, 0.0
  %v627 = vmax.f32 %v307, 0.0
  %v628 = vmax.f32 %v514, 0.0
  %v629 = vmax.f32 %v516, 0.0
  %v630 = vmax.f32 %v311, 0.0
  %v631 = vmax.f32 %v313, 0.0
  %v632 = vmax.f32 %v520, 0.0
  %v633 = vmax.f32 %v522, 0.0
  %v634 = vmax.f32 %v317, 0.0
  %v635 = vmax.f32 %v319, 0.0
  %v636 = vmax.f32 %v526, 0.0
  %v637 = vmax.f32 %v528, 0.0
  %v638 = vmax.f32 %v323, 0.0
  %v639 = vmax.f32 %v325, 0.0
  %v640 = vmax.f32 %v532, 0.0
  %v641 = vmax.f32 %v534, 0.0
  %v642 = vmax.f32 %v329, 0.0
  %v643 = vmax.f32 %v331, 0.0
  %v644 = vmax.f32 %v538, 0.0
  %v645 = vmax.f32 %v540, 0.0
  %v646 = vmax.f32 %v335, 0.0
  %v647 = vmax.f32 %v337, 0.0
  %v648 = vmax.f32 %v544, 0.0
  %v649 = vmax.f32 %v546, 0.0
  %v650 = vmax.f32 %v341, 0.0
  %v651 = vmax.f32 %v343, 0.0
  %v652 = vmax.f32 %v550, 0.0
  %v653 = vmax.f32 %v552, 0.0
  %v654 = vmax.f32 %v347, 0.0
  %v655 = vmax.f32 %v349, 0.0
  %v656 = vmax.f32 %v556, 0.0
  %v657 = vmax.f32 %v558, 0.0
  %v658 = vmax.f32 %v353, 0.0
  %v659 = vmax.f32 %v355, 0.0
  %v660 = vmax.f32 %v562, 0.0
  %v661 = vmax.f32 %v564, 0.0
  %662 = vst [vmem:[#allocation2] sm:$0xff] %v566
  %663 = vst [vmem:[#allocation2 + $0x8] sm:$0xff] %v567
  %664 = vst [vmem:[#allocation2 + $0x10] sm:$0xff] %v568
  %665 = vst [vmem:[#allocation2 + $0x18] sm:$0xff] %v569
  %666 = vst [vmem:[#allocation2 + $0x20] sm:$0xff] %v570
  %667 = vst [vmem:[#allocation2 + $0x28] sm:$0xff] %v571
  %668 = vst [vmem:[#allocation2 + $0x30] sm:$0xff] %v572
  %669 = vst [vmem:[#allocation2 + $0x38] sm:$0xff] %v573
  %670 = vst [vmem:[#allocation2 + $0x40] sm:$0xff] %v574
  %671 = vst [vmem:[#allocation2 + $0x48] sm:$0xff] %v575
  %672 = vst [vmem:[#allocation2 + $0x50] sm:$0xff] %v576
  %673 = vst [vmem:[#allocation2 + $0x58] sm:$0xff] %v577
  %674 = vst [vmem:[#allocation2 + $0x60] sm:$0xff] %v578
  %675 = vst [vmem:[#allocation2 + $0x68] sm:$0xff] %v579
  %676 = vst [vmem:[#allocation2 + $0x70] sm:$0xff] %v580
  %677 = vst [vmem:[#allocation2 + $0x78] sm:$0xff] %v581
  %678 = vst [vmem:[#allocation2 + $0x80] sm:$0xff] %v582
  %679 = vst [vmem:[#allocation2 + $0x88] sm:$0xff] %v583
  %680 = vst [vmem:[#allocation2 + $0x90] sm:$0xff] %v584
  %681 = vst [vmem:[#allocation2 + $0x98] sm:$0xff] %v585
  %682 = vst [vmem:[#allocation2 + $0xa0] sm:$0xff] %v586
  %683 = vst [vmem:[#allocation2 + $0xa8] sm:$0xff] %v587
  %684 = vst [vmem:[#allocation2 + $0xb0] sm:$0xff] %v588
  %685 = vst [vmem:[#allocation2 + $0xb8] sm:$0xff] %v589
  %686 = vst [vmem:[#allocation2 + $0xc0] sm:$0xff] %v590
  %687 = vst [vmem:[#allocation2 + $0xc8] sm:$0xff] %v591
  %688 = vst [vmem:[#allocation2 + $0xd0] sm:$0xff] %v592
  %689 = vst [vmem:[#allocation2 + $0xd8] sm:$0xff] %v593
  %690 = vst [vmem:[#allocation2 + $0xe0] sm:$0xff] %v594
  %691 = vst [vmem:[#allocation2 + $0xe8] sm:$0xff] %v595
  %692 = vst [vmem:[#allocation2 + $0xf0] sm:$0xff] %v596
  %693 = vst [vmem:[#allocation2 + $0xf8] sm:$0xff] %v597
  %694 = vst [vmem:[#allocation2 + $0x100] sm:$0xff] %v598
  %695 = vst [vmem:[#allocation2 + $0x108] sm:$0xff] %v599
  %696 = vst [vmem:[#allocation2 + $0x110] sm:$0xff] %v600
  %697 = vst [vmem:[#allocation2 + $0x118] sm:$0xff] %v601
  %698 = vst [vmem:[#allocation2 + $0x120] sm:$0xff] %v602
  %699 = vst [vmem:[#allocation2 + $0x128] sm:$0xff] %v603
  %700 = vst [vmem:[#allocation2 + $0x130] sm:$0xff] %v604
  %701 = vst [vmem:[#allocation2 + $0x138] sm:$0xff] %v605
  %702 = vst [vmem:[#allocation2 + $0x140] sm:$0xff] %v606
  %703 = vst [vmem:[#allocation2 + $0x148] sm:$0xff] %v607
  %704 = vst [vmem:[#allocation2 + $0x150] sm:$0xff] %v608
  %705 = vst [vmem:[#allocation2 + $0x158] sm:$0xff] %v609
  %706 = vst [vmem:[#allocation2 + $0x160] sm:$0xff] %v610
  %707 = vst [vmem:[#allocation2 + $0x168] sm:$0xff] %v611
  %708 = vst [vmem:[#allocation2 + $0x170] sm:$0xff] %v612
  %709 = vst [vmem:[#allocation2 + $0x178] sm:$0xff] %v613
  %710 = vst [vmem:[#allocation2 + $0x180] sm:$0xff] %v614
  %711 = vst [vmem:[#allocation2 + $0x188] sm:$0xff] %v615
  %712 = vst [vmem:[#allocation2 + $0x190] sm:$0xff] %v616
  %713 = vst [vmem:[#allocation2 + $0x198] sm:$0xff] %v617
  %714 = vst [vmem:[#allocation2 + $0x1a0] sm:$0xff] %v618
  %715 = vst [vmem:[#allocation2 + $0x1a8] sm:$0xff] %v619
  %716 = vst [vmem:[#allocation2 + $0x1b0] sm:$0xff] %v620
  %717 = vst [vmem:[#allocation2 + $0x1b8] sm:$0xff] %v621
  %718 = vst [vmem:[#allocation2 + $0x1c0] sm:$0xff] %v622
  %719 = vst [vmem:[#allocation2 + $0x1c8] sm:$0xff] %v623
  %720 = vst [vmem:[#allocation2 + $0x1d0] sm:$0xff] %v624
  %721 = vst [vmem:[#allocation2 + $0x1d8] sm:$0xff] %v625
  %722 = vst [vmem:[#allocation2 + $0x1e0] sm:$0xff] %v626
  %723 = vst [vmem:[#allocation2 + $0x1e8] sm:$0xff] %v627
  %724 = vst [vmem:[#allocation2 + $0x1f0] sm:$0xff] %v628
  %725 = vst [vmem:[#allocation2 + $0x1f8] sm:$0xff] %v629
  %726 = vst [vmem:[#allocation2 + $0x200] sm:$0xff] %v630
  %727 = vst [vmem:[#allocation2 + $0x208] sm:$0xff] %v631
  %728 = vst [vmem:[#allocation2 + $0x210] sm:$0xff] %v632
  %729 = vst [vmem:[#allocation2 + $0x218] sm:$0xff] %v633
  %730 = vst [vmem:[#allocation2 + $0x220] sm:$0xff] %v634
  %731 = vst [vmem:[#allocation2 + $0x228] sm:$0xff] %v635
  %732 = vst [vmem:[#allocation2 + $0x230] sm:$0xff] %v636
  %733 = vst [vmem:[#allocation2 + $0x238] sm:$0xff] %v637
  %734 = vst [vmem:[#allocation2 + $0x240] sm:$0xff] %v638
  %735 = vst [vmem:[#allocation2 + $0x248] sm:$0xff] %v639
  %736 = vst [vmem:[#allocation2 + $0x250] sm:$0xff] %v640
  %737 = vst [vmem:[#allocation2 + $0x258] sm:$0xff] %v641
  %738 = vst [vmem:[#allocation2 + $0x260] sm:$0xff] %v642
  %739 = vst [vmem:[#allocation2 + $0x268] sm:$0xff] %v643
  %740 = vst [vmem:[#allocation2 + $0x270] sm:$0xff] %v644
  %741 = vst [vmem:[#allocation2 + $0x278] sm:$0xff] %v645
  %742 = vst [vmem:[#allocation2 + $0x280] sm:$0xff] %v646
  %743 = vst [vmem:[#allocation2 + $0x288] sm:$0xff] %v647
  %744 = vst [vmem:[#allocation2 + $0x290] sm:$0xff] %v648
  %745 = vst [vmem:[#allocation2 + $0x298] sm:$0xff] %v649
  %746 = vst [vmem:[#allocation2 + $0x2a0] sm:$0xff] %v650
  %747 = vst [vmem:[#allocation2 + $0x2a8] sm:$0xff] %v651
  %748 = vst [vmem:[#allocation2 + $0x2b0] sm:$0xff] %v652
  %749 = vst [vmem:[#allocation2 + $0x2b8] sm:$0xff] %v653
  %750 = vst [vmem:[#allocation2 + $0x2c0] sm:$0xff] %v654
  %751 = vst [vmem:[#allocation2 + $0x2c8] sm:$0xff] %v655
  %752 = vst [vmem:[#allocation2 + $0x2d0] sm:$0xff] %v656
  %753 = vst [vmem:[#allocation2 + $0x2d8] sm:$0xff] %v657
  %754 = vst [vmem:[#allocation2 + $0x2e0] sm:$0xff] %v658
  %755 = vst [vmem:[#allocation2 + $0x2e8] sm:$0xff] %v659
  %756 = vst [vmem:[#allocation2 + $0x2f0] sm:$0xff] %v660
  %757 = vst [vmem:[#allocation2 + $0x2f8] sm:$0xff] %v661
  %v758 = vld [vmem:[#allocation2] sm:$0xff]
  %v759 = vld [vmem:[#allocation2 + $0x8] sm:$0xff]
  %v760 = vld [vmem:[#allocation2 + $0x10] sm:$0xff]
  %v761 = vld [vmem:[#allocation2 + $0x18] sm:$0xff]
  %v762 = vld [vmem:[#allocation2 + $0x20] sm:$0xff]
  %v763 = vld [vmem:[#allocation2 + $0x28] sm:$0xff]
  %v764 = vld [vmem:[#allocation2 + $0x30] sm:$0xff]
  %v765 = vld [vmem:[#allocation2 + $0x38] sm:$0xff]
  %v766 = vld [vmem:[#allocation2 + $0x40] sm:$0xff]
  %v767 = vld [vmem:[#allocation2 + $0x48] sm:$0xff]
  %v768 = vld [vmem:[#allocation2 + $0x50] sm:$0xff]
  %v769 = vld [vmem:[#allocation2 + $0x58] sm:$0xff]
  %v770 = vld [vmem:[#allocation2 + $0x60] sm:$0xff]
  %v771 = vld [vmem:[#allocation2 + $0x68] sm:$0xff]
  %v772 = vld [vmem:[#allocation2 + $0x70] sm:$0xff]
  %v773 = vld [vmem:[#allocation2 + $0x78] sm:$0xff]
  %v774 = vld [vmem:[#allocation2 + $0x80] sm:$0xff]
  %v775 = vld [vmem:[#allocation2 + $0x88] sm:$0xff]
  %v776 = vld [vmem:[#allocation2 + $0x90] sm:$0xff]
  %v777 = vld [vmem:[#allocation2 + $0x98] sm:$0xff]
  %v778 = vld [vmem:[#allocation2 + $0xa0] sm:$0xff]
  %v779 = vld [vmem:[#allocation2 + $0xa8] sm:$0xff]
  %v780 = vld [vmem:[#allocation2 + $0xb0] sm:$0xff]
  %v781 = vld [vmem:[#allocation2 + $0xb8] sm:$0xff]
  %v782 = vld [vmem:[#allocation2 + $0xc0] sm:$0xff]
  %v783 = vld [vmem:[#allocation2 + $0xc8] sm:$0xff]
  %v784 = vld [vmem:[#allocation2 + $0xd0] sm:$0xff]
  %v785 = vld [vmem:[#allocation2 + $0xd8] sm:$0xff]
  %v786 = vld [vmem:[#allocation2 + $0xe0] sm:$0xff]
  %v787 = vld [vmem:[#allocation2 + $0xe8] sm:$0xff]
  %v788 = vld [vmem:[#allocation2 + $0xf0] sm:$0xff]
  %v789 = vld [vmem:[#allocation2 + $0xf8] sm:$0xff]
  %v790 = vld [vmem:[#allocation2 + $0x100] sm:$0xff]
  %v791 = vld [vmem:[#allocation2 + $0x108] sm:$0xff]
  %v792 = vld [vmem:[#allocation2 + $0x110] sm:$0xff]
  %v793 = vld [vmem:[#allocation2 + $0x118] sm:$0xff]
  %v794 = vld [vmem:[#allocation2 + $0x120] sm:$0xff]
  %v795 = vld [vmem:[#allocation2 + $0x128] sm:$0xff]
  %v796 = vld [vmem:[#allocation2 + $0x130] sm:$0xff]
  %v797 = vld [vmem:[#allocation2 + $0x138] sm:$0xff]
  %v798 = vld [vmem:[#allocation2 + $0x140] sm:$0xff]
  %v799 = vld [vmem:[#allocation2 + $0x148] sm:$0xff]
  %v800 = vld [vmem:[#allocation2 + $0x150] sm:$0xff]
  %v801 = vld [vmem:[#allocation2 + $0x158] sm:$0xff]
  %v802 = vld [vmem:[#allocation2 + $0x160] sm:$0xff]
  %v803 = vld [vmem:[#allocation2 + $0x168] sm:$0xff]
  %v804 = vld [vmem:[#allocation2 + $0x170] sm:$0xff]
  %v805 = vld [vmem:[#allocation2 + $0x178] sm:$0xff]
  %v806 = vld [vmem:[#allocation2 + $0x180] sm:$0xff]
  %v807 = vld [vmem:[#allocation2 + $0x188] sm:$0xff]
  %v808 = vld [vmem:[#allocation2 + $0x190] sm:$0xff]
  %v809 = vld [vmem:[#allocation2 + $0x198] sm:$0xff]
  %v810 = vld [vmem:[#allocation2 + $0x1a0] sm:$0xff]
  %v811 = vld [vmem:[#allocation2 + $0x1a8] sm:$0xff]
  %v812 = vld [vmem:[#allocation2 + $0x1b0] sm:$0xff]
  %v813 = vld [vmem:[#allocation2 + $0x1b8] sm:$0xff]
  %v814 = vld [vmem:[#allocation2 + $0x1c0] sm:$0xff]
  %v815 = vld [vmem:[#allocation2 + $0x1c8] sm:$0xff]
  %v816 = vld [vmem:[#allocation2 + $0x1d0] sm:$0xff]
  %v817 = vld [vmem:[#allocation2 + $0x1d8] sm:$0xff]
  %v818 = vld [vmem:[#allocation2 + $0x1e0] sm:$0xff]
  %v819 = vld [vmem:[#allocation2 + $0x1e8] sm:$0xff]
  %v820 = vld [vmem:[#allocation2 + $0x1f0] sm:$0xff]
  %v821 = vld [vmem:[#allocation2 + $0x1f8] sm:$0xff]
  %v822 = vld [vmem:[#allocation2 + $0x200] sm:$0xff]
  %v823 = vld [vmem:[#allocation2 + $0x208] sm:$0xff]
  %v824 = vld [vmem:[#allocation2 + $0x210] sm:$0xff]
  %v825 = vld [vmem:[#allocation2 + $0x218] sm:$0xff]
  %v826 = vld [vmem:[#allocation2 + $0x220] sm:$0xff]
  %v827 = vld [vmem:[#allocation2 + $0x228] sm:$0xff]
  %v828 = vld [vmem:[#allocation2 + $0x230] sm:$0xff]
  %v829 = vld [vmem:[#allocation2 + $0x238] sm:$0xff]
  %v830 = vld [vmem:[#allocation2 + $0x240] sm:$0xff]
  %v831 = vld [vmem:[#allocation2 + $0x248] sm:$0xff]
  %v832 = vld [vmem:[#allocation2 + $0x250] sm:$0xff]
  %v833 = vld [vmem:[#allocation2 + $0x258] sm:$0xff]
  %v834 = vld [vmem:[#allocation2 + $0x260] sm:$0xff]
  %v835 = vld [vmem:[#allocation2 + $0x268] sm:$0xff]
  %v836 = vld [vmem:[#allocation2 + $0x270] sm:$0xff]
  %v837 = vld [vmem:[#allocation2 + $0x278] sm:$0xff]
  %v838 = vld [vmem:[#allocation2 + $0x280] sm:$0xff]
  %v839 = vld [vmem:[#allocation2 + $0x288] sm:$0xff]
  %v840 = vld [vmem:[#allocation2 + $0x290] sm:$0xff]
  %v841 = vld [vmem:[#allocation2 + $0x298] sm:$0xff]
  %v842 = vld [vmem:[#allocation2 + $0x2a0] sm:$0xff]
  %v843 = vld [vmem:[#allocation2 + $0x2a8] sm:$0xff]
  %v844 = vld [vmem:[#allocation2 + $0x2b0] sm:$0xff]
  %v845 = vld [vmem:[#allocation2 + $0x2b8] sm:$0xff]
  %v846 = vld [vmem:[#allocation2 + $0x2c0] sm:$0xff]
  %v847 = vld [vmem:[#allocation2 + $0x2c8] sm:$0xff]
  %v848 = vld [vmem:[#allocation2 + $0x2d0] sm:$0xff]
  %v849 = vld [vmem:[#allocation2 + $0x2d8] sm:$0xff]
  %v850 = vld [vmem:[#allocation2 + $0x2e0] sm:$0xff]
  %v851 = vld [vmem:[#allocation2 + $0x2e8] sm:$0xff]
  %v852 = vld [vmem:[#allocation2 + $0x2f0] sm:$0xff]
  %v853 = vld [vmem:[#allocation2 + $0x2f8] sm:$0xff]
  %v854 = vld [vmem:[%s7] sm:$0xff]
  %v855 = vld [vmem:[%s7 + $0x8] sm:$0xff]
  %v856 = vld [vmem:[%s7 + $0x10] sm:$0xff]
  %v857 = vld [vmem:[%s7 + $0x18] sm:$0xff]
  %v858 = vld [vmem:[%s7 + $0x20] sm:$0xff]
  %v859 = vld [vmem:[%s7 + $0x28] sm:$0xff]
  %v860 = vld [vmem:[%s7 + $0x30] sm:$0xff]
  %v861 = vld [vmem:[%s7 + $0x38] sm:$0xff]
  %v862 = vld [vmem:[%s7 + $0x40] sm:$0xff]
  %v863 = vld [vmem:[%s7 + $0x48] sm:$0xff]
  %v864 = vld [vmem:[%s7 + $0x50] sm:$0xff]
  %v865 = vld [vmem:[%s7 + $0x58] sm:$0xff]
  %v866 = vld [vmem:[%s7 + $0x60] sm:$0xff]
  %v867 = vld [vmem:[%s7 + $0x68] sm:$0xff]
  %v868 = vld [vmem:[%s7 + $0x70] sm:$0xff]
  %v869 = vld [vmem:[%s7 + $0x78] sm:$0xff]
  %v870 = vld [vmem:[%s7 + $0x80] sm:$0xff]
  %v871 = vld [vmem:[%s7 + $0x88] sm:$0xff]
  %v872 = vld [vmem:[%s7 + $0x90] sm:$0xff]
  %v873 = vld [vmem:[%s7 + $0x98] sm:$0xff]
  %v874 = vld [vmem:[%s7 + $0xa0] sm:$0xff]
  %v875 = vld [vmem:[%s7 + $0xa8] sm:$0xff]
  %v876 = vld [vmem:[%s7 + $0xb0] sm:$0xff]
  %v877 = vld [vmem:[%s7 + $0xb8] sm:$0xff]
  %v878 = vld [vmem:[%s7 + $0xc0] sm:$0xff]
  %v879 = vld [vmem:[%s7 + $0xc8] sm:$0xff]
  %v880 = vld [vmem:[%s7 + $0xd0] sm:$0xff]
  %v881 = vld [vmem:[%s7 + $0xd8] sm:$0xff]
  %v882 = vld [vmem:[%s7 + $0xe0] sm:$0xff]
  %v883 = vld [vmem:[%s7 + $0xe8] sm:$0xff]
  %v884 = vld [vmem:[%s7 + $0xf0] sm:$0xff]
  %v885 = vld [vmem:[%s7 + $0xf8] sm:$0xff]
  %v886 = vld [vmem:[%s7 + $0x100] sm:$0xff]
  %v887 = vld [vmem:[%s7 + $0x108] sm:$0xff]
  %v888 = vld [vmem:[%s7 + $0x110] sm:$0xff]
  %v889 = vld [vmem:[%s7 + $0x118] sm:$0xff]
  %v890 = vld [vmem:[%s7 + $0x120] sm:$0xff]
  %v891 = vld [vmem:[%s7 + $0x128] sm:$0xff]
  %v892 = vld [vmem:[%s7 + $0x130] sm:$0xff]
  %v893 = vld [vmem:[%s7 + $0x138] sm:$0xff]
  %v894 = vld [vmem:[%s7 + $0x140] sm:$0xff]
  %v895 = vld [vmem:[%s7 + $0x148] sm:$0xff]
  %v896 = vld [vmem:[%s7 + $0x150] sm:$0xff]
  %v897 = vld [vmem:[%s7 + $0x158] sm:$0xff]
  %v898 = vld [vmem:[%s7 + $0x160] sm:$0xff]
  %v899 = vld [vmem:[%s7 + $0x168] sm:$0xff]
  %v900 = vld [vmem:[%s7 + $0x170] sm:$0xff]
  %v901 = vld [vmem:[%s7 + $0x178] sm:$0xff]
  %v902 = vld [vmem:[%s7 + $0x180] sm:$0xff]
  %v903 = vld [vmem:[%s7 + $0x188] sm:$0xff]
  %v904 = vld [vmem:[%s7 + $0x190] sm:$0xff]
  %v905 = vld [vmem:[%s7 + $0x198] sm:$0xff]
  %v906 = vld [vmem:[%s7 + $0x1a0] sm:$0xff]
  %v907 = vld [vmem:[%s7 + $0x1a8] sm:$0xff]
  %v908 = vld [vmem:[%s7 + $0x1b0] sm:$0xff]
  %v909 = vld [vmem:[%s7 + $0x1b8] sm:$0xff]
  %v910 = vld [vmem:[%s7 + $0x1c0] sm:$0xff]
  %v911 = vld [vmem:[%s7 + $0x1c8] sm:$0xff]
  %v912 = vld [vmem:[%s7 + $0x1d0] sm:$0xff]
  %v913 = vld [vmem:[%s7 + $0x1d8] sm:$0xff]
  %v914 = vld [vmem:[%s7 + $0x1e0] sm:$0xff]
  %v915 = vld [vmem:[%s7 + $0x1e8] sm:$0xff]
  %v916 = vld [vmem:[%s7 + $0x1f0] sm:$0xff]
  %v917 = vld [vmem:[%s7 + $0x1f8] sm:$0xff]
  %918 = vmatprep.subr.mxu0 0.0
  %919 = vmatpush1.msra.mxu0 %v854
  %920 = vmatprep.subr.mxu0 0.0
  %921 = vmatpush1.msra.mxu0 %v855
  %922 = vmatprep.subr.mxu0 0.0
  %923 = vmatpush1.msra.mxu0 %v856
  %924 = vmatprep.subr.mxu0 0.0
  %925 = vmatpush1.msra.mxu0 %v857
  %926 = vmatprep.subr.mxu0 0.0
  %927 = vmatpush1.msra.mxu0 %v858
  %928 = vmatprep.subr.mxu0 0.0
  %929 = vmatpush1.msra.mxu0 %v859
  %930 = vmatprep.subr.mxu0 0.0
  %931 = vmatpush1.msra.mxu0 %v860
  %932 = vmatprep.subr.mxu0 0.0
  %933 = vmatpush1.msra.mxu0 %v861
  %934 = vmatprep.subr.mxu0 0.0
  %935 = vmatpush1.msra.mxu0 %v862
  %936 = vmatprep.subr.mxu0 0.0
  %937 = vmatpush1.msra.mxu0 %v863
  %938 = vmatprep.subr.mxu0 0.0
  %939 = vmatpush1.msra.mxu0 %v864
  %940 = vmatprep.subr.mxu0 0.0
  %941 = vmatpush1.msra.mxu0 %v865
  %942 = vmatprep.subr.mxu0 0.0
  %943 = vmatpush1.msra.mxu0 %v866
  %944 = vmatprep.subr.mxu0 0.0
  %945 = vmatpush1.msra.mxu0 %v867
  %946 = vmatprep.subr.mxu0 0.0
  %947 = vmatpush1.msra.mxu0 %v868
  %948 = vmatprep.subr.mxu0 0.0
  %949 = vmatpush1.msra.mxu0 %v869
  %950 = vmatprep.subr.mxu0 0.0
  %951 = vmatpush1.msra.mxu0 %v870
  %952 = vmatprep.subr.mxu0 0.0
  %953 = vmatpush1.msra.mxu0 %v871
  %954 = vmatprep.subr.mxu0 0.0
  %955 = vmatpush1.msra.mxu0 %v872
  %956 = vmatprep.subr.mxu0 0.0
  %957 = vmatpush1.msra.mxu0 %v873
  %958 = vmatprep.subr.mxu0 0.0
  %959 = vmatpush1.msra.mxu0 %v874
  %960 = vmatprep.subr.mxu0 0.0
  %961 = vmatpush1.msra.mxu0 %v875
  %962 = vmatprep.subr.mxu0 0.0
  %963 = vmatpush1.msra.mxu0 %v876
  %964 = vmatprep.subr.mxu0 0.0
  %965 = vmatpush1.msra.mxu0 %v877
  %966 = vmatprep.subr.mxu0 0.0
  %967 = vmatpush1.msra.mxu0 %v878
  %968 = vmatprep.subr.mxu0 0.0
  %969 = vmatpush1.msra.mxu0 %v879
  %970 = vmatprep.subr.mxu0 0.0
  %971 = vmatpush1.msra.mxu0 %v880
  %972 = vmatprep.subr.mxu0 0.0
  %973 = vmatpush1.msra.mxu0 %v881
  %974 = vmatprep.subr.mxu0 0.0
  %975 = vmatpush1.msra.mxu0 %v882
  %976 = vmatprep.subr.mxu0 0.0
  %977 = vmatpush1.msra.mxu0 %v883
  %978 = vmatprep.subr.mxu0 0.0
  %979 = vmatpush1.msra.mxu0 %v884
  %980 = vmatprep.subr.mxu0 0.0
  %981 = vmatpush1.msra.mxu0 %v885
  %982 = vmatprep.mubr.f32.mxu0 %v759
  %983 = vmatmul.mubr.f32.gmra.mrb[0].mxu0 %v758
  %v984 = vpop.f32.mrb[0].mxu0
  %v985 = vadd.f32 0.0, %v984
  %v986 = vpop.f32.mrb[0].mxu0
  %987 = vmatprep.mubr.f32.mxu0 %v763
  %988 = vmatmul.mubr.f32.gmra.mrb[0].mxu0 %v762
  %v989 = vpop.f32.mrb[0].mxu0
  %v990 = vadd.f32 0.0, %v989
  %v991 = vpop.f32.mrb[0].mxu0
  %992 = vmatprep.mubr.f32.mxu0 %v767
  %993 = vmatmul.mubr.f32.gmra.mrb[0].mxu0 %v766
  %v994 = vpop.f32.mrb[0].mxu0
  %v995 = vadd.f32 0.0, %v994
  %v996 = vpop.f32.mrb[0].mxu0
  %997 = vmatprep.mubr.f32.mxu0 %v771
  %998 = vmatmul.mubr.f32.gmra.mrb[0].mxu0 %v770
  %v999 = vpop.f32.mrb[0].mxu0
  %v1000 = vadd.f32 0.0, %v999
  %v1001 = vpop.f32.mrb[0].mxu0
  %1002 = vmatprep.mubr.f32.mxu0 %v775
  %1003 = vmatmul.mubr.f32.gmra.mrb[0].mxu0 %v774
  %v1004 = vpop.f32.mrb[0].mxu0
  %v1005 = vadd.f32 0.0, %v1004
  %v1006 = vpop.f32.mrb[0].mxu0
  %1007 = vmatprep.mubr.f32.mxu0 %v779
  %1008 = vmatmul.mubr.f32.gmra.mrb[0].mxu0 %v778
  %v1009 = vpop.f32.mrb[0].mxu0
  %v1010 = vadd.f32 0.0, %v1009
  %v1011 = vpop.f32.mrb[0].mxu0
  %1012 = vmatprep.mubr.f32.mxu0 %v783
  %1013 = vmatmul.mubr.f32.gmra.mrb[0].mxu0 %v782
  %v1014 = vpop.f32.mrb[0].mxu0
  %v1015 = vadd.f32 0.0, %v1014
  %v1016 = vpop.f32.mrb[0].mxu0
  %1017 = vmatprep.mubr.f32.mxu0 %v787
  %1018 = vmatmul.mubr.f32.gmra.mrb[0].mxu0 %v786
  %v1019 = vpop.f32.mrb[0].mxu0
  %v1020 = vadd.f32 0.0, %v1019
  %v1021 = vpop.f32.mrb[0].mxu0
  %1022 = vmatprep.mubr.f32.mxu0 %v791
  %1023 = vmatmul.mubr.f32.gmra.mrb[0].mxu0 %v790
  %v1024 = vpop.f32.mrb[0].mxu0
  %v1025 = vadd.f32 0.0, %v1024
  %v1026 = vpop.f32.mrb[0].mxu0
  %1027 = vmatprep.mubr.f32.mxu0 %v795
  %1028 = vmatmul.mubr.f32.gmra.mrb[0].mxu0 %v794
  %v1029 = vpop.f32.mrb[0].mxu0
  %v1030 = vadd.f32 0.0, %v1029
  %v1031 = vpop.f32.mrb[0].mxu0
  %1032 = vmatprep.mubr.f32.mxu0 %v799
  %1033 = vmatmul.mubr.f32.gmra.mrb[0].mxu0 %v798
  %v1034 = vpop.f32.mrb[0].mxu0
  %v1035 = vadd.f32 0.0, %v1034
  %v1036 = vpop.f32.mrb[0].mxu0
  %1037 = vmatprep.mubr.f32.mxu0 %v803
  %1038 = vmatmul.mubr.f32.gmra.mrb[0].mxu0 %v802
  %v1039 = vpop.f32.mrb[0].mxu0
  %v1040 = vadd.f32 0.0, %v1039
  %v1041 = vpop.f32.mrb[0].mxu0
  %1042 = vmatprep.mubr.f32.mxu0 %v807
  %1043 = vmatmul.mubr.f32.gmra.mrb[0].mxu0 %v806
  %v1044 = vpop.f32.mrb[0].mxu0
  %v1045 = vadd.f32 0.0, %v1044
  %v1046 = vpop.f32.mrb[0].mxu0
  %1047 = vmatprep.mubr.f32.mxu0 %v811
  %1048 = vmatmul.mubr.f32.gmra.mrb[0].mxu0 %v810
  %v1049 = vpop.f32.mrb[0].mxu0
  %v1050 = vadd.f32 0.0, %v1049
  %v1051 = vpop.f32.mrb[0].mxu0
  %1052 = vmatprep.mubr.f32.mxu0 %v815
  %1053 = vmatmul.mubr.f32.gmra.mrb[0].mxu0 %v814
  %v1054 = vpop.f32.mrb[0].mxu0
  %v1055 = vadd.f32 0.0, %v1054
  %v1056 = vpop.f32.mrb[0].mxu0
  %1057 = vmatprep.mubr.f32.mxu0 %v819
  %1058 = vmatmul.mubr.f32.gmra.mrb[0].mxu0 %v818
  %v1059 = vpop.f32.mrb[0].mxu0
  %v1060 = vadd.f32 0.0, %v1059
  %v1061 = vpop.f32.mrb[0].mxu0
  %1062 = vmatprep.mubr.f32.mxu0 %v823
  %1063 = vmatmul.mubr.f32.gmra.mrb[0].mxu0 %v822
  %v1064 = vpop.f32.mrb[0].mxu0
  %v1065 = vadd.f32 0.0, %v1064
  %v1066 = vpop.f32.mrb[0].mxu0
  %1067 = vmatprep.mubr.f32.mxu0 %v827
  %1068 = vmatmul.mubr.f32.gmra.mrb[0].mxu0 %v826
  %v1069 = vpop.f32.mrb[0].mxu0
  %v1070 = vadd.f32 0.0, %v1069
  %v1071 = vpop.f32.mrb[0].mxu0
  %1072 = vmatprep.mubr.f32.mxu0 %v831
  %1073 = vmatmul.mubr.f32.gmra.mrb[0].mxu0 %v830
  %v1074 = vpop.f32.mrb[0].mxu0
  %v1075 = vadd.f32 0.0, %v1074
  %v1076 = vpop.f32.mrb[0].mxu0
  %1077 = vmatprep.mubr.f32.mxu0 %v835
  %1078 = vmatmul.mubr.f32.gmra.mrb[0].mxu0 %v834
  %v1079 = vpop.f32.mrb[0].mxu0
  %v1080 = vadd.f32 0.0, %v1079
  %v1081 = vpop.f32.mrb[0].mxu0
  %1082 = vmatprep.mubr.f32.mxu0 %v839
  %1083 = vmatmul.mubr.f32.gmra.mrb[0].mxu0 %v838
  %v1084 = vpop.f32.mrb[0].mxu0
  %v1085 = vadd.f32 0.0, %v1084
  %v1086 = vpop.f32.mrb[0].mxu0
  %1087 = vmatprep.mubr.f32.mxu0 %v843
  %1088 = vmatmul.mubr.f32.gmra.mrb[0].mxu0 %v842
  %v1089 = vpop.f32.mrb[0].mxu0
  %v1090 = vadd.f32 0.0, %v1089
  %v1091 = vpop.f32.mrb[0].mxu0
  %1092 = vmatprep.mubr.f32.mxu0 %v847
  %1093 = vmatmul.mubr.f32.gmra.mrb[0].mxu0 %v846
  %v1094 = vpop.f32.mrb[0].mxu0
  %v1095 = vadd.f32 0.0, %v1094
  %v1096 = vpop.f32.mrb[0].mxu0
  %1097 = vmatprep.mubr.f32.mxu0 %v851
  %1098 = vmatmul.mubr.f32.gmra.mrb[0].mxu0 %v850
  %v1099 = vpop.f32.mrb[0].mxu0
  %v1100 = vadd.f32 0.0, %v1099
  %v1101 = vpop.f32.mrb[0].mxu0
  %1102 = vdwg.mxu0
  %1103 = vmatprep.subr.mxu0 0.0
  %1104 = vmatpush1.msra.mxu0 %v886
  %1105 = vmatprep.subr.mxu0 0.0
  %1106 = vmatpush1.msra.mxu0 %v887
  %1107 = vmatprep.subr.mxu0 0.0
  %1108 = vmatpush1.msra.mxu0 %v888
  %1109 = vmatprep.subr.mxu0 0.0
  %1110 = vmatpush1.msra.mxu0 %v889
  %1111 = vmatprep.subr.mxu0 0.0
  %1112 = vmatpush1.msra.mxu0 %v890
  %1113 = vmatprep.subr.mxu0 0.0
  %1114 = vmatpush1.msra.mxu0 %v891
  %1115 = vmatprep.subr.mxu0 0.0
  %1116 = vmatpush1.msra.mxu0 %v892
  %1117 = vmatprep.subr.mxu0 0.0
  %1118 = vmatpush1.msra.mxu0 %v893
  %1119 = vmatprep.subr.mxu0 0.0
  %1120 = vmatpush1.msra.mxu0 %v894
  %1121 = vmatprep.subr.mxu0 0.0
  %1122 = vmatpush1.msra.mxu0 %v895
  %1123 = vmatprep.subr.mxu0 0.0
  %1124 = vmatpush1.msra.mxu0 %v896
  %1125 = vmatprep.subr.mxu0 0.0
  %1126 = vmatpush1.msra.mxu0 %v897
  %1127 = vmatprep.subr.mxu0 0.0
  %1128 = vmatpush1.msra.mxu0 %v898
  %1129 = vmatprep.subr.mxu0 0.0
  %1130 = vmatpush1.msra.mxu0 %v899
  %1131 = vmatprep.subr.mxu0 0.0
  %1132 = vmatpush1.msra.mxu0 %v900
  %1133 = vmatprep.subr.mxu0 0.0
  %1134 = vmatpush1.msra.mxu0 %v901
  %1135 = vmatprep.subr.mxu0 0.0
  %1136 = vmatpush1.msra.mxu0 %v902
  %1137 = vmatprep.subr.mxu0 0.0
  %1138 = vmatpush1.msra.mxu0 %v903
  %1139 = vmatprep.subr.mxu0 0.0
  %1140 = vmatpush1.msra.mxu0 %v904
  %1141 = vmatprep.subr.mxu0 0.0
  %1142 = vmatpush1.msra.mxu0 %v905
  %1143 = vmatprep.subr.mxu0 0.0
  %1144 = vmatpush1.msra.mxu0 %v906
  %1145 = vmatprep.subr.mxu0 0.0
  %1146 = vmatpush1.msra.mxu0 %v907
  %1147 = vmatprep.subr.mxu0 0.0
  %1148 = vmatpush1.msra.mxu0 %v908
  %1149 = vmatprep.subr.mxu0 0.0
  %1150 = vmatpush1.msra.mxu0 %v909
  %1151 = vmatprep.subr.mxu0 0.0
  %1152 = vmatpush1.msra.mxu0 %v910
  %1153 = vmatprep.subr.mxu0 0.0
  %1154 = vmatpush1.msra.mxu0 %v911
  %1155 = vmatprep.subr.mxu0 0.0
  %1156 = vmatpush1.msra.mxu0 %v912
  %1157 = vmatprep.subr.mxu0 0.0
  %1158 = vmatpush1.msra.mxu0 %v913
  %1159 = vmatprep.subr.mxu0 0.0
  %1160 = vmatpush1.msra.mxu0 %v914
  %1161 = vmatprep.subr.mxu0 0.0
  %1162 = vmatpush1.msra.mxu0 %v915
  %1163 = vmatprep.subr.mxu0 0.0
  %1164 = vmatpush1.msra.mxu0 %v916
  %1165 = vmatprep.subr.mxu0 0.0
  %1166 = vmatpush1.msra.mxu0 %v917
  %1167 = vmatprep.mubr.f32.mxu0 %v761
  %1168 = vmatmul.mubr.f32.gmra.mrb[0].mxu0 %v760
  %v1169 = vpop.f32.mrb[0].mxu0
  %v1170 = vadd.f32 %v985, %v1169
  %v1171 = vpop.f32.mrb[0].mxu0
  %1172 = vmatprep.mubr.f32.mxu0 %v765
  %1173 = vmatmul.mubr.f32.gmra.mrb[0].mxu0 %v764
  %v1174 = vpop.f32.mrb[0].mxu0
  %v1175 = vadd.f32 %v990, %v1174
  %v1176 = vpop.f32.mrb[0].mxu0
  %1177 = vmatprep.mubr.f32.mxu0 %v769
  %1178 = vmatmul.mubr.f32.gmra.mrb[0].mxu0 %v768
  %v1179 = vpop.f32.mrb[0].mxu0
  %v1180 = vadd.f32 %v995, %v1179
  %v1181 = vpop.f32.mrb[0].mxu0
  %1182 = vmatprep.mubr.f32.mxu0 %v773
  %1183 = vmatmul.mubr.f32.gmra.mrb[0].mxu0 %v772
  %v1184 = vpop.f32.mrb[0].mxu0
  %v1185 = vadd.f32 %v1000, %v1184
  %v1186 = vpop.f32.mrb[0].mxu0
  %1187 = vmatprep.mubr.f32.mxu0 %v777
  %1188 = vmatmul.mubr.f32.gmra.mrb[0].mxu0 %v776
  %v1189 = vpop.f32.mrb[0].mxu0
  %v1190 = vadd.f32 %v1005, %v1189
  %v1191 = vpop.f32.mrb[0].mxu0
  %1192 = vmatprep.mubr.f32.mxu0 %v781
  %1193 = vmatmul.mubr.f32.gmra.mrb[0].mxu0 %v780
  %v1194 = vpop.f32.mrb[0].mxu0
  %v1195 = vadd.f32 %v1010, %v1194
  %v1196 = vpop.f32.mrb[0].mxu0
  %1197 = vmatprep.mubr.f32.mxu0 %v785
  %1198 = vmatmul.mubr.f32.gmra.mrb[0].mxu0 %v784
  %v1199 = vpop.f32.mrb[0].mxu0
  %v1200 = vadd.f32 %v1015, %v1199
  %v1201 = vpop.f32.mrb[0].mxu0
  %1202 = vmatprep.mubr.f32.mxu0 %v789
  %1203 = vmatmul.mubr.f32.gmra.mrb[0].mxu0 %v788
  %v1204 = vpop.f32.mrb[0].mxu0
  %v1205 = vadd.f32 %v1020, %v1204
  %v1206 = vpop.f32.mrb[0].mxu0
  %1207 = vmatprep.mubr.f32.mxu0 %v793
  %1208 = vmatmul.mubr.f32.gmra.mrb[0].mxu0 %v792
  %v1209 = vpop.f32.mrb[0].mxu0
  %v1210 = vadd.f32 %v1025, %v1209
  %v1211 = vpop.f32.mrb[0].mxu0
  %1212 = vmatprep.mubr.f32.mxu0 %v797
  %1213 = vmatmul.mubr.f32.gmra.mrb[0].mxu0 %v796
  %v1214 = vpop.f32.mrb[0].mxu0
  %v1215 = vadd.f32 %v1030, %v1214
  %v1216 = vpop.f32.mrb[0].mxu0
  %1217 = vmatprep.mubr.f32.mxu0 %v801
  %1218 = vmatmul.mubr.f32.gmra.mrb[0].mxu0 %v800
  %v1219 = vpop.f32.mrb[0].mxu0
  %v1220 = vadd.f32 %v1035, %v1219
  %v1221 = vpop.f32.mrb[0].mxu0
  %1222 = vmatprep.mubr.f32.mxu0 %v805
  %1223 = vmatmul.mubr.f32.gmra.mrb[0].mxu0 %v804
  %v1224 = vpop.f32.mrb[0].mxu0
  %v1225 = vadd.f32 %v1040, %v1224
  %v1226 = vpop.f32.mrb[0].mxu0
  %1227 = vmatprep.mubr.f32.mxu0 %v809
  %1228 = vmatmul.mubr.f32.gmra.mrb[0].mxu0 %v808
  %v1229 = vpop.f32.mrb[0].mxu0
  %v1230 = vadd.f32 %v1045, %v1229
  %v1231 = vpop.f32.mrb[0].mxu0
  %1232 = vmatprep.mubr.f32.mxu0 %v813
  %1233 = vmatmul.mubr.f32.gmra.mrb[0].mxu0 %v812
  %v1234 = vpop.f32.mrb[0].mxu0
  %v1235 = vadd.f32 %v1050, %v1234
  %v1236 = vpop.f32.mrb[0].mxu0
  %1237 = vmatprep.mubr.f32.mxu0 %v817
  %1238 = vmatmul.mubr.f32.gmra.mrb[0].mxu0 %v816
  %v1239 = vpop.f32.mrb[0].mxu0
  %v1240 = vadd.f32 %v1055, %v1239
  %v1241 = vpop.f32.mrb[0].mxu0
  %1242 = vmatprep.mubr.f32.mxu0 %v821
  %1243 = vmatmul.mubr.f32.gmra.mrb[0].mxu0 %v820
  %v1244 = vpop.f32.mrb[0].mxu0
  %v1245 = vadd.f32 %v1060, %v1244
  %v1246 = vpop.f32.mrb[0].mxu0
  %1247 = vmatprep.mubr.f32.mxu0 %v825
  %1248 = vmatmul.mubr.f32.gmra.mrb[0].mxu0 %v824
  %v1249 = vpop.f32.mrb[0].mxu0
  %v1250 = vadd.f32 %v1065, %v1249
  %v1251 = vpop.f32.mrb[0].mxu0
  %1252 = vmatprep.mubr.f32.mxu0 %v829
  %1253 = vmatmul.mubr.f32.gmra.mrb[0].mxu0 %v828
  %v1254 = vpop.f32.mrb[0].mxu0
  %v1255 = vadd.f32 %v1070, %v1254
  %v1256 = vpop.f32.mrb[0].mxu0
  %1257 = vmatprep.mubr.f32.mxu0 %v833
  %1258 = vmatmul.mubr.f32.gmra.mrb[0].mxu0 %v832
  %v1259 = vpop.f32.mrb[0].mxu0
  %v1260 = vadd.f32 %v1075, %v1259
  %v1261 = vpop.f32.mrb[0].mxu0
  %1262 = vmatprep.mubr.f32.mxu0 %v837
  %1263 = vmatmul.mubr.f32.gmra.mrb[0].mxu0 %v836
  %v1264 = vpop.f32.mrb[0].mxu0
  %v1265 = vadd.f32 %v1080, %v1264
  %v1266 = vpop.f32.mrb[0].mxu0
  %1267 = vmatprep.mubr.f32.mxu0 %v841
  %1268 = vmatmul.mubr.f32.gmra.mrb[0].mxu0 %v840
  %v1269 = vpop.f32.mrb[0].mxu0
  %v1270 = vadd.f32 %v1085, %v1269
  %v1271 = vpop.f32.mrb[0].mxu0
  %1272 = vmatprep.mubr.f32.mxu0 %v845
  %1273 = vmatmul.mubr.f32.gmra.mrb[0].mxu0 %v844
  %v1274 = vpop.f32.mrb[0].mxu0
  %v1275 = vadd.f32 %v1090, %v1274
  %v1276 = vpop.f32.mrb[0].mxu0
  %1277 = vmatprep.mubr.f32.mxu0 %v849
  %1278 = vmatmul.mubr.f32.gmra.mrb[0].mxu0 %v848
  %v1279 = vpop.f32.mrb[0].mxu0
  %v1280 = vadd.f32 %v1095, %v1279
  %v1281 = vpop.f32.mrb[0].mxu0
  %1282 = vmatprep.mubr.f32.mxu0 %v853
  %1283 = vmatmul.mubr.f32.gmra.mrb[0].mxu0 %v852
  %v1284 = vpop.f32.mrb[0].mxu0
  %v1285 = vadd.f32 %v1100, %v1284
  %v1286 = vpop.f32.mrb[0].mxu0
  %1287 = vdwg.mxu0
  %v1288 = vld [vmem:[#allocation2] sm:$0xff]
  %v1289 = vld [vmem:[#allocation2 + $0x8] sm:$0xff]
  %v1290 = vld [vmem:[#allocation2 + $0x20] sm:$0xff]
  %v1291 = vld [vmem:[#allocation2 + $0x28] sm:$0xff]
  %v1292 = vld [vmem:[#allocation2 + $0x40] sm:$0xff]
  %v1293 = vld [vmem:[#allocation2 + $0x48] sm:$0xff]
  %v1294 = vld [vmem:[#allocation2 + $0x60] sm:$0xff]
  %v1295 = vld [vmem:[#allocation2 + $0x68] sm:$0xff]
  %v1296 = vld [vmem:[#allocation2 + $0x80] sm:$0xff]
  %v1297 = vld [vmem:[#allocation2 + $0x88] sm:$0xff]
  %v1298 = vld [vmem:[#allocation2 + $0xa0] sm:$0xff]
  %v1299 = vld [vmem:[#allocation2 + $0xa8] sm:$0xff]
  %v1300 = vld [vmem:[#allocation2 + $0xc0] sm:$0xff]
  %v1301 = vld [vmem:[#allocation2 + $0xc8] sm:$0xff]
  %v1302 = vld [vmem:[#allocation2 + $0xe0] sm:$0xff]
  %v1303 = vld [vmem:[#allocation2 + $0xe8] sm:$0xff]
  %v1304 = vld [vmem:[#allocation2 + $0x100] sm:$0xff]
  %v1305 = vld [vmem:[#allocation2 + $0x108] sm:$0xff]
  %v1306 = vld [vmem:[#allocation2 + $0x120] sm:$0xff]
  %v1307 = vld [vmem:[#allocation2 + $0x128] sm:$0xff]
  %v1308 = vld [vmem:[#allocation2 + $0x140] sm:$0xff]
  %v1309 = vld [vmem:[#allocation2 + $0x148] sm:$0xff]
  %v1310 = vld [vmem:[#allocation2 + $0x160] sm:$0xff]
  %v1311 = vld [vmem:[#allocation2 + $0x168] sm:$0xff]
  %v1312 = vld [vmem:[#allocation2 + $0x180] sm:$0xff]
  %v1313 = vld [vmem:[#allocation2 + $0x188] sm:$0xff]
  %v1314 = vld [vmem:[#allocation2 + $0x1a0] sm:$0xff]
  %v1315 = vld [vmem:[#allocation2 + $0x1a8] sm:$0xff]
  %v1316 = vld [vmem:[#allocation2 + $0x1c0] sm:$0xff]
  %v1317 = vld [vmem:[#allocation2 + $0x1c8] sm:$0xff]
  %v1318 = vld [vmem:[#allocation2 + $0x1e0] sm:$0xff]
  %v1319 = vld [vmem:[#allocation2 + $0x1e8] sm:$0xff]
  %v1320 = vld [vmem:[#allocation2 + $0x200] sm:$0xff]
  %v1321 = vld [vmem:[#allocation2 + $0x208] sm:$0xff]
  %v1322 = vld [vmem:[#allocation2 + $0x220] sm:$0xff]
  %v1323 = vld [vmem:[#allocation2 + $0x228] sm:$0xff]
  %v1324 = vld [vmem:[#allocation2 + $0x240] sm:$0xff]
  %v1325 = vld [vmem:[#allocation2 + $0x248] sm:$0xff]
  %v1326 = vld [vmem:[#allocation2 + $0x260] sm:$0xff]
  %v1327 = vld [vmem:[#allocation2 + $0x268] sm:$0xff]
  %v1328 = vld [vmem:[#allocation2 + $0x280] sm:$0xff]
  %v1329 = vld [vmem:[#allocation2 + $0x288] sm:$0xff]
  %v1330 = vld [vmem:[#allocation2 + $0x2a0] sm:$0xff]
  %v1331 = vld [vmem:[#allocation2 + $0x2a8] sm:$0xff]
  %v1332 = vld [vmem:[#allocation2 + $0x2c0] sm:$0xff]
  %v1333 = vld [vmem:[#allocation2 + $0x2c8] sm:$0xff]
  %v1334 = vld [vmem:[#allocation2 + $0x2e0] sm:$0xff]
  %v1335 = vld [vmem:[#allocation2 + $0x2e8] sm:$0xff]
  %v1336 = vmax.f32 %v1288, %v1289
  %1337 = vmax.xlane.f32.xlu0 %v1336
  %v1338 = vpop.xlane.xlu0 %1337
  %v1339 = vmax.f32 %v1290, %v1291
  %1340 = vmax.xlane.f32.xlu0 %v1339
  %v1341 = vpop.xlane.xlu0 %1340
  %v1342 = vmax.f32 %v1292, %v1293
  %1343 = vmax.xlane.f32.xlu0 %v1342
  %v1344 = vpop.xlane.xlu0 %1343
  %v1345 = vmax.f32 %v1294, %v1295
  %1346 = vmax.xlane.f32.xlu0 %v1345
  %v1347 = vpop.xlane.xlu0 %1346
  %v1348 = vmax.f32 %v1296, %v1297
  %1349 = vmax.xlane.f32.xlu0 %v1348
  %v1350 = vpop.xlane.xlu0 %1349
  %v1351 = vmax.f32 %v1298, %v1299
  %1352 = vmax.xlane.f32.xlu0 %v1351
  %v1353 = vpop.xlane.xlu0 %1352
  %v1354 = vmax.f32 %v1300, %v1301
  %1355 = vmax.xlane.f32.xlu0 %v1354
  %v1356 = vpop.xlane.xlu0 %1355
  %v1357 = vmax.f32 %v1302, %v1303
  %1358 = vmax.xlane.f32.xlu0 %v1357
  %v1359 = vpop.xlane.xlu0 %1358
  %v1360 = vmax.f32 %v1304, %v1305
  %1361 = vmax.xlane.f32.xlu0 %v1360
  %v1362 = vpop.xlane.xlu0 %1361
  %v1363 = vmax.f32 %v1306, %v1307
  %1364 = vmax.xlane.f32.xlu0 %v1363
  %v1365 = vpop.xlane.xlu0 %1364
  %v1366 = vmax.f32 %v1308, %v1309
  %1367 = vmax.xlane.f32.xlu0 %v1366
  %v1368 = vpop.xlane.xlu0 %1367
  %v1369 = vmax.f32 %v1310, %v1311
  %1370 = vmax.xlane.f32.xlu0 %v1369
  %v1371 = vpop.xlane.xlu0 %1370
  %v1372 = vmax.f32 %v1312, %v1313
  %1373 = vmax.xlane.f32.xlu0 %v1372
  %v1374 = vpop.xlane.xlu0 %1373
  %v1375 = vmax.f32 %v1314, %v1315
  %1376 = vmax.xlane.f32.xlu0 %v1375
  %v1377 = vpop.xlane.xlu0 %1376
  %v1378 = vmax.f32 %v1316, %v1317
  %1379 = vmax.xlane.f32.xlu0 %v1378
  %v1380 = vpop.xlane.xlu0 %1379
  %v1381 = vmax.f32 %v1318, %v1319
  %1382 = vmax.xlane.f32.xlu0 %v1381
  %v1383 = vpop.xlane.xlu0 %1382
  %v1384 = vmax.f32 %v1320, %v1321
  %1385 = vmax.xlane.f32.xlu0 %v1384
  %v1386 = vpop.xlane.xlu0 %1385
  %v1387 = vmax.f32 %v1322, %v1323
  %1388 = vmax.xlane.f32.xlu0 %v1387
  %v1389 = vpop.xlane.xlu0 %1388
  %v1390 = vmax.f32 %v1324, %v1325
  %1391 = vmax.xlane.f32.xlu0 %v1390
  %v1392 = vpop.xlane.xlu0 %1391
  %v1393 = vmax.f32 %v1326, %v1327
  %1394 = vmax.xlane.f32.xlu0 %v1393
  %v1395 = vpop.xlane.xlu0 %1394
  %v1396 = vmax.f32 %v1328, %v1329
  %1397 = vmax.xlane.f32.xlu0 %v1396
  %v1398 = vpop.xlane.xlu0 %1397
  %v1399 = vmax.f32 %v1330, %v1331
  %1400 = vmax.xlane.f32.xlu0 %v1399
  %v1401 = vpop.xlane.xlu0 %1400
  %v1402 = vmax.f32 %v1332, %v1333
  %1403 = vmax.xlane.f32.xlu0 %v1402
  %v1404 = vpop.xlane.xlu0 %1403
  %v1405 = vmax.f32 %v1334, %v1335
  %1406 = vmax.xlane.f32.xlu0 %v1405
  %v1407 = vpop.xlane.xlu0 %1406
  %v1408 = vmax.f32 %v760, %v761
  %1409 = vmax.xlane.f32.xlu0 %v1408
  %v1410 = vpop.xlane.xlu0 %1409
  %v1411 = vmax.f32 %v764, %v765
  %1412 = vmax.xlane.f32.xlu0 %v1411
  %v1413 = vpop.xlane.xlu0 %1412
  %v1414 = vmax.f32 %v768, %v769
  %1415 = vmax.xlane.f32.xlu0 %v1414
  %v1416 = vpop.xlane.xlu0 %1415
  %v1417 = vmax.f32 %v772, %v773
  %1418 = vmax.xlane.f32.xlu0 %v1417
  %v1419 = vpop.xlane.xlu0 %1418
  %v1420 = vmax.f32 %v776, %v777
  %1421 = vmax.xlane.f32.xlu0 %v1420
  %v1422 = vpop.xlane.xlu0 %1421
  %v1423 = vmax.f32 %v780, %v781
  %1424 = vmax.xlane.f32.xlu0 %v1423
  %v1425 = vpop.xlane.xlu0 %1424
  %v1426 = vmax.f32 %v784, %v785
  %1427 = vmax.xlane.f32.xlu0 %v1426
  %v1428 = vpop.xlane.xlu0 %1427
  %v1429 = vmax.f32 %v788, %v789
  %1430 = vmax.xlane.f32.xlu0 %v1429
  %v1431 = vpop.xlane.xlu0 %1430
  %v1432 = vmax.f32 %v792, %v793
  %1433 = vmax.xlane.f32.xlu0 %v1432
  %v1434 = vpop.xlane.xlu0 %1433
  %v1435 = vmax.f32 %v796, %v797
  %1436 = vmax.xlane.f32.xlu0 %v1435
  %v1437 = vpop.xlane.xlu0 %1436
  %v1438 = vmax.f32 %v800, %v801
  %1439 = vmax.xlane.f32.xlu0 %v1438
  %v1440 = vpop.xlane.xlu0 %1439
  %v1441 = vmax.f32 %v804, %v805
  %1442 = vmax.xlane.f32.xlu0 %v1441
  %v1443 = vpop.xlane.xlu0 %1442
  %v1444 = vmax.f32 %v808, %v809
  %1445 = vmax.xlane.f32.xlu0 %v1444
  %v1446 = vpop.xlane.xlu0 %1445
  %v1447 = vmax.f32 %v812, %v813
  %1448 = vmax.xlane.f32.xlu0 %v1447
  %v1449 = vpop.xlane.xlu0 %1448
  %v1450 = vmax.f32 %v816, %v817
  %1451 = vmax.xlane.f32.xlu0 %v1450
  %v1452 = vpop.xlane.xlu0 %1451
  %v1453 = vmax.f32 %v820, %v821
  %1454 = vmax.xlane.f32.xlu0 %v1453
  %v1455 = vpop.xlane.xlu0 %1454
  %v1456 = vmax.f32 %v824, %v825
  %1457 = vmax.xlane.f32.xlu0 %v1456
  %v1458 = vpop.xlane.xlu0 %1457
  %v1459 = vmax.f32 %v828, %v829
  %1460 = vmax.xlane.f32.xlu0 %v1459
  %v1461 = vpop.xlane.xlu0 %1460
  %v1462 = vmax.f32 %v832, %v833
  %1463 = vmax.xlane.f32.xlu0 %v1462
  %v1464 = vpop.xlane.xlu0 %1463
  %v1465 = vmax.f32 %v836, %v837
  %1466 = vmax.xlane.f32.xlu0 %v1465
  %v1467 = vpop.xlane.xlu0 %1466
  %v1468 = vmax.f32 %v840, %v841
  %1469 = vmax.xlane.f32.xlu0 %v1468
  %v1470 = vpop.xlane.xlu0 %1469
  %v1471 = vmax.f32 %v844, %v845
  %1472 = vmax.xlane.f32.xlu0 %v1471
  %v1473 = vpop.xlane.xlu0 %1472
  %v1474 = vmax.f32 %v848, %v849
  %1475 = vmax.xlane.f32.xlu0 %v1474
  %v1476 = vpop.xlane.xlu0 %1475
  %v1477 = vmax.f32 %v852, %v853
  %1478 = vmax.xlane.f32.xlu0 %v1477
  %v1479 = vpop.xlane.xlu0 %1478
  %vm1480 = vcmask 7168
  %v1481 = vsel %vm1480, %v1338, %v1410
  %v1482 = vsel %vm1480, %v1341, %v1413
  %v1483 = vsel %vm1480, %v1344, %v1416
  %v1484 = vsel %vm1480, %v1347, %v1419
  %v1485 = vsel %vm1480, %v1350, %v1422
  %v1486 = vsel %vm1480, %v1353, %v1425
  %v1487 = vsel %vm1480, %v1356, %v1428
  %v1488 = vsel %vm1480, %v1359, %v1431
  %v1489 = vsel %vm1480, %v1362, %v1434
  %v1490 = vsel %vm1480, %v1365, %v1437
  %v1491 = vsel %vm1480, %v1368, %v1440
  %v1492 = vsel %vm1480, %v1371, %v1443
  %v1493 = vsel %vm1480, %v1374, %v1446
  %v1494 = vsel %vm1480, %v1377, %v1449
  %v1495 = vsel %vm1480, %v1380, %v1452
  %v1496 = vsel %vm1480, %v1383, %v1455
  %v1497 = vsel %vm1480, %v1386, %v1458
  %v1498 = vsel %vm1480, %v1389, %v1461
  %v1499 = vsel %vm1480, %v1392, %v1464
  %v1500 = vsel %vm1480, %v1395, %v1467
  %v1501 = vsel %vm1480, %v1398, %v1470
  %v1502 = vsel %vm1480, %v1401, %v1473
  %v1503 = vsel %vm1480, %v1404, %v1476
  %v1504 = vsel %vm1480, %v1407, %v1479
  %1529 = vrot.lane.b32.xlu0 %v1481, 2
  %v1530 = vpop.permute.xlu0 %1529
  %1531 = vrot.lane.b32.xlu0 %v1482, 2
  %v1532 = vpop.permute.xlu0 %1531
  %1533 = vrot.lane.b32.xlu0 %v1483, 2
  %v1534 = vpop.permute.xlu0 %1533
  %1535 = vrot.lane.b32.xlu0 %v1484, 2
  %v1536 = vpop.permute.xlu0 %1535
  %1537 = vrot.lane.b32.xlu0 %v1485, 2
  %v1538 = vpop.permute.xlu0 %1537
  %1539 = vrot.lane.b32.xlu0 %v1486, 2
  %v1540 = vpop.permute.xlu0 %1539
  %1541 = vrot.lane.b32.xlu0 %v1487, 2
  %v1542 = vpop.permute.xlu0 %1541
  %1543 = vrot.lane.b32.xlu0 %v1488, 2
  %v1544 = vpop.permute.xlu0 %1543
  %1545 = vrot.lane.b32.xlu0 %v1489, 2
  %v1546 = vpop.permute.xlu0 %1545
  %1547 = vrot.lane.b32.xlu0 %v1490, 2
  %v1548 = vpop.permute.xlu0 %1547
  %1549 = vrot.lane.b32.xlu0 %v1491, 2
  %v1550 = vpop.permute.xlu0 %1549
  %1551 = vrot.lane.b32.xlu0 %v1492, 2
  %v1552 = vpop.permute.xlu0 %1551
  %1553 = vrot.lane.b32.xlu0 %v1493, 2
  %v1554 = vpop.permute.xlu0 %1553
  %1555 = vrot.lane.b32.xlu0 %v1494, 2
  %v1556 = vpop.permute.xlu0 %1555
  %1557 = vrot.lane.b32.xlu0 %v1495, 2
  %v1558 = vpop.permute.xlu0 %1557
  %1559 = vrot.lane.b32.xlu0 %v1496, 2
  %v1560 = vpop.permute.xlu0 %1559
  %1561 = vrot.lane.b32.xlu0 %v1497, 2
  %v1562 = vpop.permute.xlu0 %1561
  %1563 = vrot.lane.b32.xlu0 %v1498, 2
  %v1564 = vpop.permute.xlu0 %1563
  %1565 = vrot.lane.b32.xlu0 %v1499, 2
  %v1566 = vpop.permute.xlu0 %1565
  %1567 = vrot.lane.b32.xlu0 %v1500, 2
  %v1568 = vpop.permute.xlu0 %1567
  %1569 = vrot.lane.b32.xlu0 %v1501, 2
  %v1570 = vpop.permute.xlu0 %1569
  %1571 = vrot.lane.b32.xlu0 %v1502, 2
  %v1572 = vpop.permute.xlu0 %1571
  %1573 = vrot.lane.b32.xlu0 %v1503, 2
  %v1574 = vpop.permute.xlu0 %1573
  %1575 = vrot.lane.b32.xlu0 %v1504, 2
  %v1576 = vpop.permute.xlu0 %1575
  %vm1601 = vcmask 15360
  %v1602 = vsel %vm1601, %v1170, %v1530
  %v1603 = vsel %vm1601, %v1175, %v1532
  %v1604 = vsel %vm1601, %v1180, %v1534
  %v1605 = vsel %vm1601, %v1185, %v1536
  %v1606 = vsel %vm1601, %v1190, %v1538
  %v1607 = vsel %vm1601, %v1195, %v1540
  %v1608 = vsel %vm1601, %v1200, %v1542
  %v1609 = vsel %vm1601, %v1205, %v1544
  %v1610 = vsel %vm1601, %v1210, %v1546
  %v1611 = vsel %vm1601, %v1215, %v1548
  %v1612 = vsel %vm1601, %v1220, %v1550
  %v1613 = vsel %vm1601, %v1225, %v1552
  %v1614 = vsel %vm1601, %v1230, %v1554
  %v1615 = vsel %vm1601, %v1235, %v1556
  %v1616 = vsel %vm1601, %v1240, %v1558
  %v1617 = vsel %vm1601, %v1245, %v1560
  %v1618 = vsel %vm1601, %v1250, %v1562
  %v1619 = vsel %vm1601, %v1255, %v1564
  %v1620 = vsel %vm1601, %v1260, %v1566
  %v1621 = vsel %vm1601, %v1265, %v1568
  %v1622 = vsel %vm1601, %v1270, %v1570
  %v1623 = vsel %vm1601, %v1275, %v1572
  %v1624 = vsel %vm1601, %v1280, %v1574
  %v1625 = vsel %vm1601, %v1285, %v1576
  %v1626 = vld [vmem:[%s2] sm:$0xff]
  %v1627 = vld [vmem:[%s2 + $0x8] sm:$0xff]
  %v1628 = vld [vmem:[%s2 + $0x10] sm:$0xff]
  %v1629 = vld [vmem:[%s2 + $0x18] sm:$0xff]
  %v1630 = vld [vmem:[%s2 + $0x20] sm:$0xff]
  %v1631 = vld [vmem:[%s2 + $0x28] sm:$0xff]
  %v1632 = vld [vmem:[%s2 + $0x30] sm:$0xff]
  %v1633 = vld [vmem:[%s2 + $0x38] sm:$0xff]
  %v1634 = vld [vmem:[%s2 + $0x40] sm:$0xff]
  %v1635 = vld [vmem:[%s2 + $0x48] sm:$0xff]
  %v1636 = vld [vmem:[%s2 + $0x50] sm:$0xff]
  %v1637 = vld [vmem:[%s2 + $0x58] sm:$0xff]
  %v1638 = vld [vmem:[%s3] sm:$0xff]
  %v1639 = vld [vmem:[%s3 + $0x8] sm:$0xff]
  %v1640 = vld [vmem:[%s3 + $0x10] sm:$0xff]
  %v1641 = vld [vmem:[%s3 + $0x18] sm:$0xff]
  %v1642 = vld [vmem:[%s3 + $0x20] sm:$0xff]
  %v1643 = vld [vmem:[%s3 + $0x28] sm:$0xff]
  %1645 = vset.pattern.permute.xlu0 0
  %1646 = vperm.xlu0 %1645, %v1638
  %v1647 = vpop.permute.xlu0 %1646
  %1650 = vset.pattern.permute.xlu0 0
  %1651 = vperm.xlu0 %1650, %v1639
  %v1652 = vpop.permute.xlu0 %1651
  %1655 = vset.pattern.permute.xlu0 0
  %1656 = vperm.xlu0 %1655, %v1640
  %v1657 = vpop.permute.xlu0 %1656
  %1660 = vset.pattern.permute.xlu0 0
  %1661 = vperm.xlu0 %1660, %v1641
  %v1662 = vpop.permute.xlu0 %1661
  %1665 = vset.pattern.permute.xlu0 0
  %1666 = vperm.xlu0 %1665, %v1642
  %v1667 = vpop.permute.xlu0 %1666
  %1670 = vset.pattern.permute.xlu0 0
  %1671 = vperm.xlu0 %1670, %v1643
  %v1672 = vpop.permute.xlu0 %1671
  %vm1674 = vcmask 523264
  %v1676 = vsel %vm1674, %v1627, 0
  %v1679 = vsel %vm1674, %v1629, 0
  %v1682 = vsel %vm1674, %v1631, 0
  %v1685 = vsel %vm1674, %v1633, 0
  %v1688 = vsel %vm1674, %v1635, 0
  %v1691 = vsel %vm1674, %v1637, 0
  %1693 = vmatprep.subr.mxu0 0.0
  %1694 = vmatpush1.msra.mxu0 %v1602
  %1695 = vmatprep.subr.mxu0 0.0
  %1696 = vmatpush1.msra.mxu0 %v1603
  %1697 = vmatprep.subr.mxu0 0.0
  %1698 = vmatpush1.msra.mxu0 %v1604
  %1699 = vmatprep.subr.mxu0 0.0
  %1700 = vmatpush1.msra.mxu0 %v1605
  %1701 = vmatprep.subr.mxu0 0.0
  %1702 = vmatpush1.msra.mxu0 %v1606
  %1703 = vmatprep.subr.mxu0 0.0
  %1704 = vmatpush1.msra.mxu0 %v1607
  %1705 = vmatprep.subr.mxu0 0.0
  %1706 = vmatpush1.msra.mxu0 %v1608
  %1707 = vmatprep.subr.mxu0 0.0
  %1708 = vmatpush1.msra.mxu0 %v1609
  %1709 = vmatprep.subr.mxu0 0.0
  %1710 = vmatpush1.msra.mxu0 %v1610
  %1711 = vmatprep.subr.mxu0 0.0
  %1712 = vmatpush1.msra.mxu0 %v1611
  %1713 = vmatprep.subr.mxu0 0.0
  %1714 = vmatpush1.msra.mxu0 %v1612
  %1715 = vmatprep.subr.mxu0 0.0
  %1716 = vmatpush1.msra.mxu0 %v1613
  %1717 = vmatprep.subr.mxu0 0.0
  %1718 = vmatpush1.msra.mxu0 %v1614
  %1719 = vmatprep.subr.mxu0 0.0
  %1720 = vmatpush1.msra.mxu0 %v1615
  %1721 = vmatprep.subr.mxu0 0.0
  %1722 = vmatpush1.msra.mxu0 %v1616
  %1723 = vmatprep.subr.mxu0 0.0
  %1724 = vmatpush1.msra.mxu0 %v1617
  %1725 = vmatprep.subr.mxu0 0.0
  %1726 = vmatpush1.msra.mxu0 %v1618
  %1727 = vmatprep.subr.mxu0 0.0
  %1728 = vmatpush1.msra.mxu0 %v1619
  %1729 = vmatprep.subr.mxu0 0.0
  %1730 = vmatpush1.msra.mxu0 %v1620
  %1731 = vmatprep.subr.mxu0 0.0
  %1732 = vmatpush1.msra.mxu0 %v1621
  %1733 = vmatprep.subr.mxu0 0.0
  %1734 = vmatpush1.msra.mxu0 %v1622
  %1735 = vmatprep.subr.mxu0 0.0
  %1736 = vmatpush1.msra.mxu0 %v1623
  %1737 = vmatprep.subr.mxu0 0.0
  %1738 = vmatpush1.msra.mxu0 %v1624
  %1739 = vmatprep.subr.mxu0 0.0
  %1740 = vmatpush1.msra.mxu0 %v1625
  %1741 = vmatprep.subr.mxu0 0.0
  %1742 = vmatpush1.msra.mxu0 0.0
  %1743 = vmatprep.subr.mxu0 0.0
  %1744 = vmatpush1.msra.mxu0 0.0
  %1745 = vmatprep.subr.mxu0 0.0
  %1746 = vmatpush1.msra.mxu0 0.0
  %1747 = vmatprep.subr.mxu0 0.0
  %1748 = vmatpush1.msra.mxu0 0.0
  %1749 = vmatprep.subr.mxu0 0.0
  %1750 = vmatpush1.msra.mxu0 0.0
  %1751 = vmatprep.subr.mxu0 0.0
  %1752 = vmatpush1.msra.mxu0 0.0
  %1753 = vmatprep.subr.mxu0 0.0
  %1754 = vmatpush1.msra.mxu0 0.0
  %1755 = vmatprep.subr.mxu0 0.0
  %1756 = vmatpush1.msra.mxu0 0.0
  %1757 = vmatprep.mubr.f32.mxu0 %v1676
  %1758 = vmatmul.mubr.f32.gmra.mrb[0].mxu0 %v1626
  %v1759 = vpop.f32.mrb[0].mxu0
  %v1760 = vadd.f32 %v1647, %v1759
  %v1761 = vpop.f32.mrb[0].mxu0
  %1762 = vmatprep.mubr.f32.mxu0 %v1679
  %1763 = vmatmul.mubr.f32.gmra.mrb[0].mxu0 %v1628
  %v1764 = vpop.f32.mrb[0].mxu0
  %v1765 = vadd.f32 %v1652, %v1764
  %v1766 = vpop.f32.mrb[0].mxu0
  %1767 = vmatprep.mubr.f32.mxu0 %v1682
  %1768 = vmatmul.mubr.f32.gmra.mrb[0].mxu0 %v1630
  %v1769 = vpop.f32.mrb[0].mxu0
  %v1770 = vadd.f32 %v1657, %v1769
  %v1771 = vpop.f32.mrb[0].mxu0
  %1772 = vmatprep.mubr.f32.mxu0 %v1685
  %1773 = vmatmul.mubr.f32.gmra.mrb[0].mxu0 %v1632
  %v1774 = vpop.f32.mrb[0].mxu0
  %v1775 = vadd.f32 %v1662, %v1774
  %v1776 = vpop.f32.mrb[0].mxu0
  %1777 = vmatprep.mubr.f32.mxu0 %v1688
  %1778 = vmatmul.mubr.f32.gmra.mrb[0].mxu0 %v1634
  %v1779 = vpop.f32.mrb[0].mxu0
  %v1780 = vadd.f32 %v1667, %v1779
  %v1781 = vpop.f32.mrb[0].mxu0
  %1782 = vmatprep.mubr.f32.mxu0 %v1691
  %1783 = vmatmul.mubr.f32.gmra.mrb[0].mxu0 %v1636
  %v1784 = vpop.f32.mrb[0].mxu0
  %v1785 = vadd.f32 %v1672, %v1784
  %v1786 = vpop.f32.mrb[0].mxu0
  %1787 = vdwg.mxu0
  %v1788 = vmax.f32 %v1760, 0.0
  %v1789 = vmax.f32 %v1765, 0.0
  %v1790 = vmax.f32 %v1770, 0.0
  %v1791 = vmax.f32 %v1775, 0.0
  %v1792 = vmax.f32 %v1780, 0.0
  %v1793 = vmax.f32 %v1785, 0.0
  %1800 = vrot.lane.b32.xlu0 %v1788, 126
  %v1801 = vpop.permute.xlu0 %1800
  %1802 = vrot.lane.b32.xlu0 %v1789, 126
  %v1803 = vpop.permute.xlu0 %1802
  %1804 = vrot.lane.b32.xlu0 %v1790, 126
  %v1805 = vpop.permute.xlu0 %1804
  %1806 = vrot.lane.b32.xlu0 %v1791, 126
  %v1807 = vpop.permute.xlu0 %1806
  %1808 = vrot.lane.b32.xlu0 %v1792, 126
  %v1809 = vpop.permute.xlu0 %1808
  %1810 = vrot.lane.b32.xlu0 %v1793, 126
  %v1811 = vpop.permute.xlu0 %1810
  %v1818 = vadd.f32 %v1788, %v1801
  %v1819 = vadd.f32 %v1789, %v1803
  %v1820 = vadd.f32 %v1790, %v1805
  %v1821 = vadd.f32 %v1791, %v1807
  %v1822 = vadd.f32 %v1792, %v1809
  %v1823 = vadd.f32 %v1793, %v1811
  %v1824 = vld [vmem:[%s4] sm:$0xff]
  %v1825 = vld [vmem:[%s4 + $0x8] sm:$0xff]
  %v1826 = vld [vmem:[%s4 + $0x10] sm:$0xff]
  %v1827 = vld [vmem:[%s4 + $0x18] sm:$0xff]
  %v1828 = vld [vmem:[%s4 + $0x20] sm:$0xff]
  %v1829 = vld [vmem:[%s4 + $0x28] sm:$0xff]
  %v1830 = vld [vmem:[%s4 + $0x30] sm:$0xff]
  %v1831 = vld [vmem:[%s4 + $0x38] sm:$0xff]
  %v1832 = vld [vmem:[%s4 + $0x40] sm:$0xff]
  %v1833 = vld [vmem:[%s4 + $0x48] sm:$0xff]
  %v1834 = vld [vmem:[%s4 + $0x50] sm:$0xff]
  %v1835 = vld [vmem:[%s4 + $0x58] sm:$0xff]
  %v1836 = vld [vmem:[%s4 + $0x60] sm:$0xff]
  %v1837 = vld [vmem:[%s4 + $0x68] sm:$0xff]
  %v1838 = vld [vmem:[%s4 + $0x70] sm:$0xff]
  %v1839 = vld [vmem:[%s4 + $0x78] sm:$0xff]
  %v1840 = vld [vmem:[%s4 + $0x80] sm:$0xff]
  %v1841 = vld [vmem:[%s4 + $0x88] sm:$0xff]
  %v1842 = vld [vmem:[%s4 + $0x90] sm:$0xff]
  %v1843 = vld [vmem:[%s4 + $0x98] sm:$0xff]
  %v1844 = vld [vmem:[%s4 + $0xa0] sm:$0xff]
  %v1845 = vld [vmem:[%s4 + $0xa8] sm:$0xff]
  %v1846 = vld [vmem:[%s4 + $0xb0] sm:$0xff]
  %v1847 = vld [vmem:[%s4 + $0xb8] sm:$0xff]
  %v1848 = vld [vmem:[%s5] sm:$0xff]
  %v1849 = vld [vmem:[%s5 + $0x8] sm:$0xff]
  %v1850 = vld [vmem:[%s5 + $0x10] sm:$0xff]
  %v1851 = vld [vmem:[%s5 + $0x18] sm:$0xff]
  %v1852 = vld [vmem:[%s5 + $0x20] sm:$0xff]
  %v1853 = vld [vmem:[%s5 + $0x28] sm:$0xff]
  %v1854 = vld [vmem:[%s5 + $0x30] sm:$0xff]
  %v1855 = vld [vmem:[%s5 + $0x38] sm:$0xff]
  %v1856 = vld [vmem:[%s5 + $0x40] sm:$0xff]
  %v1857 = vld [vmem:[%s5 + $0x48] sm:$0xff]
  %v1858 = vld [vmem:[%s5 + $0x50] sm:$0xff]
  %v1859 = vld [vmem:[%s5 + $0x58] sm:$0xff]
  %v1860 = vld [vmem:[%s5 + $0x60] sm:$0xff]
  %v1861 = vld [vmem:[%s5 + $0x68] sm:$0xff]
  %v1862 = vld [vmem:[%s5 + $0x70] sm:$0xff]
  %v1863 = vld [vmem:[%s5 + $0x78] sm:$0xff]
  %v1864 = vld [vmem:[%s5 + $0x80] sm:$0xff]
  %v1865 = vld [vmem:[%s5 + $0x88] sm:$0xff]
  %v1866 = vld [vmem:[%s5 + $0x90] sm:$0xff]
  %v1867 = vld [vmem:[%s5 + $0x98] sm:$0xff]
  %v1868 = vld [vmem:[%s5 + $0xa0] sm:$0xff]
  %v1869 = vld [vmem:[%s5 + $0xa8] sm:$0xff]
  %v1870 = vld [vmem:[%s5 + $0xb0] sm:$0xff]
  %v1871 = vld [vmem:[%s5 + $0xb8] sm:$0xff]
  %1873 = vset.pattern.permute.xlu0 0
  %1874 = vperm.xlu0 %1873, %v1848
  %v1875 = vpop.permute.xlu0 %1874
  %1878 = vset.pattern.permute.xlu0 0
  %1879 = vperm.xlu0 %1878, %v1849
  %v1880 = vpop.permute.xlu0 %1879
  %1883 = vset.pattern.permute.xlu0 0
  %1884 = vperm.xlu0 %1883, %v1850
  %v1885 = vpop.permute.xlu0 %1884
  %1888 = vset.pattern.permute.xlu0 0
  %1889 = vperm.xlu0 %1888, %v1851
  %v1890 = vpop.permute.xlu0 %1889
  %1893 = vset.pattern.permute.xlu0 0
  %1894 = vperm.xlu0 %1893, %v1852
  %v1895 = vpop.permute.xlu0 %1894
  %1898 = vset.pattern.permute.xlu0 0
  %1899 = vperm.xlu0 %1898, %v1853
  %v1900 = vpop.permute.xlu0 %1899
  %1903 = vset.pattern.permute.xlu0 0
  %1904 = vperm.xlu0 %1903, %v1854
  %v1905 = vpop.permute.xlu0 %1904
  %1908 = vset.pattern.permute.xlu0 0
  %1909 = vperm.xlu0 %1908, %v1855
  %v1910 = vpop.permute.xlu0 %1909
  %1913 = vset.pattern.permute.xlu0 0
  %1914 = vperm.xlu0 %1913, %v1856
  %v1915 = vpop.permute.xlu0 %1914
  %1918 = vset.pattern.permute.xlu0 0
  %1919 = vperm.xlu0 %1918, %v1857
  %v1920 = vpop.permute.xlu0 %1919
  %1923 = vset.pattern.permute.xlu0 0
  %1924 = vperm.xlu0 %1923, %v1858
  %v1925 = vpop.permute.xlu0 %1924
  %1928 = vset.pattern.permute.xlu0 0
  %1929 = vperm.xlu0 %1928, %v1859
  %v1930 = vpop.permute.xlu0 %1929
  %1933 = vset.pattern.permute.xlu0 0
  %1934 = vperm.xlu0 %1933, %v1860
  %v1935 = vpop.permute.xlu0 %1934
  %1938 = vset.pattern.permute.xlu0 0
  %1939 = vperm.xlu0 %1938, %v1861
  %v1940 = vpop.permute.xlu0 %1939
  %1943 = vset.pattern.permute.xlu0 0
  %1944 = vperm.xlu0 %1943, %v1862
  %v1945 = vpop.permute.xlu0 %1944
  %1948 = vset.pattern.permute.xlu0 0
  %1949 = vperm.xlu0 %1948, %v1863
  %v1950 = vpop.permute.xlu0 %1949
  %1953 = vset.pattern.permute.xlu0 0
  %1954 = vperm.xlu0 %1953, %v1864
  %v1955 = vpop.permute.xlu0 %1954
  %1958 = vset.pattern.permute.xlu0 0
  %1959 = vperm.xlu0 %1958, %v1865
  %v1960 = vpop.permute.xlu0 %1959
  %1963 = vset.pattern.permute.xlu0 0
  %1964 = vperm.xlu0 %1963, %v1866
  %v1965 = vpop.permute.xlu0 %1964
  %1968 = vset.pattern.permute.xlu0 0
  %1969 = vperm.xlu0 %1968, %v1867
  %v1970 = vpop.permute.xlu0 %1969
  %1973 = vset.pattern.permute.xlu0 0
  %1974 = vperm.xlu0 %1973, %v1868
  %v1975 = vpop.permute.xlu0 %1974
  %1978 = vset.pattern.permute.xlu0 0
  %1979 = vperm.xlu0 %1978, %v1869
  %v1980 = vpop.permute.xlu0 %1979
  %1983 = vset.pattern.permute.xlu0 0
  %1984 = vperm.xlu0 %1983, %v1870
  %v1985 = vpop.permute.xlu0 %1984
  %1988 = vset.pattern.permute.xlu0 0
  %1989 = vperm.xlu0 %1988, %v1871
  %v1990 = vpop.permute.xlu0 %1989
  %vm1992 = vcmask 392192
  %v1994 = vsel %vm1992, %v1824, 0
  %v1997 = vsel %vm1992, %v1825, 0
  %v2000 = vsel %vm1992, %v1826, 0
  %v2003 = vsel %vm1992, %v1827, 0
  %v2006 = vsel %vm1992, %v1828, 0
  %v2009 = vsel %vm1992, %v1829, 0
  %v2012 = vsel %vm1992, %v1830, 0
  %v2015 = vsel %vm1992, %v1831, 0
  %v2018 = vsel %vm1992, %v1832, 0
  %v2021 = vsel %vm1992, %v1833, 0
  %v2024 = vsel %vm1992, %v1834, 0
  %v2027 = vsel %vm1992, %v1835, 0
  %v2030 = vsel %vm1992, %v1836, 0
  %v2033 = vsel %vm1992, %v1837, 0
  %v2036 = vsel %vm1992, %v1838, 0
  %v2039 = vsel %vm1992, %v1839, 0
  %v2042 = vsel %vm1992, %v1840, 0
  %v2045 = vsel %vm1992, %v1841, 0
  %v2048 = vsel %vm1992, %v1842, 0
  %v2051 = vsel %vm1992, %v1843, 0
  %v2054 = vsel %vm1992, %v1844, 0
  %v2057 = vsel %vm1992, %v1845, 0
  %v2060 = vsel %vm1992, %v1846, 0
  %v2063 = vsel %vm1992, %v1847, 0
  %2065 = vmatprep.subr.mxu0 0.0
  %2066 = vmatpush1.msra.mxu0 %v1818
  %2067 = vmatprep.subr.mxu0 0.0
  %2068 = vmatpush1.msra.mxu0 %v1819
  %2069 = vmatprep.subr.mxu0 0.0
  %2070 = vmatpush1.msra.mxu0 %v1820
  %2071 = vmatprep.subr.mxu0 0.0
  %2072 = vmatpush1.msra.mxu0 %v1821
  %2073 = vmatprep.subr.mxu0 0.0
  %2074 = vmatpush1.msra.mxu0 %v1822
  %2075 = vmatprep.subr.mxu0 0.0
  %2076 = vmatpush1.msra.mxu0 %v1823
  %2077 = vmatprep.subr.mxu0 0.0
  %2078 = vmatpush1.msra.mxu0 0.0
  %2079 = vmatprep.subr.mxu0 0.0
  %2080 = vmatpush1.msra.mxu0 0.0
  %2081 = vmatprep.subr.mxu0 0.0
  %2082 = vmatpush1.msra.mxu0 0.0
  %2083 = vmatprep.subr.mxu0 0.0
  %2084 = vmatpush1.msra.mxu0 0.0
  %2085 = vmatprep.subr.mxu0 0.0
  %2086 = vmatpush1.msra.mxu0 0.0
  %2087 = vmatprep.subr.mxu0 0.0
  %2088 = vmatpush1.msra.mxu0 0.0
  %2089 = vmatprep.subr.mxu0 0.0
  %2090 = vmatpush1.msra.mxu0 0.0
  %2091 = vmatprep.subr.mxu0 0.0
  %2092 = vmatpush1.msra.mxu0 0.0
  %2093 = vmatprep.subr.mxu0 0.0
  %2094 = vmatpush1.msra.mxu0 0.0
  %2095 = vmatprep.subr.mxu0 0.0
  %2096 = vmatpush1.msra.mxu0 0.0
  %2097 = vmatprep.subr.mxu0 0.0
  %2098 = vmatpush1.msra.mxu0 0.0
  %2099 = vmatprep.subr.mxu0 0.0
  %2100 = vmatpush1.msra.mxu0 0.0
  %2101 = vmatprep.subr.mxu0 0.0
  %2102 = vmatpush1.msra.mxu0 0.0
  %2103 = vmatprep.subr.mxu0 0.0
  %2104 = vmatpush1.msra.mxu0 0.0
  %2105 = vmatprep.subr.mxu0 0.0
  %2106 = vmatpush1.msra.mxu0 0.0
  %2107 = vmatprep.subr.mxu0 0.0
  %2108 = vmatpush1.msra.mxu0 0.0
  %2109 = vmatprep.subr.mxu0 0.0
  %2110 = vmatpush1.msra.mxu0 0.0
  %2111 = vmatprep.subr.mxu0 0.0
  %2112 = vmatpush1.msra.mxu0 0.0
  %2113 = vmatprep.subr.mxu0 0.0
  %2114 = vmatpush1.msra.mxu0 0.0
  %2115 = vmatprep.subr.mxu0 0.0
  %2116 = vmatpush1.msra.mxu0 0.0
  %2117 = vmatprep.subr.mxu0 0.0
  %2118 = vmatpush1.msra.mxu0 0.0
  %2119 = vmatprep.subr.mxu0 0.0
  %2120 = vmatpush1.msra.mxu0 0.0
  %2121 = vmatprep.subr.mxu0 0.0
  %2122 = vmatpush1.msra.mxu0 0.0
  %2123 = vmatprep.subr.mxu0 0.0
  %2124 = vmatpush1.msra.mxu0 0.0
  %2125 = vmatprep.subr.mxu0 0.0
  %2126 = vmatpush1.msra.mxu0 0.0
  %2127 = vmatprep.subr.mxu0 0.0
  %2128 = vmatpush1.msra.mxu0 0.0
  %2129 = vmatprep.mubr.f32.mxu0 0.0
  %2130 = vmatmul.mubr.f32.gmra.mrb[0].mxu0 %v1994
  %v2131 = vpop.f32.mrb[0].mxu0
  %v2132 = vadd.f32 %v1875, %v2131
  %v2133 = vpop.f32.mrb[0].mxu0
  %2134 = vmatprep.mubr.f32.mxu0 0.0
  %2135 = vmatmul.mubr.f32.gmra.mrb[0].mxu0 %v1997
  %v2136 = vpop.f32.mrb[0].mxu0
  %v2137 = vadd.f32 %v1880, %v2136
  %v2138 = vpop.f32.mrb[0].mxu0
  %2139 = vmatprep.mubr.f32.mxu0 0.0
  %2140 = vmatmul.mubr.f32.gmra.mrb[0].mxu0 %v2000
  %v2141 = vpop.f32.mrb[0].mxu0
  %v2142 = vadd.f32 %v1885, %v2141
  %v2143 = vpop.f32.mrb[0].mxu0
  %2144 = vmatprep.mubr.f32.mxu0 0.0
  %2145 = vmatmul.mubr.f32.gmra.mrb[0].mxu0 %v2003
  %v2146 = vpop.f32.mrb[0].mxu0
  %v2147 = vadd.f32 %v1890, %v2146
  %v2148 = vpop.f32.mrb[0].mxu0
  %2149 = vmatprep.mubr.f32.mxu0 0.0
  %2150 = vmatmul.mubr.f32.gmra.mrb[0].mxu0 %v2006
  %v2151 = vpop.f32.mrb[0].mxu0
  %v2152 = vadd.f32 %v1895, %v2151
  %v2153 = vpop.f32.mrb[0].mxu0
  %2154 = vmatprep.mubr.f32.mxu0 0.0
  %2155 = vmatmul.mubr.f32.gmra.mrb[0].mxu0 %v2009
  %v2156 = vpop.f32.mrb[0].mxu0
  %v2157 = vadd.f32 %v1900, %v2156
  %v2158 = vpop.f32.mrb[0].mxu0
  %2159 = vmatprep.mubr.f32.mxu0 0.0
  %2160 = vmatmul.mubr.f32.gmra.mrb[0].mxu0 %v2012
  %v2161 = vpop.f32.mrb[0].mxu0
  %v2162 = vadd.f32 %v1905, %v2161
  %v2163 = vpop.f32.mrb[0].mxu0
  %2164 = vmatprep.mubr.f32.mxu0 0.0
  %2165 = vmatmul.mubr.f32.gmra.mrb[0].mxu0 %v2015
  %v2166 = vpop.f32.mrb[0].mxu0
  %v2167 = vadd.f32 %v1910, %v2166
  %v2168 = vpop.f32.mrb[0].mxu0
  %2169 = vmatprep.mubr.f32.mxu0 0.0
  %2170 = vmatmul.mubr.f32.gmra.mrb[0].mxu0 %v2018
  %v2171 = vpop.f32.mrb[0].mxu0
  %v2172 = vadd.f32 %v1915, %v2171
  %v2173 = vpop.f32.mrb[0].mxu0
  %2174 = vmatprep.mubr.f32.mxu0 0.0
  %2175 = vmatmul.mubr.f32.gmra.mrb[0].mxu0 %v2021
  %v2176 = vpop.f32.mrb[0].mxu0
  %v2177 = vadd.f32 %v1920, %v2176
  %v2178 = vpop.f32.mrb[0].mxu0
  %2179 = vmatprep.mubr.f32.mxu0 0.0
  %2180 = vmatmul.mubr.f32.gmra.mrb[0].mxu0 %v2024
  %v2181 = vpop.f32.mrb[0].mxu0
  %v2182 = vadd.f32 %v1925, %v2181
  %v2183 = vpop.f32.mrb[0].mxu0
  %2184 = vmatprep.mubr.f32.mxu0 0.0
  %2185 = vmatmul.mubr.f32.gmra.mrb[0].mxu0 %v2027
  %v2186 = vpop.f32.mrb[0].mxu0
  %v2187 = vadd.f32 %v1930, %v2186
  %v2188 = vpop.f32.mrb[0].mxu0
  %2189 = vmatprep.mubr.f32.mxu0 0.0
  %2190 = vmatmul.mubr.f32.gmra.mrb[0].mxu0 %v2030
  %v2191 = vpop.f32.mrb[0].mxu0
  %v2192 = vadd.f32 %v1935, %v2191
  %v2193 = vpop.f32.mrb[0].mxu0
  %2194 = vmatprep.mubr.f32.mxu0 0.0
  %2195 = vmatmul.mubr.f32.gmra.mrb[0].mxu0 %v2033
  %v2196 = vpop.f32.mrb[0].mxu0
  %v2197 = vadd.f32 %v1940, %v2196
  %v2198 = vpop.f32.mrb[0].mxu0
  %2199 = vmatprep.mubr.f32.mxu0 0.0
  %2200 = vmatmul.mubr.f32.gmra.mrb[0].mxu0 %v2036
  %v2201 = vpop.f32.mrb[0].mxu0
  %v2202 = vadd.f32 %v1945, %v2201
  %v2203 = vpop.f32.mrb[0].mxu0
  %2204 = vmatprep.mubr.f32.mxu0 0.0
  %2205 = vmatmul.mubr.f32.gmra.mrb[0].mxu0 %v2039
  %v2206 = vpop.f32.mrb[0].mxu0
  %v2207 = vadd.f32 %v1950, %v2206
  %v2208 = vpop.f32.mrb[0].mxu0
  %2209 = vmatprep.mubr.f32.mxu0 0.0
  %2210 = vmatmul.mubr.f32.gmra.mrb[0].mxu0 %v2042
  %v2211 = vpop.f32.mrb[0].mxu0
  %v2212 = vadd.f32 %v1955, %v2211
  %v2213 = vpop.f32.mrb[0].mxu0
  %2214 = vmatprep.mubr.f32.mxu0 0.0
  %2215 = vmatmul.mubr.f32.gmra.mrb[0].mxu0 %v2045
  %v2216 = vpop.f32.mrb[0].mxu0
  %v2217 = vadd.f32 %v1960, %v2216
  %v2218 = vpop.f32.mrb[0].mxu0
  %2219 = vmatprep.mubr.f32.mxu0 0.0
  %2220 = vmatmul.mubr.f32.gmra.mrb[0].mxu0 %v2048
  %v2221 = vpop.f32.mrb[0].mxu0
  %v2222 = vadd.f32 %v1965, %v2221
  %v2223 = vpop.f32.mrb[0].mxu0
  %2224 = vmatprep.mubr.f32.mxu0 0.0
  %2225 = vmatmul.mubr.f32.gmra.mrb[0].mxu0 %v2051
  %v2226 = vpop.f32.mrb[0].mxu0
  %v2227 = vadd.f32 %v1970, %v2226
  %v2228 = vpop.f32.mrb[0].mxu0
  %2229 = vmatprep.mubr.f32.mxu0 0.0
  %2230 = vmatmul.mubr.f32.gmra.mrb[0].mxu0 %v2054
  %v2231 = vpop.f32.mrb[0].mxu0
  %v2232 = vadd.f32 %v1975, %v2231
  %v2233 = vpop.f32.mrb[0].mxu0
  %2234 = vmatprep.mubr.f32.mxu0 0.0
  %2235 = vmatmul.mubr.f32.gmra.mrb[0].mxu0 %v2057
  %v2236 = vpop.f32.mrb[0].mxu0
  %v2237 = vadd.f32 %v1980, %v2236
  %v2238 = vpop.f32.mrb[0].mxu0
  %2239 = vmatprep.mubr.f32.mxu0 0.0
  %2240 = vmatmul.mubr.f32.gmra.mrb[0].mxu0 %v2060
  %v2241 = vpop.f32.mrb[0].mxu0
  %v2242 = vadd.f32 %v1985, %v2241
  %v2243 = vpop.f32.mrb[0].mxu0
  %2244 = vmatprep.mubr.f32.mxu0 0.0
  %2245 = vmatmul.mubr.f32.gmra.mrb[0].mxu0 %v2063
  %v2246 = vpop.f32.mrb[0].mxu0
  %v2247 = vadd.f32 %v1990, %v2246
  %v2248 = vpop.f32.mrb[0].mxu0
  %2249 = vdwg.mxu0
  %v2250 = vxor.u32 %v2132, 2147483648
  %v2251 = vxor.u32 %v2137, 2147483648
  %v2252 = vxor.u32 %v2142, 2147483648
  %v2253 = vxor.u32 %v2147, 2147483648
  %v2254 = vxor.u32 %v2152, 2147483648
  %v2255 = vxor.u32 %v2157, 2147483648
  %v2256 = vxor.u32 %v2162, 2147483648
  %v2257 = vxor.u32 %v2167, 2147483648
  %v2258 = vxor.u32 %v2172, 2147483648
  %v2259 = vxor.u32 %v2177, 2147483648
  %v2260 = vxor.u32 %v2182, 2147483648
  %v2261 = vxor.u32 %v2187, 2147483648
  %v2262 = vxor.u32 %v2192, 2147483648
  %v2263 = vxor.u32 %v2197, 2147483648
  %v2264 = vxor.u32 %v2202, 2147483648
  %v2265 = vxor.u32 %v2207, 2147483648
  %v2266 = vxor.u32 %v2212, 2147483648
  %v2267 = vxor.u32 %v2217, 2147483648
  %v2268 = vxor.u32 %v2222, 2147483648
  %v2269 = vxor.u32 %v2227, 2147483648
  %v2270 = vxor.u32 %v2232, 2147483648
  %v2271 = vxor.u32 %v2237, 2147483648
  %v2272 = vxor.u32 %v2242, 2147483648
  %v2273 = vxor.u32 %v2247, 2147483648
  %v2274 = vmul.f32 %v2250, 1.442695
  %v2275 = vpow.pop %v2274
  %v2276 = vmul.f32 %v2251, 1.442695
  %v2277 = vpow.pop %v2276
  %v2278 = vmul.f32 %v2252, 1.442695
  %v2279 = vpow.pop %v2278
  %v2280 = vmul.f32 %v2253, 1.442695
  %v2281 = vpow.pop %v2280
  %v2282 = vmul.f32 %v2254, 1.442695
  %v2283 = vpow.pop %v2282
  %v2284 = vmul.f32 %v2255, 1.442695
  %v2285 = vpow.pop %v2284
  %v2286 = vmul.f32 %v2256, 1.442695
  %v2287 = vpow.pop %v2286
  %v2288 = vmul.f32 %v2257, 1.442695
  %v2289 = vpow.pop %v2288
  %v2290 = vmul.f32 %v2258, 1.442695
  %v2291 = vpow.pop %v2290
  %v2292 = vmul.f32 %v2259, 1.442695
  %v2293 = vpow.pop %v2292
  %v2294 = vmul.f32 %v2260, 1.442695
  %v2295 = vpow.pop %v2294
  %v2296 = vmul.f32 %v2261, 1.442695
  %v2297 = vpow.pop %v2296
  %v2298 = vmul.f32 %v2262, 1.442695
  %v2299 = vpow.pop %v2298
  %v2300 = vmul.f32 %v2263, 1.442695
  %v2301 = vpow.pop %v2300
  %v2302 = vmul.f32 %v2264, 1.442695
  %v2303 = vpow.pop %v2302
  %v2304 = vmul.f32 %v2265, 1.442695
  %v2305 = vpow.pop %v2304
  %v2306 = vmul.f32 %v2266, 1.442695
  %v2307 = vpow.pop %v2306
  %v2308 = vmul.f32 %v2267, 1.442695
  %v2309 = vpow.pop %v2308
  %v2310 = vmul.f32 %v2268, 1.442695
  %v2311 = vpow.pop %v2310
  %v2312 = vmul.f32 %v2269, 1.442695
  %v2313 = vpow.pop %v2312
  %v2314 = vmul.f32 %v2270, 1.442695
  %v2315 = vpow.pop %v2314
  %v2316 = vmul.f32 %v2271, 1.442695
  %v2317 = vpow.pop %v2316
  %v2318 = vmul.f32 %v2272, 1.442695
  %v2319 = vpow.pop %v2318
  %v2320 = vmul.f32 %v2273, 1.442695
  %v2321 = vpow.pop %v2320
  %v2322 = vadd.f32 %v2275, 1.0
  %v2323 = vadd.f32 %v2277, 1.0
  %v2324 = vadd.f32 %v2279, 1.0
  %v2325 = vadd.f32 %v2281, 1.0
  %v2326 = vadd.f32 %v2283, 1.0
  %v2327 = vadd.f32 %v2285, 1.0
  %v2328 = vadd.f32 %v2287, 1.0
  %v2329 = vadd.f32 %v2289, 1.0
  %v2330 = vadd.f32 %v2291, 1.0
  %v2331 = vadd.f32 %v2293, 1.0
  %v2332 = vadd.f32 %v2295, 1.0
  %v2333 = vadd.f32 %v2297, 1.0
  %v2334 = vadd.f32 %v2299, 1.0
  %v2335 = vadd.f32 %v2301, 1.0
  %v2336 = vadd.f32 %v2303, 1.0
  %v2337 = vadd.f32 %v2305, 1.0
  %v2338 = vadd.f32 %v2307, 1.0
  %v2339 = vadd.f32 %v2309, 1.0
  %v2340 = vadd.f32 %v2311, 1.0
  %v2341 = vadd.f32 %v2313, 1.0
  %v2342 = vadd.f32 %v2315, 1.0
  %v2343 = vadd.f32 %v2317, 1.0
  %v2344 = vadd.f32 %v2319, 1.0
  %v2345 = vadd.f32 %v2321, 1.0
  %v2346 = vrcp.pop %v2322
  %v2347 = vmul.f32 1.0, %v2346
  %v2348 = vrcp.pop %v2323
  %v2349 = vmul.f32 1.0, %v2348
  %v2350 = vrcp.pop %v2324
  %v2351 = vmul.f32 1.0, %v2350
  %v2352 = vrcp.pop %v2325
  %v2353 = vmul.f32 1.0, %v2352
  %v2354 = vrcp.pop %v2326
  %v2355 = vmul.f32 1.0, %v2354
  %v2356 = vrcp.pop %v2327
  %v2357 = vmul.f32 1.0, %v2356
  %v2358 = vrcp.pop %v2328
  %v2359 = vmul.f32 1.0, %v2358
  %v2360 = vrcp.pop %v2329
  %v2361 = vmul.f32 1.0, %v2360
  %v2362 = vrcp.pop %v2330
  %v2363 = vmul.f32 1.0, %v2362
  %v2364 = vrcp.pop %v2331
  %v2365 = vmul.f32 1.0, %v2364
  %v2366 = vrcp.pop %v2332
  %v2367 = vmul.f32 1.0, %v2366
  %v2368 = vrcp.pop %v2333
  %v2369 = vmul.f32 1.0, %v2368
  %v2370 = vrcp.pop %v2334
  %v2371 = vmul.f32 1.0, %v2370
  %v2372 = vrcp.pop %v2335
  %v2373 = vmul.f32 1.0, %v2372
  %v2374 = vrcp.pop %v2336
  %v2375 = vmul.f32 1.0, %v2374
  %v2376 = vrcp.pop %v2337
  %v2377 = vmul.f32 1.0, %v2376
  %v2378 = vrcp.pop %v2338
  %v2379 = vmul.f32 1.0, %v2378
  %v2380 = vrcp.pop %v2339
  %v2381 = vmul.f32 1.0, %v2380
  %v2382 = vrcp.pop %v2340
  %v2383 = vmul.f32 1.0, %v2382
  %v2384 = vrcp.pop %v2341
  %v2385 = vmul.f32 1.0, %v2384
  %v2386 = vrcp.pop %v2342
  %v2387 = vmul.f32 1.0, %v2386
  %v2388 = vrcp.pop %v2343
  %v2389 = vmul.f32 1.0, %v2388
  %v2390 = vrcp.pop %v2344
  %v2391 = vmul.f32 1.0, %v2390
  %v2392 = vrcp.pop %v2345
  %v2393 = vmul.f32 1.0, %v2392
  %v2394 = vadd.f32 %v2347, 1.0
  %v2395 = vadd.f32 %v2349, 1.0
  %v2396 = vadd.f32 %v2351, 1.0
  %v2397 = vadd.f32 %v2353, 1.0
  %v2398 = vadd.f32 %v2355, 1.0
  %v2399 = vadd.f32 %v2357, 1.0
  %v2400 = vadd.f32 %v2359, 1.0
  %v2401 = vadd.f32 %v2361, 1.0
  %v2402 = vadd.f32 %v2363, 1.0
  %v2403 = vadd.f32 %v2365, 1.0
  %v2404 = vadd.f32 %v2367, 1.0
  %v2405 = vadd.f32 %v2369, 1.0
  %v2406 = vadd.f32 %v2371, 1.0
  %v2407 = vadd.f32 %v2373, 1.0
  %v2408 = vadd.f32 %v2375, 1.0
  %v2409 = vadd.f32 %v2377, 1.0
  %v2410 = vadd.f32 %v2379, 1.0
  %v2411 = vadd.f32 %v2381, 1.0
  %v2412 = vadd.f32 %v2383, 1.0
  %v2413 = vadd.f32 %v2385, 1.0
  %v2414 = vadd.f32 %v2387, 1.0
  %v2415 = vadd.f32 %v2389, 1.0
  %v2416 = vadd.f32 %v2391, 1.0
  %v2417 = vadd.f32 %v2393, 1.0
  %2419 = vset.pattern.permute.xlu0 0
  %2420 = vperm.xlu0 %2419, %v2394
  %v2421 = vpop.permute.xlu0 %2420
  %2424 = vset.pattern.permute.xlu0 0
  %2425 = vperm.xlu0 %2424, %v2395
  %v2426 = vpop.permute.xlu0 %2425
  %2429 = vset.pattern.permute.xlu0 0
  %2430 = vperm.xlu0 %2429, %v2396
  %v2431 = vpop.permute.xlu0 %2430
  %2434 = vset.pattern.permute.xlu0 0
  %2435 = vperm.xlu0 %2434, %v2397
  %v2436 = vpop.permute.xlu0 %2435
  %2439 = vset.pattern.permute.xlu0 0
  %2440 = vperm.xlu0 %2439, %v2398
  %v2441 = vpop.permute.xlu0 %2440
  %2444 = vset.pattern.permute.xlu0 0
  %2445 = vperm.xlu0 %2444, %v2399
  %v2446 = vpop.permute.xlu0 %2445
  %2449 = vset.pattern.permute.xlu0 0
  %2450 = vperm.xlu0 %2449, %v2400
  %v2451 = vpop.permute.xlu0 %2450
  %2454 = vset.pattern.permute.xlu0 0
  %2455 = vperm.xlu0 %2454, %v2401
  %v2456 = vpop.permute.xlu0 %2455
  %2459 = vset.pattern.permute.xlu0 0
  %2460 = vperm.xlu0 %2459, %v2402
  %v2461 = vpop.permute.xlu0 %2460
  %2464 = vset.pattern.permute.xlu0 0
  %2465 = vperm.xlu0 %2464, %v2403
  %v2466 = vpop.permute.xlu0 %2465
  %2469 = vset.pattern.permute.xlu0 0
  %2470 = vperm.xlu0 %2469, %v2404
  %v2471 = vpop.permute.xlu0 %2470
  %2474 = vset.pattern.permute.xlu0 0
  %2475 = vperm.xlu0 %2474, %v2405
  %v2476 = vpop.permute.xlu0 %2475
  %2479 = vset.pattern.permute.xlu0 0
  %2480 = vperm.xlu0 %2479, %v2406
  %v2481 = vpop.permute.xlu0 %2480
  %2484 = vset.pattern.permute.xlu0 0
  %2485 = vperm.xlu0 %2484, %v2407
  %v2486 = vpop.permute.xlu0 %2485
  %2489 = vset.pattern.permute.xlu0 0
  %2490 = vperm.xlu0 %2489, %v2408
  %v2491 = vpop.permute.xlu0 %2490
  %2494 = vset.pattern.permute.xlu0 0
  %2495 = vperm.xlu0 %2494, %v2409
  %v2496 = vpop.permute.xlu0 %2495
  %2499 = vset.pattern.permute.xlu0 0
  %2500 = vperm.xlu0 %2499, %v2410
  %v2501 = vpop.permute.xlu0 %2500
  %2504 = vset.pattern.permute.xlu0 0
  %2505 = vperm.xlu0 %2504, %v2411
  %v2506 = vpop.permute.xlu0 %2505
  %2509 = vset.pattern.permute.xlu0 0
  %2510 = vperm.xlu0 %2509, %v2412
  %v2511 = vpop.permute.xlu0 %2510
  %2514 = vset.pattern.permute.xlu0 0
  %2515 = vperm.xlu0 %2514, %v2413
  %v2516 = vpop.permute.xlu0 %2515
  %2519 = vset.pattern.permute.xlu0 0
  %2520 = vperm.xlu0 %2519, %v2414
  %v2521 = vpop.permute.xlu0 %2520
  %2524 = vset.pattern.permute.xlu0 0
  %2525 = vperm.xlu0 %2524, %v2415
  %v2526 = vpop.permute.xlu0 %2525
  %2529 = vset.pattern.permute.xlu0 0
  %2530 = vperm.xlu0 %2529, %v2416
  %v2531 = vpop.permute.xlu0 %2530
  %2534 = vset.pattern.permute.xlu0 0
  %2535 = vperm.xlu0 %2534, %v2417
  %v2536 = vpop.permute.xlu0 %2535
  %v2538 = vmul.f32 %v1288, %v2421
  %v2539 = vmul.f32 %v1289, %v2421
  %v2540 = vmul.f32 %v1290, %v2426
  %v2541 = vmul.f32 %v1291, %v2426
  %v2542 = vmul.f32 %v1292, %v2431
  %v2543 = vmul.f32 %v1293, %v2431
  %v2544 = vmul.f32 %v1294, %v2436
  %v2545 = vmul.f32 %v1295, %v2436
  %v2546 = vmul.f32 %v1296, %v2441
  %v2547 = vmul.f32 %v1297, %v2441
  %v2548 = vmul.f32 %v1298, %v2446
  %v2549 = vmul.f32 %v1299, %v2446
  %v2550 = vmul.f32 %v1300, %v2451
  %v2551 = vmul.f32 %v1301, %v2451
  %v2552 = vmul.f32 %v1302, %v2456
  %v2553 = vmul.f32 %v1303, %v2456
  %v2554 = vmul.f32 %v1304, %v2461
  %v2555 = vmul.f32 %v1305, %v2461
  %v2556 = vmul.f32 %v1306, %v2466
  %v2557 = vmul.f32 %v1307, %v2466
  %v2558 = vmul.f32 %v1308, %v2471
  %v2559 = vmul.f32 %v1309, %v2471
  %v2560 = vmul.f32 %v1310, %v2476
  %v2561 = vmul.f32 %v1311, %v2476
  %v2562 = vmul.f32 %v1312, %v2481
  %v2563 = vmul.f32 %v1313, %v2481
  %v2564 = vmul.f32 %v1314, %v2486
  %v2565 = vmul.f32 %v1315, %v2486
  %v2566 = vmul.f32 %v1316, %v2491
  %v2567 = vmul.f32 %v1317, %v2491
  %v2568 = vmul.f32 %v1318, %v2496
  %v2569 = vmul.f32 %v1319, %v2496
  %v2570 = vmul.f32 %v1320, %v2501
  %v2571 = vmul.f32 %v1321, %v2501
  %v2572 = vmul.f32 %v1322, %v2506
  %v2573 = vmul.f32 %v1323, %v2506
  %v2574 = vmul.f32 %v1324, %v2511
  %v2575 = vmul.f32 %v1325, %v2511
  %v2576 = vmul.f32 %v1326, %v2516
  %v2577 = vmul.f32 %v1327, %v2516
  %v2578 = vmul.f32 %v1328, %v2521
  %v2579 = vmul.f32 %v1329, %v2521
  %v2580 = vmul.f32 %v1330, %v2526
  %v2581 = vmul.f32 %v1331, %v2526
  %v2582 = vmul.f32 %v1332, %v2531
  %v2583 = vmul.f32 %v1333, %v2531
  %v2584 = vmul.f32 %v1334, %v2536
  %v2585 = vmul.f32 %v1335, %v2536
  %2586 = vst [vmem:[#allocation2] sm:$0xff] %v2538
  %2587 = vst [vmem:[#allocation2 + $0x8] sm:$0xff] %v2539
  %2588 = vst [vmem:[#allocation2 + $0x20] sm:$0xff] %v2540
  %2589 = vst [vmem:[#allocation2 + $0x28] sm:$0xff] %v2541
  %2590 = vst [vmem:[#allocation2 + $0x40] sm:$0xff] %v2542
  %2591 = vst [vmem:[#allocation2 + $0x48] sm:$0xff] %v2543
  %2592 = vst [vmem:[#allocation2 + $0x60] sm:$0xff] %v2544
  %2593 = vst [vmem:[#allocation2 + $0x68] sm:$0xff] %v2545
  %2594 = vst [vmem:[#allocation2 + $0x80] sm:$0xff] %v2546
  %2595 = vst [vmem:[#allocation2 + $0x88] sm:$0xff] %v2547
  %2596 = vst [vmem:[#allocation2 + $0xa0] sm:$0xff] %v2548
  %2597 = vst [vmem:[#allocation2 + $0xa8] sm:$0xff] %v2549
  %2598 = vst [vmem:[#allocation2 + $0xc0] sm:$0xff] %v2550
  %2599 = vst [vmem:[#allocation2 + $0xc8] sm:$0xff] %v2551
  %2600 = vst [vmem:[#allocation2 + $0xe0] sm:$0xff] %v2552
  %2601 = vst [vmem:[#allocation2 + $0xe8] sm:$0xff] %v2553
  %2602 = vst [vmem:[#allocation2 + $0x100] sm:$0xff] %v2554
  %2603 = vst [vmem:[#allocation2 + $0x108] sm:$0xff] %v2555
  %2604 = vst [vmem:[#allocation2 + $0x120] sm:$0xff] %v2556
  %2605 = vst [vmem:[#allocation2 + $0x128] sm:$0xff] %v2557
  %2606 = vst [vmem:[#allocation2 + $0x140] sm:$0xff] %v2558
  %2607 = vst [vmem:[#allocation2 + $0x148] sm:$0xff] %v2559
  %2608 = vst [vmem:[#allocation2 + $0x160] sm:$0xff] %v2560
  %2609 = vst [vmem:[#allocation2 + $0x168] sm:$0xff] %v2561
  %2610 = vst [vmem:[#allocation2 + $0x180] sm:$0xff] %v2562
  %2611 = vst [vmem:[#allocation2 + $0x188] sm:$0xff] %v2563
  %2612 = vst [vmem:[#allocation2 + $0x1a0] sm:$0xff] %v2564
  %2613 = vst [vmem:[#allocation2 + $0x1a8] sm:$0xff] %v2565
  %2614 = vst [vmem:[#allocation2 + $0x1c0] sm:$0xff] %v2566
  %2615 = vst [vmem:[#allocation2 + $0x1c8] sm:$0xff] %v2567
  %2616 = vst [vmem:[#allocation2 + $0x1e0] sm:$0xff] %v2568
  %2617 = vst [vmem:[#allocation2 + $0x1e8] sm:$0xff] %v2569
  %2618 = vst [vmem:[#allocation2 + $0x200] sm:$0xff] %v2570
  %2619 = vst [vmem:[#allocation2 + $0x208] sm:$0xff] %v2571
  %2620 = vst [vmem:[#allocation2 + $0x220] sm:$0xff] %v2572
  %2621 = vst [vmem:[#allocation2 + $0x228] sm:$0xff] %v2573
  %2622 = vst [vmem:[#allocation2 + $0x240] sm:$0xff] %v2574
  %2623 = vst [vmem:[#allocation2 + $0x248] sm:$0xff] %v2575
  %2624 = vst [vmem:[#allocation2 + $0x260] sm:$0xff] %v2576
  %2625 = vst [vmem:[#allocation2 + $0x268] sm:$0xff] %v2577
  %2626 = vst [vmem:[#allocation2 + $0x280] sm:$0xff] %v2578
  %2627 = vst [vmem:[#allocation2 + $0x288] sm:$0xff] %v2579
  %2628 = vst [vmem:[#allocation2 + $0x2a0] sm:$0xff] %v2580
  %2629 = vst [vmem:[#allocation2 + $0x2a8] sm:$0xff] %v2581
  %2630 = vst [vmem:[#allocation2 + $0x2c0] sm:$0xff] %v2582
  %2631 = vst [vmem:[#allocation2 + $0x2c8] sm:$0xff] %v2583
  %2632 = vst [vmem:[#allocation2 + $0x2e0] sm:$0xff] %v2584
  %2633 = vst [vmem:[#allocation2 + $0x2e8] sm:$0xff] %v2585
  %v2634 = vld [vmem:[#allocation2 + $0x10] sm:$0xff]
  %v2635 = vld [vmem:[#allocation2 + $0x18] sm:$0xff]
  %v2636 = vld [vmem:[#allocation2 + $0x30] sm:$0xff]
  %v2637 = vld [vmem:[#allocation2 + $0x38] sm:$0xff]
  %v2638 = vld [vmem:[#allocation2 + $0x50] sm:$0xff]
  %v2639 = vld [vmem:[#allocation2 + $0x58] sm:$0xff]
  %v2640 = vld [vmem:[#allocation2 + $0x70] sm:$0xff]
  %v2641 = vld [vmem:[#allocation2 + $0x78] sm:$0xff]
  %v2642 = vld [vmem:[#allocation2 + $0x90] sm:$0xff]
  %v2643 = vld [vmem:[#allocation2 + $0x98] sm:$0xff]
  %v2644 = vld [vmem:[#allocation2 + $0xb0] sm:$0xff]
  %v2645 = vld [vmem:[#allocation2 + $0xb8] sm:$0xff]
  %v2646 = vld [vmem:[#allocation2 + $0xd0] sm:$0xff]
  %v2647 = vld [vmem:[#allocation2 + $0xd8] sm:$0xff]
  %v2648 = vld [vmem:[#allocation2 + $0xf0] sm:$0xff]
  %v2649 = vld [vmem:[#allocation2 + $0xf8] sm:$0xff]
  %v2650 = vld [vmem:[#allocation2 + $0x110] sm:$0xff]
  %v2651 = vld [vmem:[#allocation2 + $0x118] sm:$0xff]
  %v2652 = vld [vmem:[#allocation2 + $0x130] sm:$0xff]
  %v2653 = vld [vmem:[#allocation2 + $0x138] sm:$0xff]
  %v2654 = vld [vmem:[#allocation2 + $0x150] sm:$0xff]
  %v2655 = vld [vmem:[#allocation2 + $0x158] sm:$0xff]
  %v2656 = vld [vmem:[#allocation2 + $0x170] sm:$0xff]
  %v2657 = vld [vmem:[#allocation2 + $0x178] sm:$0xff]
  %v2658 = vld [vmem:[#allocation2 + $0x190] sm:$0xff]
  %v2659 = vld [vmem:[#allocation2 + $0x198] sm:$0xff]
  %v2660 = vld [vmem:[#allocation2 + $0x1b0] sm:$0xff]
  %v2661 = vld [vmem:[#allocation2 + $0x1b8] sm:$0xff]
  %v2662 = vld [vmem:[#allocation2 + $0x1d0] sm:$0xff]
  %v2663 = vld [vmem:[#allocation2 + $0x1d8] sm:$0xff]
  %v2664 = vld [vmem:[#allocation2 + $0x1f0] sm:$0xff]
  %v2665 = vld [vmem:[#allocation2 + $0x1f8] sm:$0xff]
  %v2666 = vld [vmem:[#allocation2 + $0x210] sm:$0xff]
  %v2667 = vld [vmem:[#allocation2 + $0x218] sm:$0xff]
  %v2668 = vld [vmem:[#allocation2 + $0x230] sm:$0xff]
  %v2669 = vld [vmem:[#allocation2 + $0x238] sm:$0xff]
  %v2670 = vld [vmem:[#allocation2 + $0x250] sm:$0xff]
  %v2671 = vld [vmem:[#allocation2 + $0x258] sm:$0xff]
  %v2672 = vld [vmem:[#allocation2 + $0x270] sm:$0xff]
  %v2673 = vld [vmem:[#allocation2 + $0x278] sm:$0xff]
  %v2674 = vld [vmem:[#allocation2 + $0x290] sm:$0xff]
  %v2675 = vld [vmem:[#allocation2 + $0x298] sm:$0xff]
  %v2676 = vld [vmem:[#allocation2 + $0x2b0] sm:$0xff]
  %v2677 = vld [vmem:[#allocation2 + $0x2b8] sm:$0xff]
  %v2678 = vld [vmem:[#allocation2 + $0x2d0] sm:$0xff]
  %v2679 = vld [vmem:[#allocation2 + $0x2d8] sm:$0xff]
  %v2680 = vld [vmem:[#allocation2 + $0x2f0] sm:$0xff]
  %v2681 = vld [vmem:[#allocation2 + $0x2f8] sm:$0xff]
  %2682 = vset.pattern.permute.xlu0 1
  %2683 = vperm.xlu0 %2682, %v2394
  %v2684 = vpop.permute.xlu0 %2683
  %2686 = vset.pattern.permute.xlu0 1
  %2687 = vperm.xlu0 %2686, %v2395
  %v2688 = vpop.permute.xlu0 %2687
  %2690 = vset.pattern.permute.xlu0 1
  %2691 = vperm.xlu0 %2690, %v2396
  %v2692 = vpop.permute.xlu0 %2691
  %2694 = vset.pattern.permute.xlu0 1
  %2695 = vperm.xlu0 %2694, %v2397
  %v2696 = vpop.permute.xlu0 %2695
  %2698 = vset.pattern.permute.xlu0 1
  %2699 = vperm.xlu0 %2698, %v2398
  %v2700 = vpop.permute.xlu0 %2699
  %2702 = vset.pattern.permute.xlu0 1
  %2703 = vperm.xlu0 %2702, %v2399
  %v2704 = vpop.permute.xlu0 %2703
  %2706 = vset.pattern.permute.xlu0 1
  %2707 = vperm.xlu0 %2706, %v2400
  %v2708 = vpop.permute.xlu0 %2707
  %2710 = vset.pattern.permute.xlu0 1
  %2711 = vperm.xlu0 %2710, %v2401
  %v2712 = vpop.permute.xlu0 %2711
  %2714 = vset.pattern.permute.xlu0 1
  %2715 = vperm.xlu0 %2714, %v2402
  %v2716 = vpop.permute.xlu0 %2715
  %2718 = vset.pattern.permute.xlu0 1
  %2719 = vperm.xlu0 %2718, %v2403
  %v2720 = vpop.permute.xlu0 %2719
  %2722 = vset.pattern.permute.xlu0 1
  %2723 = vperm.xlu0 %2722, %v2404
  %v2724 = vpop.permute.xlu0 %2723
  %2726 = vset.pattern.permute.xlu0 1
  %2727 = vperm.xlu0 %2726, %v2405
  %v2728 = vpop.permute.xlu0 %2727
  %2730 = vset.pattern.permute.xlu0 1
  %2731 = vperm.xlu0 %2730, %v2406
  %v2732 = vpop.permute.xlu0 %2731
  %2734 = vset.pattern.permute.xlu0 1
  %2735 = vperm.xlu0 %2734, %v2407
  %v2736 = vpop.permute.xlu0 %2735
  %2738 = vset.pattern.permute.xlu0 1
  %2739 = vperm.xlu0 %2738, %v2408
  %v2740 = vpop.permute.xlu0 %2739
  %2742 = vset.pattern.permute.xlu0 1
  %2743 = vperm.xlu0 %2742, %v2409
  %v2744 = vpop.permute.xlu0 %2743
  %2746 = vset.pattern.permute.xlu0 1
  %2747 = vperm.xlu0 %2746, %v2410
  %v2748 = vpop.permute.xlu0 %2747
  %2750 = vset.pattern.permute.xlu0 1
  %2751 = vperm.xlu0 %2750, %v2411
  %v2752 = vpop.permute.xlu0 %2751
  %2754 = vset.pattern.permute.xlu0 1
  %2755 = vperm.xlu0 %2754, %v2412
  %v2756 = vpop.permute.xlu0 %2755
  %2758 = vset.pattern.permute.xlu0 1
  %2759 = vperm.xlu0 %2758, %v2413
  %v2760 = vpop.permute.xlu0 %2759
  %2762 = vset.pattern.permute.xlu0 1
  %2763 = vperm.xlu0 %2762, %v2414
  %v2764 = vpop.permute.xlu0 %2763
  %2766 = vset.pattern.permute.xlu0 1
  %2767 = vperm.xlu0 %2766, %v2415
  %v2768 = vpop.permute.xlu0 %2767
  %2770 = vset.pattern.permute.xlu0 1
  %2771 = vperm.xlu0 %2770, %v2416
  %v2772 = vpop.permute.xlu0 %2771
  %2774 = vset.pattern.permute.xlu0 1
  %2775 = vperm.xlu0 %2774, %v2417
  %v2776 = vpop.permute.xlu0 %2775
  %v2778 = vmul.f32 %v2634, %v2684
  %v2779 = vmul.f32 %v2635, %v2684
  %v2780 = vmul.f32 %v2636, %v2688
  %v2781 = vmul.f32 %v2637, %v2688
  %v2782 = vmul.f32 %v2638, %v2692
  %v2783 = vmul.f32 %v2639, %v2692
  %v2784 = vmul.f32 %v2640, %v2696
  %v2785 = vmul.f32 %v2641, %v2696
  %v2786 = vmul.f32 %v2642, %v2700
  %v2787 = vmul.f32 %v2643, %v2700
  %v2788 = vmul.f32 %v2644, %v2704
  %v2789 = vmul.f32 %v2645, %v2704
  %v2790 = vmul.f32 %v2646, %v2708
  %v2791 = vmul.f32 %v2647, %v2708
  %v2792 = vmul.f32 %v2648, %v2712
  %v2793 = vmul.f32 %v2649, %v2712
  %v2794 = vmul.f32 %v2650, %v2716
  %v2795 = vmul.f32 %v2651, %v2716
  %v2796 = vmul.f32 %v2652, %v2720
  %v2797 = vmul.f32 %v2653, %v2720
  %v2798 = vmul.f32 %v2654, %v2724
  %v2799 = vmul.f32 %v2655, %v2724
  %v2800 = vmul.f32 %v2656, %v2728
  %v2801 = vmul.f32 %v2657, %v2728
  %v2802 = vmul.f32 %v2658, %v2732
  %v2803 = vmul.f32 %v2659, %v2732
  %v2804 = vmul.f32 %v2660, %v2736
  %v2805 = vmul.f32 %v2661, %v2736
  %v2806 = vmul.f32 %v2662, %v2740
  %v2807 = vmul.f32 %v2663, %v2740
  %v2808 = vmul.f32 %v2664, %v2744
  %v2809 = vmul.f32 %v2665, %v2744
  %v2810 = vmul.f32 %v2666, %v2748
  %v2811 = vmul.f32 %v2667, %v2748
  %v2812 = vmul.f32 %v2668, %v2752
  %v2813 = vmul.f32 %v2669, %v2752
  %v2814 = vmul.f32 %v2670, %v2756
  %v2815 = vmul.f32 %v2671, %v2756
  %v2816 = vmul.f32 %v2672, %v2760
  %v2817 = vmul.f32 %v2673, %v2760
  %v2818 = vmul.f32 %v2674, %v2764
  %v2819 = vmul.f32 %v2675, %v2764
  %v2820 = vmul.f32 %v2676, %v2768
  %v2821 = vmul.f32 %v2677, %v2768
  %v2822 = vmul.f32 %v2678, %v2772
  %v2823 = vmul.f32 %v2679, %v2772
  %v2824 = vmul.f32 %v2680, %v2776
  %v2825 = vmul.f32 %v2681, %v2776
  %2826 = vst [vmem:[#allocation2 + $0x10] sm:$0xff] %v2778
  %2827 = vst [vmem:[#allocation2 + $0x18] sm:$0xff] %v2779
  %2828 = vst [vmem:[#allocation2 + $0x30] sm:$0xff] %v2780
  %2829 = vst [vmem:[#allocation2 + $0x38] sm:$0xff] %v2781
  %2830 = vst [vmem:[#allocation2 + $0x50] sm:$0xff] %v2782
  %2831 = vst [vmem:[#allocation2 + $0x58] sm:$0xff] %v2783
  %2832 = vst [vmem:[#allocation2 + $0x70] sm:$0xff] %v2784
  %2833 = vst [vmem:[#allocation2 + $0x78] sm:$0xff] %v2785
  %2834 = vst [vmem:[#allocation2 + $0x90] sm:$0xff] %v2786
  %2835 = vst [vmem:[#allocation2 + $0x98] sm:$0xff] %v2787
  %2836 = vst [vmem:[#allocation2 + $0xb0] sm:$0xff] %v2788
  %2837 = vst [vmem:[#allocation2 + $0xb8] sm:$0xff] %v2789
  %2838 = vst [vmem:[#allocation2 + $0xd0] sm:$0xff] %v2790
  %2839 = vst [vmem:[#allocation2 + $0xd8] sm:$0xff] %v2791
  %2840 = vst [vmem:[#allocation2 + $0xf0] sm:$0xff] %v2792
  %2841 = vst [vmem:[#allocation2 + $0xf8] sm:$0xff] %v2793
  %2842 = vst [vmem:[#allocation2 + $0x110] sm:$0xff] %v2794
  %2843 = vst [vmem:[#allocation2 + $0x118] sm:$0xff] %v2795
  %2844 = vst [vmem:[#allocation2 + $0x130] sm:$0xff] %v2796
  %2845 = vst [vmem:[#allocation2 + $0x138] sm:$0xff] %v2797
  %2846 = vst [vmem:[#allocation2 + $0x150] sm:$0xff] %v2798
  %2847 = vst [vmem:[#allocation2 + $0x158] sm:$0xff] %v2799
  %2848 = vst [vmem:[#allocation2 + $0x170] sm:$0xff] %v2800
  %2849 = vst [vmem:[#allocation2 + $0x178] sm:$0xff] %v2801
  %2850 = vst [vmem:[#allocation2 + $0x190] sm:$0xff] %v2802
  %2851 = vst [vmem:[#allocation2 + $0x198] sm:$0xff] %v2803
  %2852 = vst [vmem:[#allocation2 + $0x1b0] sm:$0xff] %v2804
  %2853 = vst [vmem:[#allocation2 + $0x1b8] sm:$0xff] %v2805
  %2854 = vst [vmem:[#allocation2 + $0x1d0] sm:$0xff] %v2806
  %2855 = vst [vmem:[#allocation2 + $0x1d8] sm:$0xff] %v2807
  %2856 = vst [vmem:[#allocation2 + $0x1f0] sm:$0xff] %v2808
  %2857 = vst [vmem:[#allocation2 + $0x1f8] sm:$0xff] %v2809
  %2858 = vst [vmem:[#allocation2 + $0x210] sm:$0xff] %v2810
  %2859 = vst [vmem:[#allocation2 + $0x218] sm:$0xff] %v2811
  %2860 = vst [vmem:[#allocation2 + $0x230] sm:$0xff] %v2812
  %2861 = vst [vmem:[#allocation2 + $0x238] sm:$0xff] %v2813
  %2862 = vst [vmem:[#allocation2 + $0x250] sm:$0xff] %v2814
  %2863 = vst [vmem:[#allocation2 + $0x258] sm:$0xff] %v2815
  %2864 = vst [vmem:[#allocation2 + $0x270] sm:$0xff] %v2816
  %2865 = vst [vmem:[#allocation2 + $0x278] sm:$0xff] %v2817
  %2866 = vst [vmem:[#allocation2 + $0x290] sm:$0xff] %v2818
  %2867 = vst [vmem:[#allocation2 + $0x298] sm:$0xff] %v2819
  %2868 = vst [vmem:[#allocation2 + $0x2b0] sm:$0xff] %v2820
  %2869 = vst [vmem:[#allocation2 + $0x2b8] sm:$0xff] %v2821
  %2870 = vst [vmem:[#allocation2 + $0x2d0] sm:$0xff] %v2822
  %2871 = vst [vmem:[#allocation2 + $0x2d8] sm:$0xff] %v2823
  %2872 = vst [vmem:[#allocation2 + $0x2f0] sm:$0xff] %v2824
  %2873 = vst [vmem:[#allocation2 + $0x2f8] sm:$0xff] %v2825
  %v2874 = vld [vmem:[%s6] sm:$0xff]
  %v2875 = vld [vmem:[%s6 + $0x8] sm:$0xff]
  %v2876 = vld [vmem:[%s6 + $0x10] sm:$0xff]
  %v2877 = vld [vmem:[%s6 + $0x18] sm:$0xff]
  %v2878 = vld [vmem:[%s6 + $0x20] sm:$0xff]
  %v2879 = vld [vmem:[%s6 + $0x28] sm:$0xff]
  %v2880 = vld [vmem:[%s6 + $0x30] sm:$0xff]
  %v2881 = vld [vmem:[%s6 + $0x38] sm:$0xff]
  %v2882 = vld [vmem:[%s6 + $0x40] sm:$0xff]
  %v2883 = vld [vmem:[%s6 + $0x48] sm:$0xff]
  %v2884 = vld [vmem:[%s6 + $0x50] sm:$0xff]
  %v2885 = vld [vmem:[%s6 + $0x58] sm:$0xff]
  %v2886 = vld [vmem:[%s6 + $0x60] sm:$0xff]
  %v2887 = vld [vmem:[%s6 + $0x68] sm:$0xff]
  %v2888 = vld [vmem:[%s6 + $0x70] sm:$0xff]
  %v2889 = vld [vmem:[%s6 + $0x78] sm:$0xff]
  %v2890 = vld [vmem:[#allocation2] sm:$0xff]
  %v2891 = vld [vmem:[#allocation2 + $0x8] sm:$0xff]
  %v2892 = vld [vmem:[#allocation2 + $0x10] sm:$0xff]
  %v2893 = vld [vmem:[#allocation2 + $0x18] sm:$0xff]
  %v2894 = vld [vmem:[#allocation2 + $0x20] sm:$0xff]
  %v2895 = vld [vmem:[#allocation2 + $0x28] sm:$0xff]
  %v2896 = vld [vmem:[#allocation2 + $0x30] sm:$0xff]
  %v2897 = vld [vmem:[#allocation2 + $0x38] sm:$0xff]
  %v2898 = vld [vmem:[#allocation2 + $0x40] sm:$0xff]
  %v2899 = vld [vmem:[#allocation2 + $0x48] sm:$0xff]
  %v2900 = vld [vmem:[#allocation2 + $0x50] sm:$0xff]
  %v2901 = vld [vmem:[#allocation2 + $0x58] sm:$0xff]
  %v2902 = vld [vmem:[#allocation2 + $0x60] sm:$0xff]
  %v2903 = vld [vmem:[#allocation2 + $0x68] sm:$0xff]
  %v2904 = vld [vmem:[#allocation2 + $0x70] sm:$0xff]
  %v2905 = vld [vmem:[#allocation2 + $0x78] sm:$0xff]
  %v2906 = vld [vmem:[#allocation2 + $0x80] sm:$0xff]
  %v2907 = vld [vmem:[#allocation2 + $0x88] sm:$0xff]
  %v2908 = vld [vmem:[#allocation2 + $0x90] sm:$0xff]
  %v2909 = vld [vmem:[#allocation2 + $0x98] sm:$0xff]
  %v2910 = vld [vmem:[#allocation2 + $0xa0] sm:$0xff]
  %v2911 = vld [vmem:[#allocation2 + $0xa8] sm:$0xff]
  %v2912 = vld [vmem:[#allocation2 + $0xb0] sm:$0xff]
  %v2913 = vld [vmem:[#allocation2 + $0xb8] sm:$0xff]
  %v2914 = vld [vmem:[#allocation2 + $0xc0] sm:$0xff]
  %v2915 = vld [vmem:[#allocation2 + $0xc8] sm:$0xff]
  %v2916 = vld [vmem:[#allocation2 + $0xd0] sm:$0xff]
  %v2917 = vld [vmem:[#allocation2 + $0xd8] sm:$0xff]
  %v2918 = vld [vmem:[#allocation2 + $0xe0] sm:$0xff]
  %v2919 = vld [vmem:[#allocation2 + $0xe8] sm:$0xff]
  %v2920 = vld [vmem:[#allocation2 + $0xf0] sm:$0xff]
  %v2921 = vld [vmem:[#allocation2 + $0xf8] sm:$0xff]
  %v2922 = vld [vmem:[#allocation2 + $0x100] sm:$0xff]
  %v2923 = vld [vmem:[#allocation2 + $0x108] sm:$0xff]
  %v2924 = vld [vmem:[#allocation2 + $0x110] sm:$0xff]
  %v2925 = vld [vmem:[#allocation2 + $0x118] sm:$0xff]
  %v2926 = vld [vmem:[#allocation2 + $0x120] sm:$0xff]
  %v2927 = vld [vmem:[#allocation2 + $0x128] sm:$0xff]
  %v2928 = vld [vmem:[#allocation2 + $0x130] sm:$0xff]
  %v2929 = vld [vmem:[#allocation2 + $0x138] sm:$0xff]
  %v2930 = vld [vmem:[#allocation2 + $0x140] sm:$0xff]
  %v2931 = vld [vmem:[#allocation2 + $0x148] sm:$0xff]
  %v2932 = vld [vmem:[#allocation2 + $0x150] sm:$0xff]
  %v2933 = vld [vmem:[#allocation2 + $0x158] sm:$0xff]
  %v2934 = vld [vmem:[#allocation2 + $0x160] sm:$0xff]
  %v2935 = vld [vmem:[#allocation2 + $0x168] sm:$0xff]
  %v2936 = vld [vmem:[#allocation2 + $0x170] sm:$0xff]
  %v2937 = vld [vmem:[#allocation2 + $0x178] sm:$0xff]
  %v2938 = vld [vmem:[#allocation2 + $0x180] sm:$0xff]
  %v2939 = vld [vmem:[#allocation2 + $0x188] sm:$0xff]
  %v2940 = vld [vmem:[#allocation2 + $0x190] sm:$0xff]
  %v2941 = vld [vmem:[#allocation2 + $0x198] sm:$0xff]
  %v2942 = vld [vmem:[#allocation2 + $0x1a0] sm:$0xff]
  %v2943 = vld [vmem:[#allocation2 + $0x1a8] sm:$0xff]
  %v2944 = vld [vmem:[#allocation2 + $0x1b0] sm:$0xff]
  %v2945 = vld [vmem:[#allocation2 + $0x1b8] sm:$0xff]
  %v2946 = vld [vmem:[#allocation2 + $0x1c0] sm:$0xff]
  %v2947 = vld [vmem:[#allocation2 + $0x1c8] sm:$0xff]
  %v2948 = vld [vmem:[#allocation2 + $0x1d0] sm:$0xff]
  %v2949 = vld [vmem:[#allocation2 + $0x1d8] sm:$0xff]
  %v2950 = vld [vmem:[#allocation2 + $0x1e0] sm:$0xff]
  %v2951 = vld [vmem:[#allocation2 + $0x1e8] sm:$0xff]
  %v2952 = vld [vmem:[#allocation2 + $0x1f0] sm:$0xff]
  %v2953 = vld [vmem:[#allocation2 + $0x1f8] sm:$0xff]
  %v2954 = vld [vmem:[#allocation2 + $0x200] sm:$0xff]
  %v2955 = vld [vmem:[#allocation2 + $0x208] sm:$0xff]
  %v2956 = vld [vmem:[#allocation2 + $0x210] sm:$0xff]
  %v2957 = vld [vmem:[#allocation2 + $0x218] sm:$0xff]
  %v2958 = vld [vmem:[#allocation2 + $0x220] sm:$0xff]
  %v2959 = vld [vmem:[#allocation2 + $0x228] sm:$0xff]
  %v2960 = vld [vmem:[#allocation2 + $0x230] sm:$0xff]
  %v2961 = vld [vmem:[#allocation2 + $0x238] sm:$0xff]
  %v2962 = vld [vmem:[#allocation2 + $0x240] sm:$0xff]
  %v2963 = vld [vmem:[#allocation2 + $0x248] sm:$0xff]
  %v2964 = vld [vmem:[#allocation2 + $0x250] sm:$0xff]
  %v2965 = vld [vmem:[#allocation2 + $0x258] sm:$0xff]
  %v2966 = vld [vmem:[#allocation2 + $0x260] sm:$0xff]
  %v2967 = vld [vmem:[#allocation2 + $0x268] sm:$0xff]
  %v2968 = vld [vmem:[#allocation2 + $0x270] sm:$0xff]
  %v2969 = vld [vmem:[#allocation2 + $0x278] sm:$0xff]
  %v2970 = vld [vmem:[#allocation2 + $0x280] sm:$0xff]
  %v2971 = vld [vmem:[#allocation2 + $0x288] sm:$0xff]
  %v2972 = vld [vmem:[#allocation2 + $0x290] sm:$0xff]
  %v2973 = vld [vmem:[#allocation2 + $0x298] sm:$0xff]
  %v2974 = vld [vmem:[#allocation2 + $0x2a0] sm:$0xff]
  %v2975 = vld [vmem:[#allocation2 + $0x2a8] sm:$0xff]
  %v2976 = vld [vmem:[#allocation2 + $0x2b0] sm:$0xff]
  %v2977 = vld [vmem:[#allocation2 + $0x2b8] sm:$0xff]
  %v2978 = vld [vmem:[#allocation2 + $0x2c0] sm:$0xff]
  %v2979 = vld [vmem:[#allocation2 + $0x2c8] sm:$0xff]
  %v2980 = vld [vmem:[#allocation2 + $0x2d0] sm:$0xff]
  %v2981 = vld [vmem:[#allocation2 + $0x2d8] sm:$0xff]
  %v2982 = vld [vmem:[#allocation2 + $0x2e0] sm:$0xff]
  %v2983 = vld [vmem:[#allocation2 + $0x2e8] sm:$0xff]
  %v2984 = vld [vmem:[#allocation2 + $0x2f0] sm:$0xff]
  %v2985 = vld [vmem:[#allocation2 + $0x2f8] sm:$0xff]
  %v2987 = vsel %vm1674, %v2875, 0
  %v2990 = vsel %vm1674, %v2877, 0
  %v2993 = vsel %vm1674, %v2879, 0
  %v2996 = vsel %vm1674, %v2881, 0
  %v2999 = vsel %vm1674, %v2883, 0
  %v3002 = vsel %vm1674, %v2885, 0
  %v3005 = vsel %vm1674, %v2887, 0
  %v3008 = vsel %vm1674, %v2889, 0
  %3010 = vmatprep.subr.mxu0 %v2891
  %3011 = vmatpush1.msra.mxu0 %v2890
  %3012 = vmatprep.subr.mxu0 %v2895
  %3013 = vmatpush1.msra.mxu0 %v2894
  %3014 = vmatprep.subr.mxu0 %v2899
  %3015 = vmatpush1.msra.mxu0 %v2898
  %3016 = vmatprep.subr.mxu0 %v2903
  %3017 = vmatpush1.msra.mxu0 %v2902
  %3018 = vmatprep.subr.mxu0 %v2907
  %3019 = vmatpush1.msra.mxu0 %v2906
  %3020 = vmatprep.subr.mxu0 %v2911
  %3021 = vmatpush1.msra.mxu0 %v2910
  %3022 = vmatprep.subr.mxu0 %v2915
  %3023 = vmatpush1.msra.mxu0 %v2914
  %3024 = vmatprep.subr.mxu0 %v2919
  %3025 = vmatpush1.msra.mxu0 %v2918
  %3026 = vmatprep.subr.mxu0 %v2923
  %3027 = vmatpush1.msra.mxu0 %v2922
  %3028 = vmatprep.subr.mxu0 %v2927
  %3029 = vmatpush1.msra.mxu0 %v2926
  %3030 = vmatprep.subr.mxu0 %v2931
  %3031 = vmatpush1.msra.mxu0 %v2930
  %3032 = vmatprep.subr.mxu0 %v2935
  %3033 = vmatpush1.msra.mxu0 %v2934
  %3034 = vmatprep.subr.mxu0 %v2939
  %3035 = vmatpush1.msra.mxu0 %v2938
  %3036 = vmatprep.subr.mxu0 %v2943
  %3037 = vmatpush1.msra.mxu0 %v2942
  %3038 = vmatprep.subr.mxu0 %v2947
  %3039 = vmatpush1.msra.mxu0 %v2946
  %3040 = vmatprep.subr.mxu0 %v2951
  %3041 = vmatpush1.msra.mxu0 %v2950
  %3042 = vmatprep.subr.mxu0 %v2955
  %3043 = vmatpush1.msra.mxu0 %v2954
  %3044 = vmatprep.subr.mxu0 %v2959
  %3045 = vmatpush1.msra.mxu0 %v2958
  %3046 = vmatprep.subr.mxu0 %v2963
  %3047 = vmatpush1.msra.mxu0 %v2962
  %3048 = vmatprep.subr.mxu0 %v2967
  %3049 = vmatpush1.msra.mxu0 %v2966
  %3050 = vmatprep.subr.mxu0 %v2971
  %3051 = vmatpush1.msra.mxu0 %v2970
  %3052 = vmatprep.subr.mxu0 %v2975
  %3053 = vmatpush1.msra.mxu0 %v2974
  %3054 = vmatprep.subr.mxu0 %v2979
  %3055 = vmatpush1.msra.mxu0 %v2978
  %3056 = vmatprep.subr.mxu0 %v2983
  %3057 = vmatpush1.msra.mxu0 %v2982
  %3058 = vmatprep.subr.mxu0 0.0
  %3059 = vmatpush1.msra.mxu0 0.0
  %3060 = vmatprep.subr.mxu0 0.0
  %3061 = vmatpush1.msra.mxu0 0.0
  %3062 = vmatprep.subr.mxu0 0.0
  %3063 = vmatpush1.msra.mxu0 0.0
  %3064 = vmatprep.subr.mxu0 0.0
  %3065 = vmatpush1.msra.mxu0 0.0
  %3066 = vmatprep.subr.mxu0 0.0
  %3067 = vmatpush1.msra.mxu0 0.0
  %3068 = vmatprep.subr.mxu0 0.0
  %3069 = vmatpush1.msra.mxu0 0.0
  %3070 = vmatprep.subr.mxu0 0.0
  %3071 = vmatpush1.msra.mxu0 0.0
  %3072 = vmatprep.subr.mxu0 0.0
  %3073 = vmatpush1.msra.mxu0 0.0
  %3074 = vmatprep.mubr.f32.mxu0 %v2987
  %3075 = vmatmul.mubr.f32.gmra.mrb[0].mxu0 %v2874
  %v3076 = vpop.f32.mrb[0].mxu0
  %v3077 = vadd.f32 0.0, %v3076
  %v3078 = vpop.f32.mrb[0].mxu0
  %v3079 = vadd.f32 0.0, %v3078
  %3080 = vmatprep.mubr.f32.mxu0 %v2990
  %3081 = vmatmul.mubr.f32.gmra.mrb[0].mxu0 %v2876
  %v3082 = vpop.f32.mrb[0].mxu0
  %v3083 = vadd.f32 0.0, %v3082
  %v3084 = vpop.f32.mrb[0].mxu0
  %v3085 = vadd.f32 0.0, %v3084
  %3086 = vmatprep.mubr.f32.mxu0 %v2993
  %3087 = vmatmul.mubr.f32.gmra.mrb[0].mxu0 %v2878
  %v3088 = vpop.f32.mrb[0].mxu0
  %v3089 = vadd.f32 0.0, %v3088
  %v3090 = vpop.f32.mrb[0].mxu0
  %v3091 = vadd.f32 0.0, %v3090
  %3092 = vmatprep.mubr.f32.mxu0 %v2996
  %3093 = vmatmul.mubr.f32.gmra.mrb[0].mxu0 %v2880
  %v3094 = vpop.f32.mrb[0].mxu0
  %v3095 = vadd.f32 0.0, %v3094
  %v3096 = vpop.f32.mrb[0].mxu0
  %v3097 = vadd.f32 0.0, %v3096
  %3098 = vmatprep.mubr.f32.mxu0 %v2999
  %3099 = vmatmul.mubr.f32.gmra.mrb[0].mxu0 %v2882
  %v3100 = vpop.f32.mrb[0].mxu0
  %v3101 = vadd.f32 0.0, %v3100
  %v3102 = vpop.f32.mrb[0].mxu0
  %v3103 = vadd.f32 0.0, %v3102
  %3104 = vmatprep.mubr.f32.mxu0 %v3002
  %3105 = vmatmul.mubr.f32.gmra.mrb[0].mxu0 %v2884
  %v3106 = vpop.f32.mrb[0].mxu0
  %v3107 = vadd.f32 0.0, %v3106
  %v3108 = vpop.f32.mrb[0].mxu0
  %v3109 = vadd.f32 0.0, %v3108
  %3110 = vmatprep.mubr.f32.mxu0 %v3005
  %3111 = vmatmul.mubr.f32.gmra.mrb[0].mxu0 %v2886
  %v3112 = vpop.f32.mrb[0].mxu0
  %v3113 = vadd.f32 0.0, %v3112
  %v3114 = vpop.f32.mrb[0].mxu0
  %v3115 = vadd.f32 0.0, %v3114
  %3116 = vmatprep.mubr.f32.mxu0 %v3008
  %3117 = vmatmul.mubr.f32.gmra.mrb[0].mxu0 %v2888
  %v3118 = vpop.f32.mrb[0].mxu0
  %v3119 = vadd.f32 0.0, %v3118
  %v3120 = vpop.f32.mrb[0].mxu0
  %v3121 = vadd.f32 0.0, %v3120
  %3122 = vdwg.mxu0
  %3123 = vmatprep.subr.mxu0 %v2893
  %3124 = vmatpush1.msra.mxu0 %v2892
  %3125 = vmatprep.subr.mxu0 %v2897
  %3126 = vmatpush1.msra.mxu0 %v2896
  %3127 = vmatprep.subr.mxu0 %v2901
  %3128 = vmatpush1.msra.mxu0 %v2900
  %3129 = vmatprep.subr.mxu0 %v2905
  %3130 = vmatpush1.msra.mxu0 %v2904
  %3131 = vmatprep.subr.mxu0 %v2909
  %3132 = vmatpush1.msra.mxu0 %v2908
  %3133 = vmatprep.subr.mxu0 %v2913
  %3134 = vmatpush1.msra.mxu0 %v2912
  %3135 = vmatprep.subr.mxu0 %v2917
  %3136 = vmatpush1.msra.mxu0 %v2916
  %3137 = vmatprep.subr.mxu0 %v2921
  %3138 = vmatpush1.msra.mxu0 %v2920
  %3139 = vmatprep.subr.mxu0 %v2925
  %3140 = vmatpush1.msra.mxu0 %v2924
  %3141 = vmatprep.subr.mxu0 %v2929
  %3142 = vmatpush1.msra.mxu0 %v2928
  %3143 = vmatprep.subr.mxu0 %v2933
  %3144 = vmatpush1.msra.mxu0 %v2932
  %3145 = vmatprep.subr.mxu0 %v2937
  %3146 = vmatpush1.msra.mxu0 %v2936
  %3147 = vmatprep.subr.mxu0 %v2941
  %3148 = vmatpush1.msra.mxu0 %v2940
  %3149 = vmatprep.subr.mxu0 %v2945
  %3150 = vmatpush1.msra.mxu0 %v2944
  %3151 = vmatprep.subr.mxu0 %v2949
  %3152 = vmatpush1.msra.mxu0 %v2948
  %3153 = vmatprep.subr.mxu0 %v2953
  %3154 = vmatpush1.msra.mxu0 %v2952
  %3155 = vmatprep.subr.mxu0 %v2957
  %3156 = vmatpush1.msra.mxu0 %v2956
  %3157 = vmatprep.subr.mxu0 %v2961
  %3158 = vmatpush1.msra.mxu0 %v2960
  %3159 = vmatprep.subr.mxu0 %v2965
  %3160 = vmatpush1.msra.mxu0 %v2964
  %3161 = vmatprep.subr.mxu0 %v2969
  %3162 = vmatpush1.msra.mxu0 %v2968
  %3163 = vmatprep.subr.mxu0 %v2973
  %3164 = vmatpush1.msra.mxu0 %v2972
  %3165 = vmatprep.subr.mxu0 %v2977
  %3166 = vmatpush1.msra.mxu0 %v2976
  %3167 = vmatprep.subr.mxu0 %v2981
  %3168 = vmatpush1.msra.mxu0 %v2980
  %3169 = vmatprep.subr.mxu0 %v2985
  %3170 = vmatpush1.msra.mxu0 %v2984
  %3171 = vmatprep.subr.mxu0 0.0
  %3172 = vmatpush1.msra.mxu0 0.0
  %3173 = vmatprep.subr.mxu0 0.0
  %3174 = vmatpush1.msra.mxu0 0.0
  %3175 = vmatprep.subr.mxu0 0.0
  %3176 = vmatpush1.msra.mxu0 0.0
  %3177 = vmatprep.subr.mxu0 0.0
  %3178 = vmatpush1.msra.mxu0 0.0
  %3179 = vmatprep.subr.mxu0 0.0
  %3180 = vmatpush1.msra.mxu0 0.0
  %3181 = vmatprep.subr.mxu0 0.0
  %3182 = vmatpush1.msra.mxu0 0.0
  %3183 = vmatprep.subr.mxu0 0.0
  %3184 = vmatpush1.msra.mxu0 0.0
  %3185 = vmatprep.subr.mxu0 0.0
  %3186 = vmatpush1.msra.mxu0 0.0
  %3187 = vmatprep.mubr.f32.mxu0 %v2987
  %3188 = vmatmul.mubr.f32.gmra.mrb[0].mxu0 %v2874
  %v3189 = vpop.f32.mrb[0].mxu0
  %v3190 = vadd.f32 0.0, %v3189
  %v3191 = vpop.f32.mrb[0].mxu0
  %v3192 = vadd.f32 0.0, %v3191
  %3193 = vmatprep.mubr.f32.mxu0 %v2990
  %3194 = vmatmul.mubr.f32.gmra.mrb[0].mxu0 %v2876
  %v3195 = vpop.f32.mrb[0].mxu0
  %v3196 = vadd.f32 0.0, %v3195
  %v3197 = vpop.f32.mrb[0].mxu0
  %v3198 = vadd.f32 0.0, %v3197
  %3199 = vmatprep.mubr.f32.mxu0 %v2993
  %3200 = vmatmul.mubr.f32.gmra.mrb[0].mxu0 %v2878
  %v3201 = vpop.f32.mrb[0].mxu0
  %v3202 = vadd.f32 0.0, %v3201
  %v3203 = vpop.f32.mrb[0].mxu0
  %v3204 = vadd.f32 0.0, %v3203
  %3205 = vmatprep.mubr.f32.mxu0 %v2996
  %3206 = vmatmul.mubr.f32.gmra.mrb[0].mxu0 %v2880
  %v3207 = vpop.f32.mrb[0].mxu0
  %v3208 = vadd.f32 0.0, %v3207
  %v3209 = vpop.f32.mrb[0].mxu0
  %v3210 = vadd.f32 0.0, %v3209
  %3211 = vmatprep.mubr.f32.mxu0 %v2999
  %3212 = vmatmul.mubr.f32.gmra.mrb[0].mxu0 %v2882
  %v3213 = vpop.f32.mrb[0].mxu0
  %v3214 = vadd.f32 0.0, %v3213
  %v3215 = vpop.f32.mrb[0].mxu0
  %v3216 = vadd.f32 0.0, %v3215
  %3217 = vmatprep.mubr.f32.mxu0 %v3002
  %3218 = vmatmul.mubr.f32.gmra.mrb[0].mxu0 %v2884
  %v3219 = vpop.f32.mrb[0].mxu0
  %v3220 = vadd.f32 0.0, %v3219
  %v3221 = vpop.f32.mrb[0].mxu0
  %v3222 = vadd.f32 0.0, %v3221
  %3223 = vmatprep.mubr.f32.mxu0 %v3005
  %3224 = vmatmul.mubr.f32.gmra.mrb[0].mxu0 %v2886
  %v3225 = vpop.f32.mrb[0].mxu0
  %v3226 = vadd.f32 0.0, %v3225
  %v3227 = vpop.f32.mrb[0].mxu0
  %v3228 = vadd.f32 0.0, %v3227
  %3229 = vmatprep.mubr.f32.mxu0 %v3008
  %3230 = vmatmul.mubr.f32.gmra.mrb[0].mxu0 %v2888
  %v3231 = vpop.f32.mrb[0].mxu0
  %v3232 = vadd.f32 0.0, %v3231
  %v3233 = vpop.f32.mrb[0].mxu0
  %v3234 = vadd.f32 0.0, %v3233
  %3235 = vdwg.mxu0
  %3236 = vst [vmem:[%s8] sm:$0xff] %v3077
  %3237 = vst [vmem:[%s8 + $0x8] sm:$0xff] %v3079
  %3238 = vst [vmem:[%s8 + $0x10] sm:$0xff] %v3083
  %3239 = vst [vmem:[%s8 + $0x18] sm:$0xff] %v3085
  %3240 = vst [vmem:[%s8 + $0x20] sm:$0xff] %v3089
  %3241 = vst [vmem:[%s8 + $0x28] sm:$0xff] %v3091
  %3242 = vst [vmem:[%s8 + $0x30] sm:$0xff] %v3095
  %3243 = vst [vmem:[%s8 + $0x38] sm:$0xff] %v3097
  %3244 = vst [vmem:[%s8 + $0x40] sm:$0xff] %v3101
  %3245 = vst [vmem:[%s8 + $0x48] sm:$0xff] %v3103
  %3246 = vst [vmem:[%s8 + $0x50] sm:$0xff] %v3107
  %3247 = vst [vmem:[%s8 + $0x58] sm:$0xff] %v3109
  %3248 = vst [vmem:[%s8 + $0x60] sm:$0xff] %v3113
  %3249 = vst [vmem:[%s8 + $0x68] sm:$0xff] %v3115
  %3250 = vst [vmem:[%s8 + $0x70] sm:$0xff] %v3119
  %3251 = vst [vmem:[%s8 + $0x78] sm:$0xff] %v3121
  %s3252 = scalar_lea.vmem %s8, 128
  %3253 = vst [vmem:[%s3252] sm:$0xff] %v3190
  %3254 = vst [vmem:[%s3252 + $0x8] sm:$0xff] %v3192
  %3255 = vst [vmem:[%s3252 + $0x10] sm:$0xff] %v3196
  %3256 = vst [vmem:[%s3252 + $0x18] sm:$0xff] %v3198
  %3257 = vst [vmem:[%s3252 + $0x20] sm:$0xff] %v3202
  %3258 = vst [vmem:[%s3252 + $0x28] sm:$0xff] %v3204
  %3259 = vst [vmem:[%s3252 + $0x30] sm:$0xff] %v3208
  %3260 = vst [vmem:[%s3252 + $0x38] sm:$0xff] %v3210
  %3261 = vst [vmem:[%s3252 + $0x40] sm:$0xff] %v3214
  %3262 = vst [vmem:[%s3252 + $0x48] sm:$0xff] %v3216
  %3263 = vst [vmem:[%s3252 + $0x50] sm:$0xff] %v3220
  %3264 = vst [vmem:[%s3252 + $0x58] sm:$0xff] %v3222
  %3265 = vst [vmem:[%s3252 + $0x60] sm:$0xff] %v3226
  %3266 = vst [vmem:[%s3252 + $0x68] sm:$0xff] %v3228
  %3267 = vst [vmem:[%s3252 + $0x70] sm:$0xff] %v3232
  %3268 = vst [vmem:[%s3252 + $0x78] sm:$0xff] %v3234
  // Predicated region
  $region34: #{tsm_cwa_forward.1} parent=0 // pred_check
    _
  $region35: #{tsm_cwa_forward.1} parent=0 // pred_check_branch
    %3270 = sbr.rel (0) target = $region37
  $region36: #{tsm_cwa_forward.1} parent=0 // pred_region
    _
  $region37: #{tsm_cwa_forward.1} parent=0 // pred_fallthru
    _
  // Predicated region
  $region38: #{tsm_cwa_forward.1} parent=0 // pred_check
    _
  $region39: #{tsm_cwa_forward.1} parent=0 // pred_check_branch
    %3272 = sbr.rel (0) target = $region41
  $region40: #{tsm_cwa_forward.1} parent=0 // pred_region
    _
  $region41: #{tsm_cwa_forward.1} parent=0 // pred_fallthru
    _

</llo_original>
